<compile_context>
chip_gen: v6e
topology: v6e:2x2x1
jax: 0.10.0
libtpu: 0.0.40
codegen_flags: <defaults>
</compile_context>

<pallas_src>
import jax
import jax.numpy as jnp
import numpy as np
from jax.experimental import pallas as pl
from jax.experimental.pallas import tpu as pltpu

IN_FEATURES = 2000
HIDDEN = 256
NUM_CLASSES = 3
FUSED_HIDDEN = 2 * HIDDEN       # x1.Linear and dense1.Linear fused side by side
N2 = NUM_CLASSES + 1            # fused 2nd layer: 3 logits + 1 dense2-partial column
OUT_LANES = 128                 # lane-dense packed output width
MAX_TB = 512                    # batch tile cap (fits comfortably in scoped VMEM)


def _round_up(v, m):
    return ((v + m - 1) // m) * m


def head_kernel(x_ref, w1_ref, b1_ref, w2_ref, b2_ref, wd2a_ref, out_ref):
    x = x_ref[...]                                                       # (TB, 2000)

    # Fused first layer: [x1.Linear(2000,256) | dense1.Linear(2000,256)] -> ReLU
    h = jnp.dot(x, w1_ref[...], preferred_element_type=jnp.float32) + b1_ref[...]
    h = jnp.maximum(h, 0.0)                                              # (TB, 512)

    # Fused second layer on the MXU:
    #   cols 0..2 : h1 @ W1b + b1b          (x1-branch logits)
    #   col  3    : h2 @ Wd2[3:] + bd2      (dense2 contribution from dense1 branch)
    z = jnp.dot(h, w2_ref[...], preferred_element_type=jnp.float32) + b2_ref[...]  # (TB, 4)

    # Numerically stable softmax over the 3 logit lanes; one (TB,1) divide.
    logits = z[:, :NUM_CLASSES]
    logits = logits - jnp.max(logits, axis=1, keepdims=True)
    ez = jnp.exp(logits)                                                 # (TB, 3)
    inv = 1.0 / jnp.sum(ez, axis=1, keepdims=True)                       # (TB, 1)
    out1 = ez * inv                                                      # (TB, 3)

    # dense2(cat(out1, h2)) = out1 @ Wd2[:3]  +  (h2 @ Wd2[3:] + bd2)
    out = (jnp.sum(out1 * wd2a_ref[...], axis=1, keepdims=True)
           + z[:, NUM_CLASSES:NUM_CLASSES + 1])                          # (TB, 1)

    # Pack [out1 | out | 0...] into a lane-dense (TB, 128) register block and
    # emit it with a single unmasked full-width store.
    col = jax.lax.broadcasted_iota(jnp.int32, out_ref.shape, 1)          # (TB, 128)
    packed = (jnp.where(col == 0, out1[:, 0:1], 0.0)
              + jnp.where(col == 1, out1[:, 1:2], 0.0)
              + jnp.where(col == 2, out1[:, 2:3], 0.0)
              + jnp.where(col == NUM_CLASSES, out, 0.0))
    out_ref[...] = packed


def head_forward(t, kp):
    B = t.shape[0]
    # Batch tile: cap at MAX_TB, keep sublane (8) alignment, and prefer >= 2
    # grid steps so dimension_semantics=("parallel",) can shard across v7x's
    # two TensorCores for mid-size batches.
    tb = min(MAX_TB, max(8, _round_up(pl.cdiv(B, 2), 8)))
    grid = (pl.cdiv(B, tb),)

    cost = pl.CostEstimate(
        flops=2 * B * IN_FEATURES * FUSED_HIDDEN + 2 * B * FUSED_HIDDEN * N2,
        transcendentals=B * NUM_CLASSES,
        bytes_accessed=4 * (B * IN_FEATURES + IN_FEATURES * FUSED_HIDDEN
                            + FUSED_HIDDEN * N2 + FUSED_HIDDEN + N2
                            + NUM_CLASSES + B * OUT_LANES),
    )

    packed = pl.pallas_call(
        head_kernel,
        out_shape=jax.ShapeDtypeStruct((B, OUT_LANES), jnp.float32),
        grid=grid,
        in_specs=[
            pl.BlockSpec((tb, IN_FEATURES), lambda i: (i, 0)),             # x: batch-tiled, pipelined
            pl.BlockSpec((IN_FEATURES, FUSED_HIDDEN), lambda i: (0, 0)),   # fused W1 (VMEM-resident)
            pl.BlockSpec((1, FUSED_HIDDEN), lambda i: (0, 0)),             # fused b1
            pl.BlockSpec((FUSED_HIDDEN, N2), lambda i: (0, 0)),            # fused W2
            pl.BlockSpec((1, N2), lambda i: (0, 0)),                       # fused b2 = [b1b, bd2]
            pl.BlockSpec((1, NUM_CLASSES), lambda i: (0, 0)),              # Wd2[:3].T (acts on out1)
        ],
        out_specs=pl.BlockSpec((tb, OUT_LANES), lambda i: (i, 0)),
        compiler_params=pltpu.CompilerParams(
            dimension_semantics=("parallel",),           # batch rows independent -> megacore
            vmem_limit_bytes=48 * 1024 * 1024),          # headroom for TB=512 double-buffered x
        cost_estimate=cost,
    )(t, kp["w1"], kp["b1"], kp["w2"], kp["b2"], kp["wd2a"])

    out1 = packed[:, :NUM_CLASSES]
    out = packed[:, NUM_CLASSES:NUM_CLASSES + 1]
    return out1, out


def init_params(key):
    ks = jax.random.split(key, 4)

    def linear(k, fan_in, fan_out):
        # torch-style uniform(-1/sqrt(fan_in), 1/sqrt(fan_in)), stored transposed as (in, out)
        bound = 1.0 / np.sqrt(fan_in)
        kw, kb = jax.random.split(k)
        w = jax.random.uniform(kw, (fan_in, fan_out), jnp.float32, -bound, bound)
        b = jax.random.uniform(kb, (1, fan_out), jnp.float32, -bound, bound)
        return w, b

    w1a, b1a = linear(ks[0], IN_FEATURES, HIDDEN)        # x1[0]: Linear(2000, 256)
    w1b, b1b = linear(ks[1], HIDDEN, NUM_CLASSES)        # x1[2]: Linear(256, 3)
    wd1, bd1 = linear(ks[2], IN_FEATURES, HIDDEN)        # dense1: Linear(2000, 256)
    wd2, bd2 = linear(ks[3], NUM_CLASSES + HIDDEN, 1)    # dense2: Linear(259, 1)
    return {"w1a": w1a, "b1a": b1a, "w1b": w1b, "b1b": b1b,
            "wd1": wd1, "bd1": bd1, "wd2": wd2, "bd2": bd2}


def pack_params(p):
    """Fold the four Linears into the fused layout the kernel consumes (no K padding)."""
    w1 = jnp.concatenate([p["w1a"], p["wd1"]], axis=1)                 # (2000, 512)
    b1 = jnp.concatenate([p["b1a"], p["bd1"]], axis=1)                 # (1, 512)

    w2 = jnp.zeros((FUSED_HIDDEN, N2), jnp.float32)
    w2 = w2.at[:HIDDEN, :NUM_CLASSES].set(p["w1b"])                    # logits path
    w2 = w2.at[HIDDEN:, NUM_CLASSES:].set(p["wd2"][NUM_CLASSES:, :])   # dense2 h2-path
    b2 = jnp.concatenate([p["b1b"], p["bd2"]], axis=1)                 # (1, 4)

    wd2a = p["wd2"][:NUM_CLASSES, :].T                                 # (1, 3) acts on out1
    return {"w1": w1, "b1": b1, "w2": w2, "b2": b2, "wd2a": wd2a}


def head_reference(t, p):
    h1 = jnp.maximum(t @ p["w1a"] + p["b1a"], 0.0)
    out1 = jax.nn.softmax(h1 @ p["w1b"] + p["b1b"], axis=1)
    h2 = jnp.maximum(t @ p["wd1"] + p["bd1"], 0.0)
    cat = jnp.concatenate([out1, h2], axis=1)
    out = cat @ p["wd2"] + p["bd2"]
    return out1, out


if __name__ == "__main__":
    key = jax.random.PRNGKey(0)
    k_t, k_p = jax.random.split(key)

    B = 8
    t = jax.random.normal(k_t, (B, IN_FEATURES), dtype=jnp.float32)
    params = init_params(k_p)
    kparams = pack_params(params)

    out1, out = jax.jit(head_forward)(t, kparams)
    jax.block_until_ready((out1, out))

    ref1, ref = head_reference(t, params)
    np.testing.assert_allclose(np.asarray(out1), np.asarray(ref1), rtol=1e-5, atol=1e-5)
    np.testing.assert_allclose(np.asarray(out), np.asarray(ref), rtol=1e-5, atol=1e-5)

    print("KERNEL_OK")
</pallas_src>

<mosaic_0001>
module attributes {stable_mosaic.version = 11 : i64} {
  func.func @head_kernel(%arg0: i32, %arg1: memref<8x2000xf32, #tpu.memory_space<vmem>>, %arg2: memref<2000x512xf32, #tpu.memory_space<vmem>>, %arg3: memref<1x512xf32, #tpu.memory_space<vmem>>, %arg4: memref<512x4xf32, #tpu.memory_space<vmem>>, %arg5: memref<1x4xf32, #tpu.memory_space<vmem>>, %arg6: memref<1x3xf32, #tpu.memory_space<vmem>>, %arg7: memref<8x128xf32, #tpu.memory_space<vmem>>) attributes {dimension_semantics = [#tpu.dimension_semantics<parallel>], iteration_bounds = array<i64: 1>, scalar_prefetch = 0 : i64, scratch_operands = 0 : i64, tpu.core_type = #tpu.core_type<tc>, window_params = [{transform_indices = @transform_0, window_bounds = array<i64: 8, 2000>}, {pipeline_mode = #tpu.pipeline_mode<synchronous>, transform_indices = @transform_1, window_bounds = array<i64: 2000, 512>}, {pipeline_mode = #tpu.pipeline_mode<synchronous>, transform_indices = @transform_2, window_bounds = array<i64: 1, 512>}, {pipeline_mode = #tpu.pipeline_mode<synchronous>, transform_indices = @transform_3, window_bounds = array<i64: 512, 4>}, {pipeline_mode = #tpu.pipeline_mode<synchronous>, transform_indices = @transform_4, window_bounds = array<i64: 1, 4>}, {pipeline_mode = #tpu.pipeline_mode<synchronous>, transform_indices = @transform_5, window_bounds = array<i64: 1, 3>}, {transform_indices = @transform_6, window_bounds = array<i64: 8, 128>}]} {
    %c0 = arith.constant 0 : index
    %c0_0 = arith.constant 0 : index
    %0 = vector.load %arg1[%c0, %c0_0] : memref<8x2000xf32, #tpu.memory_space<vmem>>, vector<8x2000xf32>
    %c0_1 = arith.constant 0 : index
    %c0_2 = arith.constant 0 : index
    %1 = vector.load %arg2[%c0_1, %c0_2] : memref<2000x512xf32, #tpu.memory_space<vmem>>, vector<2000x512xf32>
    %cst = arith.constant dense<0.000000e+00> : vector<8x512xf32>
    %2 = tpu.matmul %0, %1, %cst {dimension_numbers = #tpu.dot_dimension_numbers<[1], [0], [0], [1], [0, 0, 1, 1], [], []>} : vector<8x2000xf32>, vector<2000x512xf32>, vector<8x512xf32> -> vector<8x512xf32>
    %c0_3 = arith.constant 0 : index
    %c0_4 = arith.constant 0 : index
    %3 = vector.load %arg3[%c0_3, %c0_4] : memref<1x512xf32, #tpu.memory_space<vmem>>, vector<1x512xf32>
    %4 = vector.broadcast %3 : vector<1x512xf32> to vector<8x512xf32>
    %5 = arith.addf %2, %4 : vector<8x512xf32>
    %cst_5 = arith.constant 0.000000e+00 : f32
    %6 = vector.broadcast %cst_5 : f32 to vector<8x512xf32>
    %7 = arith.maximumf %5, %6 : vector<8x512xf32>
    %c0_6 = arith.constant 0 : index
    %c0_7 = arith.constant 0 : index
    %8 = vector.load %arg4[%c0_6, %c0_7] : memref<512x4xf32, #tpu.memory_space<vmem>>, vector<512x4xf32>
    %cst_8 = arith.constant dense<0.000000e+00> : vector<8x4xf32>
    %9 = tpu.matmul %7, %8, %cst_8 {dimension_numbers = #tpu.dot_dimension_numbers<[1], [0], [0], [1], [0, 0, 1, 1], [], []>} : vector<8x512xf32>, vector<512x4xf32>, vector<8x4xf32> -> vector<8x4xf32>
    %c0_9 = arith.constant 0 : index
    %c0_10 = arith.constant 0 : index
    %10 = vector.load %arg5[%c0_9, %c0_10] : memref<1x4xf32, #tpu.memory_space<vmem>>, vector<1x4xf32>
    %11 = vector.broadcast %10 : vector<1x4xf32> to vector<8x4xf32>
    %12 = arith.addf %9, %11 : vector<8x4xf32>
    %13 = vector.extract_strided_slice %12 {offsets = [0, 0], sizes = [8, 3], strides = [1, 1]} : vector<8x4xf32> to vector<8x3xf32>
    %cst_11 = arith.constant dense<0xFF800000> : vector<8xf32>
    %14 = vector.multi_reduction <maximumf>, %13, %cst_11 [1] : vector<8x3xf32> to vector<8xf32>
    %15 = vector.shape_cast %14 : vector<8xf32> to vector<8x1xf32>
    %16 = vector.broadcast %15 : vector<8x1xf32> to vector<8x3xf32>
    %17 = arith.subf %13, %16 : vector<8x3xf32>
    %18 = math.exp %17 : vector<8x3xf32>
    %cst_12 = arith.constant dense<0.000000e+00> : vector<8xf32>
    %19 = vector.multi_reduction <add>, %18, %cst_12 [1] : vector<8x3xf32> to vector<8xf32>
    %20 = vector.shape_cast %19 : vector<8xf32> to vector<8x1xf32>
    %cst_13 = arith.constant 1.000000e+00 : f32
    %21 = vector.broadcast %cst_13 : f32 to vector<8x1xf32>
    %22 = arith.divf %21, %20 : vector<8x1xf32>
    %23 = vector.broadcast %22 : vector<8x1xf32> to vector<8x3xf32>
    %24 = arith.mulf %18, %23 : vector<8x3xf32>
    %c0_14 = arith.constant 0 : index
    %c0_15 = arith.constant 0 : index
    %25 = vector.load %arg6[%c0_14, %c0_15] : memref<1x3xf32, #tpu.memory_space<vmem>>, vector<1x3xf32>
    %26 = vector.broadcast %25 : vector<1x3xf32> to vector<8x3xf32>
    %27 = arith.mulf %24, %26 : vector<8x3xf32>
    %cst_16 = arith.constant dense<0.000000e+00> : vector<8xf32>
    %28 = vector.multi_reduction <add>, %27, %cst_16 [1] : vector<8x3xf32> to vector<8xf32>
    %29 = vector.shape_cast %28 : vector<8xf32> to vector<8x1xf32>
    %30 = vector.extract_strided_slice %12 {offsets = [0, 3], sizes = [8, 1], strides = [1, 1]} : vector<8x4xf32> to vector<8x1xf32>
    %31 = arith.addf %29, %30 : vector<8x1xf32>
    %32 = tpu.iota {dimensions = array<i32: 1>} : vector<8x128xi32>
    %c0_i32 = arith.constant 0 : i32
    %33 = vector.broadcast %c0_i32 : i32 to vector<8x128xi32>
    %34 = arith.cmpi eq, %32, %33 : vector<8x128xi32>
    %35 = vector.extract_strided_slice %24 {offsets = [0, 0], sizes = [8, 1], strides = [1, 1]} : vector<8x3xf32> to vector<8x1xf32>
    %cst_17 = arith.constant 0.000000e+00 : f32
    %36 = vector.shape_cast %35 : vector<8x1xf32> to vector<8x1xf32>
    %37 = vector.broadcast %36 : vector<8x1xf32> to vector<8x128xf32>
    %38 = vector.broadcast %cst_17 : f32 to vector<8x128xf32>
    %39 = arith.select %34, %37, %38 : vector<8x128xi1>, vector<8x128xf32>
    %c1_i32 = arith.constant 1 : i32
    %40 = vector.broadcast %c1_i32 : i32 to vector<8x128xi32>
    %41 = arith.cmpi eq, %32, %40 : vector<8x128xi32>
    %42 = vector.extract_strided_slice %24 {offsets = [0, 1], sizes = [8, 1], strides = [1, 1]} : vector<8x3xf32> to vector<8x1xf32>
    %cst_18 = arith.constant 0.000000e+00 : f32
    %43 = vector.shape_cast %42 : vector<8x1xf32> to vector<8x1xf32>
    %44 = vector.broadcast %43 : vector<8x1xf32> to vector<8x128xf32>
    %45 = vector.broadcast %cst_18 : f32 to vector<8x128xf32>
    %46 = arith.select %41, %44, %45 : vector<8x128xi1>, vector<8x128xf32>
    %47 = arith.addf %39, %46 : vector<8x128xf32>
    %c2_i32 = arith.constant 2 : i32
    %48 = vector.broadcast %c2_i32 : i32 to vector<8x128xi32>
    %49 = arith.cmpi eq, %32, %48 : vector<8x128xi32>
    %50 = vector.extract_strided_slice %24 {offsets = [0, 2], sizes = [8, 1], strides = [1, 1]} : vector<8x3xf32> to vector<8x1xf32>
    %cst_19 = arith.constant 0.000000e+00 : f32
    %51 = vector.shape_cast %50 : vector<8x1xf32> to vector<8x1xf32>
    %52 = vector.broadcast %51 : vector<8x1xf32> to vector<8x128xf32>
    %53 = vector.broadcast %cst_19 : f32 to vector<8x128xf32>
    %54 = arith.select %49, %52, %53 : vector<8x128xi1>, vector<8x128xf32>
    %55 = arith.addf %47, %54 : vector<8x128xf32>
    %c3_i32 = arith.constant 3 : i32
    %56 = vector.broadcast %c3_i32 : i32 to vector<8x128xi32>
    %57 = arith.cmpi eq, %32, %56 : vector<8x128xi32>
    %cst_20 = arith.constant 0.000000e+00 : f32
    %58 = vector.shape_cast %31 : vector<8x1xf32> to vector<8x1xf32>
    %59 = vector.broadcast %58 : vector<8x1xf32> to vector<8x128xf32>
    %60 = vector.broadcast %cst_20 : f32 to vector<8x128xf32>
    %61 = arith.select %57, %59, %60 : vector<8x128xi1>, vector<8x128xf32>
    %62 = arith.addf %55, %61 : vector<8x128xf32>
    %c0_21 = arith.constant 0 : index
    %c0_22 = arith.constant 0 : index
    %63 = vector.load %arg7[%c0_21, %c0_22] : memref<8x128xf32, #tpu.memory_space<vmem>>, vector<8x128xf32>
    tpu.vector_store %arg7[%c0_21, %c0_22], %62 {strides = array<i32>} : memref<8x128xf32, #tpu.memory_space<vmem>>, vector<8x128xf32>,
    return
  }
  func.func @transform_0(%arg0: i32) -> (i32, i32) {
    %c0_i32 = arith.constant 0 : i32
    %c0_i32_0 = arith.constant 0 : i32
    return %arg0, %c0_i32 : i32, i32
  }
  func.func @transform_1(%arg0: i32) -> (i32, i32) {
    %c0_i32 = arith.constant 0 : i32
    %c0_i32_0 = arith.constant 0 : i32
    %c0_i32_1 = arith.constant 0 : i32
    return %c0_i32, %c0_i32_0 : i32, i32
  }
  func.func @transform_2(%arg0: i32) -> (i32, i32) {
    %c0_i32 = arith.constant 0 : i32
    %c0_i32_0 = arith.constant 0 : i32
    %c0_i32_1 = arith.constant 0 : i32
    return %c0_i32, %c0_i32_0 : i32, i32
  }
  func.func @transform_3(%arg0: i32) -> (i32, i32) {
    %c0_i32 = arith.constant 0 : i32
    %c0_i32_0 = arith.constant 0 : i32
    %c0_i32_1 = arith.constant 0 : i32
    return %c0_i32, %c0_i32_0 : i32, i32
  }
  func.func @transform_4(%arg0: i32) -> (i32, i32) {
    %c0_i32 = arith.constant 0 : i32
    %c0_i32_0 = arith.constant 0 : i32
    %c0_i32_1 = arith.constant 0 : i32
    return %c0_i32, %c0_i32_0 : i32, i32
  }
  func.func @transform_5(%arg0: i32) -> (i32, i32) {
    %c0_i32 = arith.constant 0 : i32
    %c0_i32_0 = arith.constant 0 : i32
    %c0_i32_1 = arith.constant 0 : i32
    return %c0_i32, %c0_i32_0 : i32, i32
  }
  func.func @transform_6(%arg0: i32) -> (i32, i32) {
    %c0_i32 = arith.constant 0 : i32
    %c0_i32_0 = arith.constant 0 : i32
    return %arg0, %c0_i32 : i32, i32
  }
}

</mosaic_0001>

<llo_original>
// kernel: head_forward.1
$region0: #{head_forward.1}
  #allocation0 [shape = 'u32[]', space=smem, size = 0x4, offset = 0x4, fixed_abs, tag = 'smem constant byte address 0x4 - core index']
  #allocation1 [shape = 'u32[144,128]{1,0:T(1,128)}', space=vmem, size = 0x12000, scoped, tag = 'internal scratch']
  %s0 = inlined_call_operand.hbm [shape: f32[8,2000], index: 0, kind: input, shape index: {}]
  %s1 = inlined_call_operand.hbm [shape: f32[2000,512], index: 1, kind: input, shape index: {}]
  %s2 = inlined_call_operand.hbm [shape: f32[1,512], index: 2, kind: input, shape index: {}]
  %s3 = inlined_call_operand.vmem [shape: f32[512,4], index: 3, kind: input, shape index: {}]
  %s4 = inlined_call_operand.hbm [shape: f32[1,4], index: 4, kind: input, shape index: {}]
  %s5 = inlined_call_operand.hbm [shape: f32[1,3], index: 5, kind: input, shape index: {}]
  %s6 = inlined_call_operand.vmem [shape: f32[8,128], index: 6, kind: output, shape index: {}]
  %s7 = sld [smem:[#allocation0]]
  $region54: #{head_forward.1} parent=0
    _
  %s9 = ssub.s32 1, %s7
  %s10 = scalar_select 0, %s9, %s7
  $region1: #{head_forward.1} parent=0
    #allocation2 [shape = 'u8[65536]{0}', space=vmem, size = 0x10000, scoped, tag = 'input window, operand 0, single buffered']
    #allocation3 [shape = 's32[1]{0}', space=sflag, size = 0x4, scoped, tag = 'scoped memory for head_forward.1']
    #allocation4 [shape = 'u8[4096000]{0}', space=vmem, size = 0x3e8000, scoped, tag = 'input window, operand 1, single buffered']
    #allocation5 [shape = 's32[1]{0}', space=sflag, size = 0x4, scoped, tag = 'scoped memory for head_forward.1']
    #allocation6 [shape = 'u8[2048]{0}', space=vmem, size = 0x800, scoped, tag = 'input window, operand 2, single buffered']
    #allocation7 [shape = 'u8[512]{0}', space=vmem, size = 0x400, scoped, tag = 'input window, operand 4, single buffered']
    #allocation8 [shape = 's32[1]{0}', space=sflag, size = 0x4, scoped, tag = 'scoped memory for head_forward.1']
    #allocation9 [shape = 'u8[512]{0}', space=vmem, size = 0x400, scoped, tag = 'input window, operand 5, single buffered']
    %11 = vsyncpa [#allocation3], 0
    %12 = vsyncpa [#allocation5], 0
    %13 = vsyncpa [#allocation8], 0
    // Predicated region
    $region2: #{head_forward.1} parent=1 // pred_check
      _
    $region3: #{head_forward.1} parent=1 // pred_check_branch
      %15 = sbr.rel (0) target = $region5
    $region4: #{head_forward.1} parent=1 // pred_region
      %s17 = ssub.s32 2048, 2048
      %18 = vsyncadd [#allocation3], %s17
      %s20 = sshll.u32 [#allocation2], 4
      %s21 = int_to_ptr.vmem [resolvable:$true] %s20
      %23 = dma.hbm_to_vmem [thread:$0]  %s0, 2048, %s21, [#allocation3]
    $region5: #{head_forward.1} parent=1 // pred_fallthru
      _
    // Predicated region
    $region6: #{head_forward.1} parent=1 // pred_check
      _
    $region7: #{head_forward.1} parent=1 // pred_check_branch
      %25 = sbr.rel (0) target = $region9
    $region8: #{head_forward.1} parent=1 // pred_region
      %s27 = ssub.s32 128000, 128000
      %28 = vsyncadd [#allocation5], %s27
      %s29 = sshll.u32 [#allocation4], 4
      %s30 = int_to_ptr.vmem [resolvable:$true] %s29
      %35 = dma.hbm_to_vmem [thread:$0]  %s1, 128000, %s30, [#allocation5], 512, 512, 32
    $region9: #{head_forward.1} parent=1 // pred_fallthru
      _
    // Predicated region
    $region10: #{head_forward.1} parent=1 // pred_check
      _
    $region11: #{head_forward.1} parent=1 // pred_check_branch
      %37 = sbr.rel (0) target = $region13
    $region12: #{head_forward.1} parent=1 // pred_region
      %s39 = ssub.s32 64, 64
      %40 = vsyncadd [#allocation5], %s39
      %s42 = sshll.u32 [#allocation6], 4
      %s43 = int_to_ptr.vmem [resolvable:$true] %s42
      %45 = dma.hbm_to_vmem [thread:$0]  %s2, 64, %s43, [#allocation5]
    $region13: #{head_forward.1} parent=1 // pred_fallthru
      _
    // Predicated region
    $region14: #{head_forward.1} parent=1 // pred_check
      _
    $region15: #{head_forward.1} parent=1 // pred_check_branch
      %47 = sbr.rel (0) target = $region17
    $region16: #{head_forward.1} parent=1 // pred_region
      _
    $region17: #{head_forward.1} parent=1 // pred_fallthru
      _
    // Predicated region
    $region18: #{head_forward.1} parent=1 // pred_check
      _
    $region19: #{head_forward.1} parent=1 // pred_check_branch
      %49 = sbr.rel (0) target = $region21
    $region20: #{head_forward.1} parent=1 // pred_region
      %s51 = ssub.s32 16, 16
      %52 = vsyncadd [#allocation8], %s51
      %s54 = sshll.u32 [#allocation7], 4
      %s55 = int_to_ptr.vmem [resolvable:$true] %s54
      %57 = dma.hbm_to_vmem [thread:$0]  %s4, 16, %s55, [#allocation8]
    $region21: #{head_forward.1} parent=1 // pred_fallthru
      _
    // Predicated region
    $region22: #{head_forward.1} parent=1 // pred_check
      _
    $region23: #{head_forward.1} parent=1 // pred_check_branch
      %59 = sbr.rel (0) target = $region25
    $region24: #{head_forward.1} parent=1 // pred_region
      %s61 = ssub.s32 16, 16
      %62 = vsyncadd [#allocation8], %s61
      %s64 = sshll.u32 [#allocation9], 4
      %s65 = int_to_ptr.vmem [resolvable:$true] %s64
      %67 = dma.hbm_to_vmem [thread:$0]  %s5, 16, %s65, [#allocation8]
    $region25: #{head_forward.1} parent=1 // pred_fallthru
      _
    // Predicated region
    $region26: #{head_forward.1} parent=1 // pred_check
      _
    $region27: #{head_forward.1} parent=1 // pred_check_branch
      %69 = sbr.rel (0) target = $region29
    $region28: #{head_forward.1} parent=1 // pred_region
      %70 = dma.done [#allocation3], 2048
    $region29: #{head_forward.1} parent=1 // pred_fallthru
      _
    // Predicated region
    $region30: #{head_forward.1} parent=1 // pred_check
      _
    $region31: #{head_forward.1} parent=1 // pred_check_branch
      %72 = sbr.rel (0) target = $region33
    $region32: #{head_forward.1} parent=1 // pred_region
      %73 = dma.done [#allocation5], 128000
    $region33: #{head_forward.1} parent=1 // pred_fallthru
      _
    // Predicated region
    $region34: #{head_forward.1} parent=1 // pred_check
      _
    $region35: #{head_forward.1} parent=1 // pred_check_branch
      %75 = sbr.rel (0) target = $region37
    $region36: #{head_forward.1} parent=1 // pred_region
      %76 = dma.done [#allocation5], 64
    $region37: #{head_forward.1} parent=1 // pred_fallthru
      _
    // Predicated region
    $region38: #{head_forward.1} parent=1 // pred_check
      _
    $region39: #{head_forward.1} parent=1 // pred_check_branch
      %78 = sbr.rel (0) target = $region41
    $region40: #{head_forward.1} parent=1 // pred_region
      %79 = dma.done [#allocation8], 16
    $region41: #{head_forward.1} parent=1 // pred_fallthru
      _
    // Predicated region
    $region42: #{head_forward.1} parent=1 // pred_check
      _
    $region43: #{head_forward.1} parent=1 // pred_check_branch
      %81 = sbr.rel (0) target = $region45
    $region44: #{head_forward.1} parent=1 // pred_region
      %82 = dma.done [#allocation8], 16
    $region45: #{head_forward.1} parent=1 // pred_fallthru
      _
    %v83 = vld [vmem:[#allocation2] sm:$0xff]
    %v84 = vld [vmem:[#allocation2 + $0x8] sm:$0xff]
    %v85 = vld [vmem:[#allocation2 + $0x10] sm:$0xff]
    %v86 = vld [vmem:[#allocation2 + $0x18] sm:$0xff]
    %v87 = vld [vmem:[#allocation2 + $0x20] sm:$0xff]
    %v88 = vld [vmem:[#allocation2 + $0x28] sm:$0xff]
    %v89 = vld [vmem:[#allocation2 + $0x30] sm:$0xff]
    %v90 = vld [vmem:[#allocation2 + $0x38] sm:$0xff]
    %v91 = vld [vmem:[#allocation2 + $0x40] sm:$0xff]
    %v92 = vld [vmem:[#allocation2 + $0x48] sm:$0xff]
    %v93 = vld [vmem:[#allocation2 + $0x50] sm:$0xff]
    %v94 = vld [vmem:[#allocation2 + $0x58] sm:$0xff]
    %v95 = vld [vmem:[#allocation2 + $0x60] sm:$0xff]
    %v96 = vld [vmem:[#allocation2 + $0x68] sm:$0xff]
    %v97 = vld [vmem:[#allocation2 + $0x70] sm:$0xff]
    %v98 = vld [vmem:[#allocation2 + $0x78] sm:$0xff]
    %v99 = vld [vmem:[#allocation4] sm:$0xff]
    %v100 = vld [vmem:[#allocation4 + $0x8] sm:$0xff]
    %v101 = vld [vmem:[#allocation4 + $0x10] sm:$0xff]
    %v102 = vld [vmem:[#allocation4 + $0x18] sm:$0xff]
    %v103 = vld [vmem:[#allocation4 + $0x20] sm:$0xff]
    %v104 = vld [vmem:[#allocation4 + $0x28] sm:$0xff]
    %v105 = vld [vmem:[#allocation4 + $0x30] sm:$0xff]
    %v106 = vld [vmem:[#allocation4 + $0x38] sm:$0xff]
    %v107 = vld [vmem:[#allocation4 + $0x40] sm:$0xff]
    %v108 = vld [vmem:[#allocation4 + $0x48] sm:$0xff]
    %v109 = vld [vmem:[#allocation4 + $0x50] sm:$0xff]
    %v110 = vld [vmem:[#allocation4 + $0x58] sm:$0xff]
    %v111 = vld [vmem:[#allocation4 + $0x60] sm:$0xff]
    %v112 = vld [vmem:[#allocation4 + $0x68] sm:$0xff]
    %v113 = vld [vmem:[#allocation4 + $0x70] sm:$0xff]
    %v114 = vld [vmem:[#allocation4 + $0x78] sm:$0xff]
    %v115 = vld [vmem:[#allocation4 + $0x80] sm:$0xff]
    %v116 = vld [vmem:[#allocation4 + $0x88] sm:$0xff]
    %v117 = vld [vmem:[#allocation4 + $0x90] sm:$0xff]
    %v118 = vld [vmem:[#allocation4 + $0x98] sm:$0xff]
    %v119 = vld [vmem:[#allocation4 + $0xa0] sm:$0xff]
    %v120 = vld [vmem:[#allocation4 + $0xa8] sm:$0xff]
    %v121 = vld [vmem:[#allocation4 + $0xb0] sm:$0xff]
    %v122 = vld [vmem:[#allocation4 + $0xb8] sm:$0xff]
    %v123 = vld [vmem:[#allocation4 + $0xc0] sm:$0xff]
    %v124 = vld [vmem:[#allocation4 + $0xc8] sm:$0xff]
    %v125 = vld [vmem:[#allocation4 + $0xd0] sm:$0xff]
    %v126 = vld [vmem:[#allocation4 + $0xd8] sm:$0xff]
    %v127 = vld [vmem:[#allocation4 + $0xe0] sm:$0xff]
    %v128 = vld [vmem:[#allocation4 + $0xe8] sm:$0xff]
    %v129 = vld [vmem:[#allocation4 + $0xf0] sm:$0xff]
    %v130 = vld [vmem:[#allocation4 + $0xf8] sm:$0xff]
    %v131 = vld [vmem:[#allocation4 + $0x100] sm:$0xff]
    %v132 = vld [vmem:[#allocation4 + $0x108] sm:$0xff]
    %v133 = vld [vmem:[#allocation4 + $0x110] sm:$0xff]
    %v134 = vld [vmem:[#allocation4 + $0x118] sm:$0xff]
    %v135 = vld [vmem:[#allocation4 + $0x120] sm:$0xff]
    %v136 = vld [vmem:[#allocation4 + $0x128] sm:$0xff]
    %v137 = vld [vmem:[#allocation4 + $0x130] sm:$0xff]
    %v138 = vld [vmem:[#allocation4 + $0x138] sm:$0xff]
    %v139 = vld [vmem:[#allocation4 + $0x140] sm:$0xff]
    %v140 = vld [vmem:[#allocation4 + $0x148] sm:$0xff]
    %v141 = vld [vmem:[#allocation4 + $0x150] sm:$0xff]
    %v142 = vld [vmem:[#allocation4 + $0x158] sm:$0xff]
    %v143 = vld [vmem:[#allocation4 + $0x160] sm:$0xff]
    %v144 = vld [vmem:[#allocation4 + $0x168] sm:$0xff]
    %v145 = vld [vmem:[#allocation4 + $0x170] sm:$0xff]
    %v146 = vld [vmem:[#allocation4 + $0x178] sm:$0xff]
    %v147 = vld [vmem:[#allocation4 + $0x180] sm:$0xff]
    %v148 = vld [vmem:[#allocation4 + $0x188] sm:$0xff]
    %v149 = vld [vmem:[#allocation4 + $0x190] sm:$0xff]
    %v150 = vld [vmem:[#allocation4 + $0x198] sm:$0xff]
    %v151 = vld [vmem:[#allocation4 + $0x1a0] sm:$0xff]
    %v152 = vld [vmem:[#allocation4 + $0x1a8] sm:$0xff]
    %v153 = vld [vmem:[#allocation4 + $0x1b0] sm:$0xff]
    %v154 = vld [vmem:[#allocation4 + $0x1b8] sm:$0xff]
    %v155 = vld [vmem:[#allocation4 + $0x1c0] sm:$0xff]
    %v156 = vld [vmem:[#allocation4 + $0x1c8] sm:$0xff]
    %v157 = vld [vmem:[#allocation4 + $0x1d0] sm:$0xff]
    %v158 = vld [vmem:[#allocation4 + $0x1d8] sm:$0xff]
    %v159 = vld [vmem:[#allocation4 + $0x1e0] sm:$0xff]
    %v160 = vld [vmem:[#allocation4 + $0x1e8] sm:$0xff]
    %v161 = vld [vmem:[#allocation4 + $0x1f0] sm:$0xff]
    %v162 = vld [vmem:[#allocation4 + $0x1f8] sm:$0xff]
    %v163 = vld [vmem:[#allocation4 + $0x200] sm:$0xff]
    %v164 = vld [vmem:[#allocation4 + $0x208] sm:$0xff]
    %v165 = vld [vmem:[#allocation4 + $0x210] sm:$0xff]
    %v166 = vld [vmem:[#allocation4 + $0x218] sm:$0xff]
    %v167 = vld [vmem:[#allocation4 + $0x220] sm:$0xff]
    %v168 = vld [vmem:[#allocation4 + $0x228] sm:$0xff]
    %v169 = vld [vmem:[#allocation4 + $0x230] sm:$0xff]
    %v170 = vld [vmem:[#allocation4 + $0x238] sm:$0xff]
    %v171 = vld [vmem:[#allocation4 + $0x240] sm:$0xff]
    %v172 = vld [vmem:[#allocation4 + $0x248] sm:$0xff]
    %v173 = vld [vmem:[#allocation4 + $0x250] sm:$0xff]
    %v174 = vld [vmem:[#allocation4 + $0x258] sm:$0xff]
    %v175 = vld [vmem:[#allocation4 + $0x260] sm:$0xff]
    %v176 = vld [vmem:[#allocation4 + $0x268] sm:$0xff]
    %v177 = vld [vmem:[#allocation4 + $0x270] sm:$0xff]
    %v178 = vld [vmem:[#allocation4 + $0x278] sm:$0xff]
    %v179 = vld [vmem:[#allocation4 + $0x280] sm:$0xff]
    %v180 = vld [vmem:[#allocation4 + $0x288] sm:$0xff]
    %v181 = vld [vmem:[#allocation4 + $0x290] sm:$0xff]
    %v182 = vld [vmem:[#allocation4 + $0x298] sm:$0xff]
    %v183 = vld [vmem:[#allocation4 + $0x2a0] sm:$0xff]
    %v184 = vld [vmem:[#allocation4 + $0x2a8] sm:$0xff]
    %v185 = vld [vmem:[#allocation4 + $0x2b0] sm:$0xff]
    %v186 = vld [vmem:[#allocation4 + $0x2b8] sm:$0xff]
    %v187 = vld [vmem:[#allocation4 + $0x2c0] sm:$0xff]
    %v188 = vld [vmem:[#allocation4 + $0x2c8] sm:$0xff]
    %v189 = vld [vmem:[#allocation4 + $0x2d0] sm:$0xff]
    %v190 = vld [vmem:[#allocation4 + $0x2d8] sm:$0xff]
    %v191 = vld [vmem:[#allocation4 + $0x2e0] sm:$0xff]
    %v192 = vld [vmem:[#allocation4 + $0x2e8] sm:$0xff]
    %v193 = vld [vmem:[#allocation4 + $0x2f0] sm:$0xff]
    %v194 = vld [vmem:[#allocation4 + $0x2f8] sm:$0xff]
    %v195 = vld [vmem:[#allocation4 + $0x300] sm:$0xff]
    %v196 = vld [vmem:[#allocation4 + $0x308] sm:$0xff]
    %v197 = vld [vmem:[#allocation4 + $0x310] sm:$0xff]
    %v198 = vld [vmem:[#allocation4 + $0x318] sm:$0xff]
    %v199 = vld [vmem:[#allocation4 + $0x320] sm:$0xff]
    %v200 = vld [vmem:[#allocation4 + $0x328] sm:$0xff]
    %v201 = vld [vmem:[#allocation4 + $0x330] sm:$0xff]
    %v202 = vld [vmem:[#allocation4 + $0x338] sm:$0xff]
    %v203 = vld [vmem:[#allocation4 + $0x340] sm:$0xff]
    %v204 = vld [vmem:[#allocation4 + $0x348] sm:$0xff]
    %v205 = vld [vmem:[#allocation4 + $0x350] sm:$0xff]
    %v206 = vld [vmem:[#allocation4 + $0x358] sm:$0xff]
    %v207 = vld [vmem:[#allocation4 + $0x360] sm:$0xff]
    %v208 = vld [vmem:[#allocation4 + $0x368] sm:$0xff]
    %v209 = vld [vmem:[#allocation4 + $0x370] sm:$0xff]
    %v210 = vld [vmem:[#allocation4 + $0x378] sm:$0xff]
    %v211 = vld [vmem:[#allocation4 + $0x380] sm:$0xff]
    %v212 = vld [vmem:[#allocation4 + $0x388] sm:$0xff]
    %v213 = vld [vmem:[#allocation4 + $0x390] sm:$0xff]
    %v214 = vld [vmem:[#allocation4 + $0x398] sm:$0xff]
    %v215 = vld [vmem:[#allocation4 + $0x3a0] sm:$0xff]
    %v216 = vld [vmem:[#allocation4 + $0x3a8] sm:$0xff]
    %v217 = vld [vmem:[#allocation4 + $0x3b0] sm:$0xff]
    %v218 = vld [vmem:[#allocation4 + $0x3b8] sm:$0xff]
    %v219 = vld [vmem:[#allocation4 + $0x3c0] sm:$0xff]
    %v220 = vld [vmem:[#allocation4 + $0x3c8] sm:$0xff]
    %v221 = vld [vmem:[#allocation4 + $0x3d0] sm:$0xff]
    %v222 = vld [vmem:[#allocation4 + $0x3d8] sm:$0xff]
    %v223 = vld [vmem:[#allocation4 + $0x3e0] sm:$0xff]
    %v224 = vld [vmem:[#allocation4 + $0x3e8] sm:$0xff]
    %v225 = vld [vmem:[#allocation4 + $0x3f0] sm:$0xff]
    %v226 = vld [vmem:[#allocation4 + $0x3f8] sm:$0xff]
    %v227 = vld [vmem:[#allocation4 + $0x400] sm:$0xff]
    %v228 = vld [vmem:[#allocation4 + $0x408] sm:$0xff]
    %v229 = vld [vmem:[#allocation4 + $0x410] sm:$0xff]
    %v230 = vld [vmem:[#allocation4 + $0x418] sm:$0xff]
    %v231 = vld [vmem:[#allocation4 + $0x420] sm:$0xff]
    %v232 = vld [vmem:[#allocation4 + $0x428] sm:$0xff]
    %v233 = vld [vmem:[#allocation4 + $0x430] sm:$0xff]
    %v234 = vld [vmem:[#allocation4 + $0x438] sm:$0xff]
    %v235 = vld [vmem:[#allocation4 + $0x440] sm:$0xff]
    %v236 = vld [vmem:[#allocation4 + $0x448] sm:$0xff]
    %v237 = vld [vmem:[#allocation4 + $0x450] sm:$0xff]
    %v238 = vld [vmem:[#allocation4 + $0x458] sm:$0xff]
    %v239 = vld [vmem:[#allocation4 + $0x460] sm:$0xff]
    %v240 = vld [vmem:[#allocation4 + $0x468] sm:$0xff]
    %v241 = vld [vmem:[#allocation4 + $0x470] sm:$0xff]
    %v242 = vld [vmem:[#allocation4 + $0x478] sm:$0xff]
    %v243 = vld [vmem:[#allocation4 + $0x480] sm:$0xff]
    %v244 = vld [vmem:[#allocation4 + $0x488] sm:$0xff]
    %v245 = vld [vmem:[#allocation4 + $0x490] sm:$0xff]
    %v246 = vld [vmem:[#allocation4 + $0x498] sm:$0xff]
    %v247 = vld [vmem:[#allocation4 + $0x4a0] sm:$0xff]
    %v248 = vld [vmem:[#allocation4 + $0x4a8] sm:$0xff]
    %v249 = vld [vmem:[#allocation4 + $0x4b0] sm:$0xff]
    %v250 = vld [vmem:[#allocation4 + $0x4b8] sm:$0xff]
    %v251 = vld [vmem:[#allocation4 + $0x4c0] sm:$0xff]
    %v252 = vld [vmem:[#allocation4 + $0x4c8] sm:$0xff]
    %v253 = vld [vmem:[#allocation4 + $0x4d0] sm:$0xff]
    %v254 = vld [vmem:[#allocation4 + $0x4d8] sm:$0xff]
    %v255 = vld [vmem:[#allocation4 + $0x4e0] sm:$0xff]
    %v256 = vld [vmem:[#allocation4 + $0x4e8] sm:$0xff]
    %v257 = vld [vmem:[#allocation4 + $0x4f0] sm:$0xff]
    %v258 = vld [vmem:[#allocation4 + $0x4f8] sm:$0xff]
    %v259 = vld [vmem:[#allocation4 + $0x500] sm:$0xff]
    %v260 = vld [vmem:[#allocation4 + $0x508] sm:$0xff]
    %v261 = vld [vmem:[#allocation4 + $0x510] sm:$0xff]
    %v262 = vld [vmem:[#allocation4 + $0x518] sm:$0xff]
    %v263 = vld [vmem:[#allocation4 + $0x520] sm:$0xff]
    %v264 = vld [vmem:[#allocation4 + $0x528] sm:$0xff]
    %v265 = vld [vmem:[#allocation4 + $0x530] sm:$0xff]
    %v266 = vld [vmem:[#allocation4 + $0x538] sm:$0xff]
    %v267 = vld [vmem:[#allocation4 + $0x540] sm:$0xff]
    %v268 = vld [vmem:[#allocation4 + $0x548] sm:$0xff]
    %v269 = vld [vmem:[#allocation4 + $0x550] sm:$0xff]
    %v270 = vld [vmem:[#allocation4 + $0x558] sm:$0xff]
    %v271 = vld [vmem:[#allocation4 + $0x560] sm:$0xff]
    %v272 = vld [vmem:[#allocation4 + $0x568] sm:$0xff]
    %v273 = vld [vmem:[#allocation4 + $0x570] sm:$0xff]
    %v274 = vld [vmem:[#allocation4 + $0x578] sm:$0xff]
    %v275 = vld [vmem:[#allocation4 + $0x580] sm:$0xff]
    %v276 = vld [vmem:[#allocation4 + $0x588] sm:$0xff]
    %v277 = vld [vmem:[#allocation4 + $0x590] sm:$0xff]
    %v278 = vld [vmem:[#allocation4 + $0x598] sm:$0xff]
    %v279 = vld [vmem:[#allocation4 + $0x5a0] sm:$0xff]
    %v280 = vld [vmem:[#allocation4 + $0x5a8] sm:$0xff]
    %v281 = vld [vmem:[#allocation4 + $0x5b0] sm:$0xff]
    %v282 = vld [vmem:[#allocation4 + $0x5b8] sm:$0xff]
    %v283 = vld [vmem:[#allocation4 + $0x5c0] sm:$0xff]
    %v284 = vld [vmem:[#allocation4 + $0x5c8] sm:$0xff]
    %v285 = vld [vmem:[#allocation4 + $0x5d0] sm:$0xff]
    %v286 = vld [vmem:[#allocation4 + $0x5d8] sm:$0xff]
    %v287 = vld [vmem:[#allocation4 + $0x5e0] sm:$0xff]
    %v288 = vld [vmem:[#allocation4 + $0x5e8] sm:$0xff]
    %v289 = vld [vmem:[#allocation4 + $0x5f0] sm:$0xff]
    %v290 = vld [vmem:[#allocation4 + $0x5f8] sm:$0xff]
    %v291 = vld [vmem:[#allocation4 + $0x600] sm:$0xff]
    %v292 = vld [vmem:[#allocation4 + $0x608] sm:$0xff]
    %v293 = vld [vmem:[#allocation4 + $0x610] sm:$0xff]
    %v294 = vld [vmem:[#allocation4 + $0x618] sm:$0xff]
    %v295 = vld [vmem:[#allocation4 + $0x620] sm:$0xff]
    %v296 = vld [vmem:[#allocation4 + $0x628] sm:$0xff]
    %v297 = vld [vmem:[#allocation4 + $0x630] sm:$0xff]
    %v298 = vld [vmem:[#allocation4 + $0x638] sm:$0xff]
    %v299 = vld [vmem:[#allocation4 + $0x640] sm:$0xff]
    %v300 = vld [vmem:[#allocation4 + $0x648] sm:$0xff]
    %v301 = vld [vmem:[#allocation4 + $0x650] sm:$0xff]
    %v302 = vld [vmem:[#allocation4 + $0x658] sm:$0xff]
    %v303 = vld [vmem:[#allocation4 + $0x660] sm:$0xff]
    %v304 = vld [vmem:[#allocation4 + $0x668] sm:$0xff]
    %v305 = vld [vmem:[#allocation4 + $0x670] sm:$0xff]
    %v306 = vld [vmem:[#allocation4 + $0x678] sm:$0xff]
    %v307 = vld [vmem:[#allocation4 + $0x680] sm:$0xff]
    %v308 = vld [vmem:[#allocation4 + $0x688] sm:$0xff]
    %v309 = vld [vmem:[#allocation4 + $0x690] sm:$0xff]
    %v310 = vld [vmem:[#allocation4 + $0x698] sm:$0xff]
    %v311 = vld [vmem:[#allocation4 + $0x6a0] sm:$0xff]
    %v312 = vld [vmem:[#allocation4 + $0x6a8] sm:$0xff]
    %v313 = vld [vmem:[#allocation4 + $0x6b0] sm:$0xff]
    %v314 = vld [vmem:[#allocation4 + $0x6b8] sm:$0xff]
    %v315 = vld [vmem:[#allocation4 + $0x6c0] sm:$0xff]
    %v316 = vld [vmem:[#allocation4 + $0x6c8] sm:$0xff]
    %v317 = vld [vmem:[#allocation4 + $0x6d0] sm:$0xff]
    %v318 = vld [vmem:[#allocation4 + $0x6d8] sm:$0xff]
    %v319 = vld [vmem:[#allocation4 + $0x6e0] sm:$0xff]
    %v320 = vld [vmem:[#allocation4 + $0x6e8] sm:$0xff]
    %v321 = vld [vmem:[#allocation4 + $0x6f0] sm:$0xff]
    %v322 = vld [vmem:[#allocation4 + $0x6f8] sm:$0xff]
    %v323 = vld [vmem:[#allocation4 + $0x700] sm:$0xff]
    %v324 = vld [vmem:[#allocation4 + $0x708] sm:$0xff]
    %v325 = vld [vmem:[#allocation4 + $0x710] sm:$0xff]
    %v326 = vld [vmem:[#allocation4 + $0x718] sm:$0xff]
    %v327 = vld [vmem:[#allocation4 + $0x720] sm:$0xff]
    %v328 = vld [vmem:[#allocation4 + $0x728] sm:$0xff]
    %v329 = vld [vmem:[#allocation4 + $0x730] sm:$0xff]
    %v330 = vld [vmem:[#allocation4 + $0x738] sm:$0xff]
    %v331 = vld [vmem:[#allocation4 + $0x740] sm:$0xff]
    %v332 = vld [vmem:[#allocation4 + $0x748] sm:$0xff]
    %v333 = vld [vmem:[#allocation4 + $0x750] sm:$0xff]
    %v334 = vld [vmem:[#allocation4 + $0x758] sm:$0xff]
    %v335 = vld [vmem:[#allocation4 + $0x760] sm:$0xff]
    %v336 = vld [vmem:[#allocation4 + $0x768] sm:$0xff]
    %v337 = vld [vmem:[#allocation4 + $0x770] sm:$0xff]
    %v338 = vld [vmem:[#allocation4 + $0x778] sm:$0xff]
    %v339 = vld [vmem:[#allocation4 + $0x780] sm:$0xff]
    %v340 = vld [vmem:[#allocation4 + $0x788] sm:$0xff]
    %v341 = vld [vmem:[#allocation4 + $0x790] sm:$0xff]
    %v342 = vld [vmem:[#allocation4 + $0x798] sm:$0xff]
    %v343 = vld [vmem:[#allocation4 + $0x7a0] sm:$0xff]
    %v344 = vld [vmem:[#allocation4 + $0x7a8] sm:$0xff]
    %v345 = vld [vmem:[#allocation4 + $0x7b0] sm:$0xff]
    %v346 = vld [vmem:[#allocation4 + $0x7b8] sm:$0xff]
    %v347 = vld [vmem:[#allocation4 + $0x7c0] sm:$0xff]
    %v348 = vld [vmem:[#allocation4 + $0x7c8] sm:$0xff]
    %v349 = vld [vmem:[#allocation4 + $0x7d0] sm:$0xff]
    %v350 = vld [vmem:[#allocation4 + $0x7d8] sm:$0xff]
    %v351 = vld [vmem:[#allocation4 + $0x7e0] sm:$0xff]
    %v352 = vld [vmem:[#allocation4 + $0x7e8] sm:$0xff]
    %v353 = vld [vmem:[#allocation4 + $0x7f0] sm:$0xff]
    %v354 = vld [vmem:[#allocation4 + $0x7f8] sm:$0xff]
    %v355 = vld [vmem:[#allocation4 + $0x800] sm:$0xff]
    %v356 = vld [vmem:[#allocation4 + $0x808] sm:$0xff]
    %v357 = vld [vmem:[#allocation4 + $0x810] sm:$0xff]
    %v358 = vld [vmem:[#allocation4 + $0x818] sm:$0xff]
    %v359 = vld [vmem:[#allocation4 + $0x820] sm:$0xff]
    %v360 = vld [vmem:[#allocation4 + $0x828] sm:$0xff]
    %v361 = vld [vmem:[#allocation4 + $0x830] sm:$0xff]
    %v362 = vld [vmem:[#allocation4 + $0x838] sm:$0xff]
    %v363 = vld [vmem:[#allocation4 + $0x840] sm:$0xff]
    %v364 = vld [vmem:[#allocation4 + $0x848] sm:$0xff]
    %v365 = vld [vmem:[#allocation4 + $0x850] sm:$0xff]
    %v366 = vld [vmem:[#allocation4 + $0x858] sm:$0xff]
    %v367 = vld [vmem:[#allocation4 + $0x860] sm:$0xff]
    %v368 = vld [vmem:[#allocation4 + $0x868] sm:$0xff]
    %v369 = vld [vmem:[#allocation4 + $0x870] sm:$0xff]
    %v370 = vld [vmem:[#allocation4 + $0x878] sm:$0xff]
    %v371 = vld [vmem:[#allocation4 + $0x880] sm:$0xff]
    %v372 = vld [vmem:[#allocation4 + $0x888] sm:$0xff]
    %v373 = vld [vmem:[#allocation4 + $0x890] sm:$0xff]
    %v374 = vld [vmem:[#allocation4 + $0x898] sm:$0xff]
    %v375 = vld [vmem:[#allocation4 + $0x8a0] sm:$0xff]
    %v376 = vld [vmem:[#allocation4 + $0x8a8] sm:$0xff]
    %v377 = vld [vmem:[#allocation4 + $0x8b0] sm:$0xff]
    %v378 = vld [vmem:[#allocation4 + $0x8b8] sm:$0xff]
    %v379 = vld [vmem:[#allocation4 + $0x8c0] sm:$0xff]
    %v380 = vld [vmem:[#allocation4 + $0x8c8] sm:$0xff]
    %v381 = vld [vmem:[#allocation4 + $0x8d0] sm:$0xff]
    %v382 = vld [vmem:[#allocation4 + $0x8d8] sm:$0xff]
    %v383 = vld [vmem:[#allocation4 + $0x8e0] sm:$0xff]
    %v384 = vld [vmem:[#allocation4 + $0x8e8] sm:$0xff]
    %v385 = vld [vmem:[#allocation4 + $0x8f0] sm:$0xff]
    %v386 = vld [vmem:[#allocation4 + $0x8f8] sm:$0xff]
    %v387 = vld [vmem:[#allocation4 + $0x900] sm:$0xff]
    %v388 = vld [vmem:[#allocation4 + $0x908] sm:$0xff]
    %v389 = vld [vmem:[#allocation4 + $0x910] sm:$0xff]
    %v390 = vld [vmem:[#allocation4 + $0x918] sm:$0xff]
    %v391 = vld [vmem:[#allocation4 + $0x920] sm:$0xff]
    %v392 = vld [vmem:[#allocation4 + $0x928] sm:$0xff]
    %v393 = vld [vmem:[#allocation4 + $0x930] sm:$0xff]
    %v394 = vld [vmem:[#allocation4 + $0x938] sm:$0xff]
    %v395 = vld [vmem:[#allocation4 + $0x940] sm:$0xff]
    %v396 = vld [vmem:[#allocation4 + $0x948] sm:$0xff]
    %v397 = vld [vmem:[#allocation4 + $0x950] sm:$0xff]
    %v398 = vld [vmem:[#allocation4 + $0x958] sm:$0xff]
    %v399 = vld [vmem:[#allocation4 + $0x960] sm:$0xff]
    %v400 = vld [vmem:[#allocation4 + $0x968] sm:$0xff]
    %v401 = vld [vmem:[#allocation4 + $0x970] sm:$0xff]
    %v402 = vld [vmem:[#allocation4 + $0x978] sm:$0xff]
    %v403 = vld [vmem:[#allocation4 + $0x980] sm:$0xff]
    %v404 = vld [vmem:[#allocation4 + $0x988] sm:$0xff]
    %v405 = vld [vmem:[#allocation4 + $0x990] sm:$0xff]
    %v406 = vld [vmem:[#allocation4 + $0x998] sm:$0xff]
    %v407 = vld [vmem:[#allocation4 + $0x9a0] sm:$0xff]
    %v408 = vld [vmem:[#allocation4 + $0x9a8] sm:$0xff]
    %v409 = vld [vmem:[#allocation4 + $0x9b0] sm:$0xff]
    %v410 = vld [vmem:[#allocation4 + $0x9b8] sm:$0xff]
    %v411 = vld [vmem:[#allocation4 + $0x9c0] sm:$0xff]
    %v412 = vld [vmem:[#allocation4 + $0x9c8] sm:$0xff]
    %v413 = vld [vmem:[#allocation4 + $0x9d0] sm:$0xff]
    %v414 = vld [vmem:[#allocation4 + $0x9d8] sm:$0xff]
    %v415 = vld [vmem:[#allocation4 + $0x9e0] sm:$0xff]
    %v416 = vld [vmem:[#allocation4 + $0x9e8] sm:$0xff]
    %v417 = vld [vmem:[#allocation4 + $0x9f0] sm:$0xff]
    %v418 = vld [vmem:[#allocation4 + $0x9f8] sm:$0xff]
    %v419 = vld [vmem:[#allocation4 + $0xa00] sm:$0xff]
    %v420 = vld [vmem:[#allocation4 + $0xa08] sm:$0xff]
    %v421 = vld [vmem:[#allocation4 + $0xa10] sm:$0xff]
    %v422 = vld [vmem:[#allocation4 + $0xa18] sm:$0xff]
    %v423 = vld [vmem:[#allocation4 + $0xa20] sm:$0xff]
    %v424 = vld [vmem:[#allocation4 + $0xa28] sm:$0xff]
    %v425 = vld [vmem:[#allocation4 + $0xa30] sm:$0xff]
    %v426 = vld [vmem:[#allocation4 + $0xa38] sm:$0xff]
    %v427 = vld [vmem:[#allocation4 + $0xa40] sm:$0xff]
    %v428 = vld [vmem:[#allocation4 + $0xa48] sm:$0xff]
    %v429 = vld [vmem:[#allocation4 + $0xa50] sm:$0xff]
    %v430 = vld [vmem:[#allocation4 + $0xa58] sm:$0xff]
    %v431 = vld [vmem:[#allocation4 + $0xa60] sm:$0xff]
    %v432 = vld [vmem:[#allocation4 + $0xa68] sm:$0xff]
    %v433 = vld [vmem:[#allocation4 + $0xa70] sm:$0xff]
    %v434 = vld [vmem:[#allocation4 + $0xa78] sm:$0xff]
    %v435 = vld [vmem:[#allocation4 + $0xa80] sm:$0xff]
    %v436 = vld [vmem:[#allocation4 + $0xa88] sm:$0xff]
    %v437 = vld [vmem:[#allocation4 + $0xa90] sm:$0xff]
    %v438 = vld [vmem:[#allocation4 + $0xa98] sm:$0xff]
    %v439 = vld [vmem:[#allocation4 + $0xaa0] sm:$0xff]
    %v440 = vld [vmem:[#allocation4 + $0xaa8] sm:$0xff]
    %v441 = vld [vmem:[#allocation4 + $0xab0] sm:$0xff]
    %v442 = vld [vmem:[#allocation4 + $0xab8] sm:$0xff]
    %v443 = vld [vmem:[#allocation4 + $0xac0] sm:$0xff]
    %v444 = vld [vmem:[#allocation4 + $0xac8] sm:$0xff]
    %v445 = vld [vmem:[#allocation4 + $0xad0] sm:$0xff]
    %v446 = vld [vmem:[#allocation4 + $0xad8] sm:$0xff]
    %v447 = vld [vmem:[#allocation4 + $0xae0] sm:$0xff]
    %v448 = vld [vmem:[#allocation4 + $0xae8] sm:$0xff]
    %v449 = vld [vmem:[#allocation4 + $0xaf0] sm:$0xff]
    %v450 = vld [vmem:[#allocation4 + $0xaf8] sm:$0xff]
    %v451 = vld [vmem:[#allocation4 + $0xb00] sm:$0xff]
    %v452 = vld [vmem:[#allocation4 + $0xb08] sm:$0xff]
    %v453 = vld [vmem:[#allocation4 + $0xb10] sm:$0xff]
    %v454 = vld [vmem:[#allocation4 + $0xb18] sm:$0xff]
    %v455 = vld [vmem:[#allocation4 + $0xb20] sm:$0xff]
    %v456 = vld [vmem:[#allocation4 + $0xb28] sm:$0xff]
    %v457 = vld [vmem:[#allocation4 + $0xb30] sm:$0xff]
    %v458 = vld [vmem:[#allocation4 + $0xb38] sm:$0xff]
    %v459 = vld [vmem:[#allocation4 + $0xb40] sm:$0xff]
    %v460 = vld [vmem:[#allocation4 + $0xb48] sm:$0xff]
    %v461 = vld [vmem:[#allocation4 + $0xb50] sm:$0xff]
    %v462 = vld [vmem:[#allocation4 + $0xb58] sm:$0xff]
    %v463 = vld [vmem:[#allocation4 + $0xb60] sm:$0xff]
    %v464 = vld [vmem:[#allocation4 + $0xb68] sm:$0xff]
    %v465 = vld [vmem:[#allocation4 + $0xb70] sm:$0xff]
    %v466 = vld [vmem:[#allocation4 + $0xb78] sm:$0xff]
    %v467 = vld [vmem:[#allocation4 + $0xb80] sm:$0xff]
    %v468 = vld [vmem:[#allocation4 + $0xb88] sm:$0xff]
    %v469 = vld [vmem:[#allocation4 + $0xb90] sm:$0xff]
    %v470 = vld [vmem:[#allocation4 + $0xb98] sm:$0xff]
    %v471 = vld [vmem:[#allocation4 + $0xba0] sm:$0xff]
    %v472 = vld [vmem:[#allocation4 + $0xba8] sm:$0xff]
    %v473 = vld [vmem:[#allocation4 + $0xbb0] sm:$0xff]
    %v474 = vld [vmem:[#allocation4 + $0xbb8] sm:$0xff]
    %v475 = vld [vmem:[#allocation4 + $0xbc0] sm:$0xff]
    %v476 = vld [vmem:[#allocation4 + $0xbc8] sm:$0xff]
    %v477 = vld [vmem:[#allocation4 + $0xbd0] sm:$0xff]
    %v478 = vld [vmem:[#allocation4 + $0xbd8] sm:$0xff]
    %v479 = vld [vmem:[#allocation4 + $0xbe0] sm:$0xff]
    %v480 = vld [vmem:[#allocation4 + $0xbe8] sm:$0xff]
    %v481 = vld [vmem:[#allocation4 + $0xbf0] sm:$0xff]
    %v482 = vld [vmem:[#allocation4 + $0xbf8] sm:$0xff]
    %v483 = vld [vmem:[#allocation4 + $0xc00] sm:$0xff]
    %v484 = vld [vmem:[#allocation4 + $0xc08] sm:$0xff]
    %v485 = vld [vmem:[#allocation4 + $0xc10] sm:$0xff]
    %v486 = vld [vmem:[#allocation4 + $0xc18] sm:$0xff]
    %v487 = vld [vmem:[#allocation4 + $0xc20] sm:$0xff]
    %v488 = vld [vmem:[#allocation4 + $0xc28] sm:$0xff]
    %v489 = vld [vmem:[#allocation4 + $0xc30] sm:$0xff]
    %v490 = vld [vmem:[#allocation4 + $0xc38] sm:$0xff]
    %v491 = vld [vmem:[#allocation4 + $0xc40] sm:$0xff]
    %v492 = vld [vmem:[#allocation4 + $0xc48] sm:$0xff]
    %v493 = vld [vmem:[#allocation4 + $0xc50] sm:$0xff]
    %v494 = vld [vmem:[#allocation4 + $0xc58] sm:$0xff]
    %v495 = vld [vmem:[#allocation4 + $0xc60] sm:$0xff]
    %v496 = vld [vmem:[#allocation4 + $0xc68] sm:$0xff]
    %v497 = vld [vmem:[#allocation4 + $0xc70] sm:$0xff]
    %v498 = vld [vmem:[#allocation4 + $0xc78] sm:$0xff]
    %v499 = vld [vmem:[#allocation4 + $0xc80] sm:$0xff]
    %v500 = vld [vmem:[#allocation4 + $0xc88] sm:$0xff]
    %v501 = vld [vmem:[#allocation4 + $0xc90] sm:$0xff]
    %v502 = vld [vmem:[#allocation4 + $0xc98] sm:$0xff]
    %v503 = vld [vmem:[#allocation4 + $0xca0] sm:$0xff]
    %v504 = vld [vmem:[#allocation4 + $0xca8] sm:$0xff]
    %v505 = vld [vmem:[#allocation4 + $0xcb0] sm:$0xff]
    %v506 = vld [vmem:[#allocation4 + $0xcb8] sm:$0xff]
    %v507 = vld [vmem:[#allocation4 + $0xcc0] sm:$0xff]
    %v508 = vld [vmem:[#allocation4 + $0xcc8] sm:$0xff]
    %v509 = vld [vmem:[#allocation4 + $0xcd0] sm:$0xff]
    %v510 = vld [vmem:[#allocation4 + $0xcd8] sm:$0xff]
    %v511 = vld [vmem:[#allocation4 + $0xce0] sm:$0xff]
    %v512 = vld [vmem:[#allocation4 + $0xce8] sm:$0xff]
    %v513 = vld [vmem:[#allocation4 + $0xcf0] sm:$0xff]
    %v514 = vld [vmem:[#allocation4 + $0xcf8] sm:$0xff]
    %v515 = vld [vmem:[#allocation4 + $0xd00] sm:$0xff]
    %v516 = vld [vmem:[#allocation4 + $0xd08] sm:$0xff]
    %v517 = vld [vmem:[#allocation4 + $0xd10] sm:$0xff]
    %v518 = vld [vmem:[#allocation4 + $0xd18] sm:$0xff]
    %v519 = vld [vmem:[#allocation4 + $0xd20] sm:$0xff]
    %v520 = vld [vmem:[#allocation4 + $0xd28] sm:$0xff]
    %v521 = vld [vmem:[#allocation4 + $0xd30] sm:$0xff]
    %v522 = vld [vmem:[#allocation4 + $0xd38] sm:$0xff]
    %v523 = vld [vmem:[#allocation4 + $0xd40] sm:$0xff]
    %v524 = vld [vmem:[#allocation4 + $0xd48] sm:$0xff]
    %v525 = vld [vmem:[#allocation4 + $0xd50] sm:$0xff]
    %v526 = vld [vmem:[#allocation4 + $0xd58] sm:$0xff]
    %v527 = vld [vmem:[#allocation4 + $0xd60] sm:$0xff]
    %v528 = vld [vmem:[#allocation4 + $0xd68] sm:$0xff]
    %v529 = vld [vmem:[#allocation4 + $0xd70] sm:$0xff]
    %v530 = vld [vmem:[#allocation4 + $0xd78] sm:$0xff]
    %v531 = vld [vmem:[#allocation4 + $0xd80] sm:$0xff]
    %v532 = vld [vmem:[#allocation4 + $0xd88] sm:$0xff]
    %v533 = vld [vmem:[#allocation4 + $0xd90] sm:$0xff]
    %v534 = vld [vmem:[#allocation4 + $0xd98] sm:$0xff]
    %v535 = vld [vmem:[#allocation4 + $0xda0] sm:$0xff]
    %v536 = vld [vmem:[#allocation4 + $0xda8] sm:$0xff]
    %v537 = vld [vmem:[#allocation4 + $0xdb0] sm:$0xff]
    %v538 = vld [vmem:[#allocation4 + $0xdb8] sm:$0xff]
    %v539 = vld [vmem:[#allocation4 + $0xdc0] sm:$0xff]
    %v540 = vld [vmem:[#allocation4 + $0xdc8] sm:$0xff]
    %v541 = vld [vmem:[#allocation4 + $0xdd0] sm:$0xff]
    %v542 = vld [vmem:[#allocation4 + $0xdd8] sm:$0xff]
    %v543 = vld [vmem:[#allocation4 + $0xde0] sm:$0xff]
    %v544 = vld [vmem:[#allocation4 + $0xde8] sm:$0xff]
    %v545 = vld [vmem:[#allocation4 + $0xdf0] sm:$0xff]
    %v546 = vld [vmem:[#allocation4 + $0xdf8] sm:$0xff]
    %v547 = vld [vmem:[#allocation4 + $0xe00] sm:$0xff]
    %v548 = vld [vmem:[#allocation4 + $0xe08] sm:$0xff]
    %v549 = vld [vmem:[#allocation4 + $0xe10] sm:$0xff]
    %v550 = vld [vmem:[#allocation4 + $0xe18] sm:$0xff]
    %v551 = vld [vmem:[#allocation4 + $0xe20] sm:$0xff]
    %v552 = vld [vmem:[#allocation4 + $0xe28] sm:$0xff]
    %v553 = vld [vmem:[#allocation4 + $0xe30] sm:$0xff]
    %v554 = vld [vmem:[#allocation4 + $0xe38] sm:$0xff]
    %v555 = vld [vmem:[#allocation4 + $0xe40] sm:$0xff]
    %v556 = vld [vmem:[#allocation4 + $0xe48] sm:$0xff]
    %v557 = vld [vmem:[#allocation4 + $0xe50] sm:$0xff]
    %v558 = vld [vmem:[#allocation4 + $0xe58] sm:$0xff]
    %v559 = vld [vmem:[#allocation4 + $0xe60] sm:$0xff]
    %v560 = vld [vmem:[#allocation4 + $0xe68] sm:$0xff]
    %v561 = vld [vmem:[#allocation4 + $0xe70] sm:$0xff]
    %v562 = vld [vmem:[#allocation4 + $0xe78] sm:$0xff]
    %v563 = vld [vmem:[#allocation4 + $0xe80] sm:$0xff]
    %v564 = vld [vmem:[#allocation4 + $0xe88] sm:$0xff]
    %v565 = vld [vmem:[#allocation4 + $0xe90] sm:$0xff]
    %v566 = vld [vmem:[#allocation4 + $0xe98] sm:$0xff]
    %v567 = vld [vmem:[#allocation4 + $0xea0] sm:$0xff]
    %v568 = vld [vmem:[#allocation4 + $0xea8] sm:$0xff]
    %v569 = vld [vmem:[#allocation4 + $0xeb0] sm:$0xff]
    %v570 = vld [vmem:[#allocation4 + $0xeb8] sm:$0xff]
    %v571 = vld [vmem:[#allocation4 + $0xec0] sm:$0xff]
    %v572 = vld [vmem:[#allocation4 + $0xec8] sm:$0xff]
    %v573 = vld [vmem:[#allocation4 + $0xed0] sm:$0xff]
    %v574 = vld [vmem:[#allocation4 + $0xed8] sm:$0xff]
    %v575 = vld [vmem:[#allocation4 + $0xee0] sm:$0xff]
    %v576 = vld [vmem:[#allocation4 + $0xee8] sm:$0xff]
    %v577 = vld [vmem:[#allocation4 + $0xef0] sm:$0xff]
    %v578 = vld [vmem:[#allocation4 + $0xef8] sm:$0xff]
    %v579 = vld [vmem:[#allocation4 + $0xf00] sm:$0xff]
    %v580 = vld [vmem:[#allocation4 + $0xf08] sm:$0xff]
    %v581 = vld [vmem:[#allocation4 + $0xf10] sm:$0xff]
    %v582 = vld [vmem:[#allocation4 + $0xf18] sm:$0xff]
    %v583 = vld [vmem:[#allocation4 + $0xf20] sm:$0xff]
    %v584 = vld [vmem:[#allocation4 + $0xf28] sm:$0xff]
    %v585 = vld [vmem:[#allocation4 + $0xf30] sm:$0xff]
    %v586 = vld [vmem:[#allocation4 + $0xf38] sm:$0xff]
    %v587 = vld [vmem:[#allocation4 + $0xf40] sm:$0xff]
    %v588 = vld [vmem:[#allocation4 + $0xf48] sm:$0xff]
    %v589 = vld [vmem:[#allocation4 + $0xf50] sm:$0xff]
    %v590 = vld [vmem:[#allocation4 + $0xf58] sm:$0xff]
    %v591 = vld [vmem:[#allocation4 + $0xf60] sm:$0xff]
    %v592 = vld [vmem:[#allocation4 + $0xf68] sm:$0xff]
    %v593 = vld [vmem:[#allocation4 + $0xf70] sm:$0xff]
    %v594 = vld [vmem:[#allocation4 + $0xf78] sm:$0xff]
    %v595 = vld [vmem:[#allocation4 + $0xf80] sm:$0xff]
    %v596 = vld [vmem:[#allocation4 + $0xf88] sm:$0xff]
    %v597 = vld [vmem:[#allocation4 + $0xf90] sm:$0xff]
    %v598 = vld [vmem:[#allocation4 + $0xf98] sm:$0xff]
    %v599 = vld [vmem:[#allocation4 + $0xfa0] sm:$0xff]
    %v600 = vld [vmem:[#allocation4 + $0xfa8] sm:$0xff]
    %v601 = vld [vmem:[#allocation4 + $0xfb0] sm:$0xff]
    %v602 = vld [vmem:[#allocation4 + $0xfb8] sm:$0xff]
    %v603 = vld [vmem:[#allocation4 + $0xfc0] sm:$0xff]
    %v604 = vld [vmem:[#allocation4 + $0xfc8] sm:$0xff]
    %v605 = vld [vmem:[#allocation4 + $0xfd0] sm:$0xff]
    %v606 = vld [vmem:[#allocation4 + $0xfd8] sm:$0xff]
    %v607 = vld [vmem:[#allocation4 + $0xfe0] sm:$0xff]
    %v608 = vld [vmem:[#allocation4 + $0xfe8] sm:$0xff]
    %v609 = vld [vmem:[#allocation4 + $0xff0] sm:$0xff]
    %v610 = vld [vmem:[#allocation4 + $0xff8] sm:$0xff]
    %v611 = vld [vmem:[#allocation4 + $0x1000] sm:$0xff]
    %v612 = vld [vmem:[#allocation4 + $0x1008] sm:$0xff]
    %v613 = vld [vmem:[#allocation4 + $0x1010] sm:$0xff]
    %v614 = vld [vmem:[#allocation4 + $0x1018] sm:$0xff]
    %v615 = vld [vmem:[#allocation4 + $0x1020] sm:$0xff]
    %v616 = vld [vmem:[#allocation4 + $0x1028] sm:$0xff]
    %v617 = vld [vmem:[#allocation4 + $0x1030] sm:$0xff]
    %v618 = vld [vmem:[#allocation4 + $0x1038] sm:$0xff]
    %v619 = vld [vmem:[#allocation4 + $0x1040] sm:$0xff]
    %v620 = vld [vmem:[#allocation4 + $0x1048] sm:$0xff]
    %v621 = vld [vmem:[#allocation4 + $0x1050] sm:$0xff]
    %v622 = vld [vmem:[#allocation4 + $0x1058] sm:$0xff]
    %v623 = vld [vmem:[#allocation4 + $0x1060] sm:$0xff]
    %v624 = vld [vmem:[#allocation4 + $0x1068] sm:$0xff]
    %v625 = vld [vmem:[#allocation4 + $0x1070] sm:$0xff]
    %v626 = vld [vmem:[#allocation4 + $0x1078] sm:$0xff]
    %v627 = vld [vmem:[#allocation4 + $0x1080] sm:$0xff]
    %v628 = vld [vmem:[#allocation4 + $0x1088] sm:$0xff]
    %v629 = vld [vmem:[#allocation4 + $0x1090] sm:$0xff]
    %v630 = vld [vmem:[#allocation4 + $0x1098] sm:$0xff]
    %v631 = vld [vmem:[#allocation4 + $0x10a0] sm:$0xff]
    %v632 = vld [vmem:[#allocation4 + $0x10a8] sm:$0xff]
    %v633 = vld [vmem:[#allocation4 + $0x10b0] sm:$0xff]
    %v634 = vld [vmem:[#allocation4 + $0x10b8] sm:$0xff]
    %v635 = vld [vmem:[#allocation4 + $0x10c0] sm:$0xff]
    %v636 = vld [vmem:[#allocation4 + $0x10c8] sm:$0xff]
    %v637 = vld [vmem:[#allocation4 + $0x10d0] sm:$0xff]
    %v638 = vld [vmem:[#allocation4 + $0x10d8] sm:$0xff]
    %v639 = vld [vmem:[#allocation4 + $0x10e0] sm:$0xff]
    %v640 = vld [vmem:[#allocation4 + $0x10e8] sm:$0xff]
    %v641 = vld [vmem:[#allocation4 + $0x10f0] sm:$0xff]
    %v642 = vld [vmem:[#allocation4 + $0x10f8] sm:$0xff]
    %v643 = vld [vmem:[#allocation4 + $0x1100] sm:$0xff]
    %v644 = vld [vmem:[#allocation4 + $0x1108] sm:$0xff]
    %v645 = vld [vmem:[#allocation4 + $0x1110] sm:$0xff]
    %v646 = vld [vmem:[#allocation4 + $0x1118] sm:$0xff]
    %v647 = vld [vmem:[#allocation4 + $0x1120] sm:$0xff]
    %v648 = vld [vmem:[#allocation4 + $0x1128] sm:$0xff]
    %v649 = vld [vmem:[#allocation4 + $0x1130] sm:$0xff]
    %v650 = vld [vmem:[#allocation4 + $0x1138] sm:$0xff]
    %v651 = vld [vmem:[#allocation4 + $0x1140] sm:$0xff]
    %v652 = vld [vmem:[#allocation4 + $0x1148] sm:$0xff]
    %v653 = vld [vmem:[#allocation4 + $0x1150] sm:$0xff]
    %v654 = vld [vmem:[#allocation4 + $0x1158] sm:$0xff]
    %v655 = vld [vmem:[#allocation4 + $0x1160] sm:$0xff]
    %v656 = vld [vmem:[#allocation4 + $0x1168] sm:$0xff]
    %v657 = vld [vmem:[#allocation4 + $0x1170] sm:$0xff]
    %v658 = vld [vmem:[#allocation4 + $0x1178] sm:$0xff]
    %v659 = vld [vmem:[#allocation4 + $0x1180] sm:$0xff]
    %v660 = vld [vmem:[#allocation4 + $0x1188] sm:$0xff]
    %v661 = vld [vmem:[#allocation4 + $0x1190] sm:$0xff]
    %v662 = vld [vmem:[#allocation4 + $0x1198] sm:$0xff]
    %v663 = vld [vmem:[#allocation4 + $0x11a0] sm:$0xff]
    %v664 = vld [vmem:[#allocation4 + $0x11a8] sm:$0xff]
    %v665 = vld [vmem:[#allocation4 + $0x11b0] sm:$0xff]
    %v666 = vld [vmem:[#allocation4 + $0x11b8] sm:$0xff]
    %v667 = vld [vmem:[#allocation4 + $0x11c0] sm:$0xff]
    %v668 = vld [vmem:[#allocation4 + $0x11c8] sm:$0xff]
    %v669 = vld [vmem:[#allocation4 + $0x11d0] sm:$0xff]
    %v670 = vld [vmem:[#allocation4 + $0x11d8] sm:$0xff]
    %v671 = vld [vmem:[#allocation4 + $0x11e0] sm:$0xff]
    %v672 = vld [vmem:[#allocation4 + $0x11e8] sm:$0xff]
    %v673 = vld [vmem:[#allocation4 + $0x11f0] sm:$0xff]
    %v674 = vld [vmem:[#allocation4 + $0x11f8] sm:$0xff]
    %v675 = vld [vmem:[#allocation4 + $0x1200] sm:$0xff]
    %v676 = vld [vmem:[#allocation4 + $0x1208] sm:$0xff]
    %v677 = vld [vmem:[#allocation4 + $0x1210] sm:$0xff]
    %v678 = vld [vmem:[#allocation4 + $0x1218] sm:$0xff]
    %v679 = vld [vmem:[#allocation4 + $0x1220] sm:$0xff]
    %v680 = vld [vmem:[#allocation4 + $0x1228] sm:$0xff]
    %v681 = vld [vmem:[#allocation4 + $0x1230] sm:$0xff]
    %v682 = vld [vmem:[#allocation4 + $0x1238] sm:$0xff]
    %v683 = vld [vmem:[#allocation4 + $0x1240] sm:$0xff]
    %v684 = vld [vmem:[#allocation4 + $0x1248] sm:$0xff]
    %v685 = vld [vmem:[#allocation4 + $0x1250] sm:$0xff]
    %v686 = vld [vmem:[#allocation4 + $0x1258] sm:$0xff]
    %v687 = vld [vmem:[#allocation4 + $0x1260] sm:$0xff]
    %v688 = vld [vmem:[#allocation4 + $0x1268] sm:$0xff]
    %v689 = vld [vmem:[#allocation4 + $0x1270] sm:$0xff]
    %v690 = vld [vmem:[#allocation4 + $0x1278] sm:$0xff]
    %v691 = vld [vmem:[#allocation4 + $0x1280] sm:$0xff]
    %v692 = vld [vmem:[#allocation4 + $0x1288] sm:$0xff]
    %v693 = vld [vmem:[#allocation4 + $0x1290] sm:$0xff]
    %v694 = vld [vmem:[#allocation4 + $0x1298] sm:$0xff]
    %v695 = vld [vmem:[#allocation4 + $0x12a0] sm:$0xff]
    %v696 = vld [vmem:[#allocation4 + $0x12a8] sm:$0xff]
    %v697 = vld [vmem:[#allocation4 + $0x12b0] sm:$0xff]
    %v698 = vld [vmem:[#allocation4 + $0x12b8] sm:$0xff]
    %v699 = vld [vmem:[#allocation4 + $0x12c0] sm:$0xff]
    %v700 = vld [vmem:[#allocation4 + $0x12c8] sm:$0xff]
    %v701 = vld [vmem:[#allocation4 + $0x12d0] sm:$0xff]
    %v702 = vld [vmem:[#allocation4 + $0x12d8] sm:$0xff]
    %v703 = vld [vmem:[#allocation4 + $0x12e0] sm:$0xff]
    %v704 = vld [vmem:[#allocation4 + $0x12e8] sm:$0xff]
    %v705 = vld [vmem:[#allocation4 + $0x12f0] sm:$0xff]
    %v706 = vld [vmem:[#allocation4 + $0x12f8] sm:$0xff]
    %v707 = vld [vmem:[#allocation4 + $0x1300] sm:$0xff]
    %v708 = vld [vmem:[#allocation4 + $0x1308] sm:$0xff]
    %v709 = vld [vmem:[#allocation4 + $0x1310] sm:$0xff]
    %v710 = vld [vmem:[#allocation4 + $0x1318] sm:$0xff]
    %v711 = vld [vmem:[#allocation4 + $0x1320] sm:$0xff]
    %v712 = vld [vmem:[#allocation4 + $0x1328] sm:$0xff]
    %v713 = vld [vmem:[#allocation4 + $0x1330] sm:$0xff]
    %v714 = vld [vmem:[#allocation4 + $0x1338] sm:$0xff]
    %v715 = vld [vmem:[#allocation4 + $0x1340] sm:$0xff]
    %v716 = vld [vmem:[#allocation4 + $0x1348] sm:$0xff]
    %v717 = vld [vmem:[#allocation4 + $0x1350] sm:$0xff]
    %v718 = vld [vmem:[#allocation4 + $0x1358] sm:$0xff]
    %v719 = vld [vmem:[#allocation4 + $0x1360] sm:$0xff]
    %v720 = vld [vmem:[#allocation4 + $0x1368] sm:$0xff]
    %v721 = vld [vmem:[#allocation4 + $0x1370] sm:$0xff]
    %v722 = vld [vmem:[#allocation4 + $0x1378] sm:$0xff]
    %v723 = vld [vmem:[#allocation4 + $0x1380] sm:$0xff]
    %v724 = vld [vmem:[#allocation4 + $0x1388] sm:$0xff]
    %v725 = vld [vmem:[#allocation4 + $0x1390] sm:$0xff]
    %v726 = vld [vmem:[#allocation4 + $0x1398] sm:$0xff]
    %v727 = vld [vmem:[#allocation4 + $0x13a0] sm:$0xff]
    %v728 = vld [vmem:[#allocation4 + $0x13a8] sm:$0xff]
    %v729 = vld [vmem:[#allocation4 + $0x13b0] sm:$0xff]
    %v730 = vld [vmem:[#allocation4 + $0x13b8] sm:$0xff]
    %v731 = vld [vmem:[#allocation4 + $0x13c0] sm:$0xff]
    %v732 = vld [vmem:[#allocation4 + $0x13c8] sm:$0xff]
    %v733 = vld [vmem:[#allocation4 + $0x13d0] sm:$0xff]
    %v734 = vld [vmem:[#allocation4 + $0x13d8] sm:$0xff]
    %v735 = vld [vmem:[#allocation4 + $0x13e0] sm:$0xff]
    %v736 = vld [vmem:[#allocation4 + $0x13e8] sm:$0xff]
    %v737 = vld [vmem:[#allocation4 + $0x13f0] sm:$0xff]
    %v738 = vld [vmem:[#allocation4 + $0x13f8] sm:$0xff]
    %v739 = vld [vmem:[#allocation4 + $0x1400] sm:$0xff]
    %v740 = vld [vmem:[#allocation4 + $0x1408] sm:$0xff]
    %v741 = vld [vmem:[#allocation4 + $0x1410] sm:$0xff]
    %v742 = vld [vmem:[#allocation4 + $0x1418] sm:$0xff]
    %v743 = vld [vmem:[#allocation4 + $0x1420] sm:$0xff]
    %v744 = vld [vmem:[#allocation4 + $0x1428] sm:$0xff]
    %v745 = vld [vmem:[#allocation4 + $0x1430] sm:$0xff]
    %v746 = vld [vmem:[#allocation4 + $0x1438] sm:$0xff]
    %v747 = vld [vmem:[#allocation4 + $0x1440] sm:$0xff]
    %v748 = vld [vmem:[#allocation4 + $0x1448] sm:$0xff]
    %v749 = vld [vmem:[#allocation4 + $0x1450] sm:$0xff]
    %v750 = vld [vmem:[#allocation4 + $0x1458] sm:$0xff]
    %v751 = vld [vmem:[#allocation4 + $0x1460] sm:$0xff]
    %v752 = vld [vmem:[#allocation4 + $0x1468] sm:$0xff]
    %v753 = vld [vmem:[#allocation4 + $0x1470] sm:$0xff]
    %v754 = vld [vmem:[#allocation4 + $0x1478] sm:$0xff]
    %v755 = vld [vmem:[#allocation4 + $0x1480] sm:$0xff]
    %v756 = vld [vmem:[#allocation4 + $0x1488] sm:$0xff]
    %v757 = vld [vmem:[#allocation4 + $0x1490] sm:$0xff]
    %v758 = vld [vmem:[#allocation4 + $0x1498] sm:$0xff]
    %v759 = vld [vmem:[#allocation4 + $0x14a0] sm:$0xff]
    %v760 = vld [vmem:[#allocation4 + $0x14a8] sm:$0xff]
    %v761 = vld [vmem:[#allocation4 + $0x14b0] sm:$0xff]
    %v762 = vld [vmem:[#allocation4 + $0x14b8] sm:$0xff]
    %v763 = vld [vmem:[#allocation4 + $0x14c0] sm:$0xff]
    %v764 = vld [vmem:[#allocation4 + $0x14c8] sm:$0xff]
    %v765 = vld [vmem:[#allocation4 + $0x14d0] sm:$0xff]
    %v766 = vld [vmem:[#allocation4 + $0x14d8] sm:$0xff]
    %v767 = vld [vmem:[#allocation4 + $0x14e0] sm:$0xff]
    %v768 = vld [vmem:[#allocation4 + $0x14e8] sm:$0xff]
    %v769 = vld [vmem:[#allocation4 + $0x14f0] sm:$0xff]
    %v770 = vld [vmem:[#allocation4 + $0x14f8] sm:$0xff]
    %v771 = vld [vmem:[#allocation4 + $0x1500] sm:$0xff]
    %v772 = vld [vmem:[#allocation4 + $0x1508] sm:$0xff]
    %v773 = vld [vmem:[#allocation4 + $0x1510] sm:$0xff]
    %v774 = vld [vmem:[#allocation4 + $0x1518] sm:$0xff]
    %v775 = vld [vmem:[#allocation4 + $0x1520] sm:$0xff]
    %v776 = vld [vmem:[#allocation4 + $0x1528] sm:$0xff]
    %v777 = vld [vmem:[#allocation4 + $0x1530] sm:$0xff]
    %v778 = vld [vmem:[#allocation4 + $0x1538] sm:$0xff]
    %v779 = vld [vmem:[#allocation4 + $0x1540] sm:$0xff]
    %v780 = vld [vmem:[#allocation4 + $0x1548] sm:$0xff]
    %v781 = vld [vmem:[#allocation4 + $0x1550] sm:$0xff]
    %v782 = vld [vmem:[#allocation4 + $0x1558] sm:$0xff]
    %v783 = vld [vmem:[#allocation4 + $0x1560] sm:$0xff]
    %v784 = vld [vmem:[#allocation4 + $0x1568] sm:$0xff]
    %v785 = vld [vmem:[#allocation4 + $0x1570] sm:$0xff]
    %v786 = vld [vmem:[#allocation4 + $0x1578] sm:$0xff]
    %v787 = vld [vmem:[#allocation4 + $0x1580] sm:$0xff]
    %v788 = vld [vmem:[#allocation4 + $0x1588] sm:$0xff]
    %v789 = vld [vmem:[#allocation4 + $0x1590] sm:$0xff]
    %v790 = vld [vmem:[#allocation4 + $0x1598] sm:$0xff]
    %v791 = vld [vmem:[#allocation4 + $0x15a0] sm:$0xff]
    %v792 = vld [vmem:[#allocation4 + $0x15a8] sm:$0xff]
    %v793 = vld [vmem:[#allocation4 + $0x15b0] sm:$0xff]
    %v794 = vld [vmem:[#allocation4 + $0x15b8] sm:$0xff]
    %v795 = vld [vmem:[#allocation4 + $0x15c0] sm:$0xff]
    %v796 = vld [vmem:[#allocation4 + $0x15c8] sm:$0xff]
    %v797 = vld [vmem:[#allocation4 + $0x15d0] sm:$0xff]
    %v798 = vld [vmem:[#allocation4 + $0x15d8] sm:$0xff]
    %v799 = vld [vmem:[#allocation4 + $0x15e0] sm:$0xff]
    %v800 = vld [vmem:[#allocation4 + $0x15e8] sm:$0xff]
    %v801 = vld [vmem:[#allocation4 + $0x15f0] sm:$0xff]
    %v802 = vld [vmem:[#allocation4 + $0x15f8] sm:$0xff]
    %v803 = vld [vmem:[#allocation4 + $0x1600] sm:$0xff]
    %v804 = vld [vmem:[#allocation4 + $0x1608] sm:$0xff]
    %v805 = vld [vmem:[#allocation4 + $0x1610] sm:$0xff]
    %v806 = vld [vmem:[#allocation4 + $0x1618] sm:$0xff]
    %v807 = vld [vmem:[#allocation4 + $0x1620] sm:$0xff]
    %v808 = vld [vmem:[#allocation4 + $0x1628] sm:$0xff]
    %v809 = vld [vmem:[#allocation4 + $0x1630] sm:$0xff]
    %v810 = vld [vmem:[#allocation4 + $0x1638] sm:$0xff]
    %v811 = vld [vmem:[#allocation4 + $0x1640] sm:$0xff]
    %v812 = vld [vmem:[#allocation4 + $0x1648] sm:$0xff]
    %v813 = vld [vmem:[#allocation4 + $0x1650] sm:$0xff]
    %v814 = vld [vmem:[#allocation4 + $0x1658] sm:$0xff]
    %v815 = vld [vmem:[#allocation4 + $0x1660] sm:$0xff]
    %v816 = vld [vmem:[#allocation4 + $0x1668] sm:$0xff]
    %v817 = vld [vmem:[#allocation4 + $0x1670] sm:$0xff]
    %v818 = vld [vmem:[#allocation4 + $0x1678] sm:$0xff]
    %v819 = vld [vmem:[#allocation4 + $0x1680] sm:$0xff]
    %v820 = vld [vmem:[#allocation4 + $0x1688] sm:$0xff]
    %v821 = vld [vmem:[#allocation4 + $0x1690] sm:$0xff]
    %v822 = vld [vmem:[#allocation4 + $0x1698] sm:$0xff]
    %v823 = vld [vmem:[#allocation4 + $0x16a0] sm:$0xff]
    %v824 = vld [vmem:[#allocation4 + $0x16a8] sm:$0xff]
    %v825 = vld [vmem:[#allocation4 + $0x16b0] sm:$0xff]
    %v826 = vld [vmem:[#allocation4 + $0x16b8] sm:$0xff]
    %v827 = vld [vmem:[#allocation4 + $0x16c0] sm:$0xff]
    %v828 = vld [vmem:[#allocation4 + $0x16c8] sm:$0xff]
    %v829 = vld [vmem:[#allocation4 + $0x16d0] sm:$0xff]
    %v830 = vld [vmem:[#allocation4 + $0x16d8] sm:$0xff]
    %v831 = vld [vmem:[#allocation4 + $0x16e0] sm:$0xff]
    %v832 = vld [vmem:[#allocation4 + $0x16e8] sm:$0xff]
    %v833 = vld [vmem:[#allocation4 + $0x16f0] sm:$0xff]
    %v834 = vld [vmem:[#allocation4 + $0x16f8] sm:$0xff]
    %v835 = vld [vmem:[#allocation4 + $0x1700] sm:$0xff]
    %v836 = vld [vmem:[#allocation4 + $0x1708] sm:$0xff]
    %v837 = vld [vmem:[#allocation4 + $0x1710] sm:$0xff]
    %v838 = vld [vmem:[#allocation4 + $0x1718] sm:$0xff]
    %v839 = vld [vmem:[#allocation4 + $0x1720] sm:$0xff]
    %v840 = vld [vmem:[#allocation4 + $0x1728] sm:$0xff]
    %v841 = vld [vmem:[#allocation4 + $0x1730] sm:$0xff]
    %v842 = vld [vmem:[#allocation4 + $0x1738] sm:$0xff]
    %v843 = vld [vmem:[#allocation4 + $0x1740] sm:$0xff]
    %v844 = vld [vmem:[#allocation4 + $0x1748] sm:$0xff]
    %v845 = vld [vmem:[#allocation4 + $0x1750] sm:$0xff]
    %v846 = vld [vmem:[#allocation4 + $0x1758] sm:$0xff]
    %v847 = vld [vmem:[#allocation4 + $0x1760] sm:$0xff]
    %v848 = vld [vmem:[#allocation4 + $0x1768] sm:$0xff]
    %v849 = vld [vmem:[#allocation4 + $0x1770] sm:$0xff]
    %v850 = vld [vmem:[#allocation4 + $0x1778] sm:$0xff]
    %v851 = vld [vmem:[#allocation4 + $0x1780] sm:$0xff]
    %v852 = vld [vmem:[#allocation4 + $0x1788] sm:$0xff]
    %v853 = vld [vmem:[#allocation4 + $0x1790] sm:$0xff]
    %v854 = vld [vmem:[#allocation4 + $0x1798] sm:$0xff]
    %v855 = vld [vmem:[#allocation4 + $0x17a0] sm:$0xff]
    %v856 = vld [vmem:[#allocation4 + $0x17a8] sm:$0xff]
    %v857 = vld [vmem:[#allocation4 + $0x17b0] sm:$0xff]
    %v858 = vld [vmem:[#allocation4 + $0x17b8] sm:$0xff]
    %v859 = vld [vmem:[#allocation4 + $0x17c0] sm:$0xff]
    %v860 = vld [vmem:[#allocation4 + $0x17c8] sm:$0xff]
    %v861 = vld [vmem:[#allocation4 + $0x17d0] sm:$0xff]
    %v862 = vld [vmem:[#allocation4 + $0x17d8] sm:$0xff]
    %v863 = vld [vmem:[#allocation4 + $0x17e0] sm:$0xff]
    %v864 = vld [vmem:[#allocation4 + $0x17e8] sm:$0xff]
    %v865 = vld [vmem:[#allocation4 + $0x17f0] sm:$0xff]
    %v866 = vld [vmem:[#allocation4 + $0x17f8] sm:$0xff]
    %v867 = vld [vmem:[#allocation4 + $0x1800] sm:$0xff]
    %v868 = vld [vmem:[#allocation4 + $0x1808] sm:$0xff]
    %v869 = vld [vmem:[#allocation4 + $0x1810] sm:$0xff]
    %v870 = vld [vmem:[#allocation4 + $0x1818] sm:$0xff]
    %v871 = vld [vmem:[#allocation4 + $0x1820] sm:$0xff]
    %v872 = vld [vmem:[#allocation4 + $0x1828] sm:$0xff]
    %v873 = vld [vmem:[#allocation4 + $0x1830] sm:$0xff]
    %v874 = vld [vmem:[#allocation4 + $0x1838] sm:$0xff]
    %v875 = vld [vmem:[#allocation4 + $0x1840] sm:$0xff]
    %v876 = vld [vmem:[#allocation4 + $0x1848] sm:$0xff]
    %v877 = vld [vmem:[#allocation4 + $0x1850] sm:$0xff]
    %v878 = vld [vmem:[#allocation4 + $0x1858] sm:$0xff]
    %v879 = vld [vmem:[#allocation4 + $0x1860] sm:$0xff]
    %v880 = vld [vmem:[#allocation4 + $0x1868] sm:$0xff]
    %v881 = vld [vmem:[#allocation4 + $0x1870] sm:$0xff]
    %v882 = vld [vmem:[#allocation4 + $0x1878] sm:$0xff]
    %v883 = vld [vmem:[#allocation4 + $0x1880] sm:$0xff]
    %v884 = vld [vmem:[#allocation4 + $0x1888] sm:$0xff]
    %v885 = vld [vmem:[#allocation4 + $0x1890] sm:$0xff]
    %v886 = vld [vmem:[#allocation4 + $0x1898] sm:$0xff]
    %v887 = vld [vmem:[#allocation4 + $0x18a0] sm:$0xff]
    %v888 = vld [vmem:[#allocation4 + $0x18a8] sm:$0xff]
    %v889 = vld [vmem:[#allocation4 + $0x18b0] sm:$0xff]
    %v890 = vld [vmem:[#allocation4 + $0x18b8] sm:$0xff]
    %v891 = vld [vmem:[#allocation4 + $0x18c0] sm:$0xff]
    %v892 = vld [vmem:[#allocation4 + $0x18c8] sm:$0xff]
    %v893 = vld [vmem:[#allocation4 + $0x18d0] sm:$0xff]
    %v894 = vld [vmem:[#allocation4 + $0x18d8] sm:$0xff]
    %v895 = vld [vmem:[#allocation4 + $0x18e0] sm:$0xff]
    %v896 = vld [vmem:[#allocation4 + $0x18e8] sm:$0xff]
    %v897 = vld [vmem:[#allocation4 + $0x18f0] sm:$0xff]
    %v898 = vld [vmem:[#allocation4 + $0x18f8] sm:$0xff]
    %v899 = vld [vmem:[#allocation4 + $0x1900] sm:$0xff]
    %v900 = vld [vmem:[#allocation4 + $0x1908] sm:$0xff]
    %v901 = vld [vmem:[#allocation4 + $0x1910] sm:$0xff]
    %v902 = vld [vmem:[#allocation4 + $0x1918] sm:$0xff]
    %v903 = vld [vmem:[#allocation4 + $0x1920] sm:$0xff]
    %v904 = vld [vmem:[#allocation4 + $0x1928] sm:$0xff]
    %v905 = vld [vmem:[#allocation4 + $0x1930] sm:$0xff]
    %v906 = vld [vmem:[#allocation4 + $0x1938] sm:$0xff]
    %v907 = vld [vmem:[#allocation4 + $0x1940] sm:$0xff]
    %v908 = vld [vmem:[#allocation4 + $0x1948] sm:$0xff]
    %v909 = vld [vmem:[#allocation4 + $0x1950] sm:$0xff]
    %v910 = vld [vmem:[#allocation4 + $0x1958] sm:$0xff]
    %v911 = vld [vmem:[#allocation4 + $0x1960] sm:$0xff]
    %v912 = vld [vmem:[#allocation4 + $0x1968] sm:$0xff]
    %v913 = vld [vmem:[#allocation4 + $0x1970] sm:$0xff]
    %v914 = vld [vmem:[#allocation4 + $0x1978] sm:$0xff]
    %v915 = vld [vmem:[#allocation4 + $0x1980] sm:$0xff]
    %v916 = vld [vmem:[#allocation4 + $0x1988] sm:$0xff]
    %v917 = vld [vmem:[#allocation4 + $0x1990] sm:$0xff]
    %v918 = vld [vmem:[#allocation4 + $0x1998] sm:$0xff]
    %v919 = vld [vmem:[#allocation4 + $0x19a0] sm:$0xff]
    %v920 = vld [vmem:[#allocation4 + $0x19a8] sm:$0xff]
    %v921 = vld [vmem:[#allocation4 + $0x19b0] sm:$0xff]
    %v922 = vld [vmem:[#allocation4 + $0x19b8] sm:$0xff]
    %v923 = vld [vmem:[#allocation4 + $0x19c0] sm:$0xff]
    %v924 = vld [vmem:[#allocation4 + $0x19c8] sm:$0xff]
    %v925 = vld [vmem:[#allocation4 + $0x19d0] sm:$0xff]
    %v926 = vld [vmem:[#allocation4 + $0x19d8] sm:$0xff]
    %v927 = vld [vmem:[#allocation4 + $0x19e0] sm:$0xff]
    %v928 = vld [vmem:[#allocation4 + $0x19e8] sm:$0xff]
    %v929 = vld [vmem:[#allocation4 + $0x19f0] sm:$0xff]
    %v930 = vld [vmem:[#allocation4 + $0x19f8] sm:$0xff]
    %v931 = vld [vmem:[#allocation4 + $0x1a00] sm:$0xff]
    %v932 = vld [vmem:[#allocation4 + $0x1a08] sm:$0xff]
    %v933 = vld [vmem:[#allocation4 + $0x1a10] sm:$0xff]
    %v934 = vld [vmem:[#allocation4 + $0x1a18] sm:$0xff]
    %v935 = vld [vmem:[#allocation4 + $0x1a20] sm:$0xff]
    %v936 = vld [vmem:[#allocation4 + $0x1a28] sm:$0xff]
    %v937 = vld [vmem:[#allocation4 + $0x1a30] sm:$0xff]
    %v938 = vld [vmem:[#allocation4 + $0x1a38] sm:$0xff]
    %v939 = vld [vmem:[#allocation4 + $0x1a40] sm:$0xff]
    %v940 = vld [vmem:[#allocation4 + $0x1a48] sm:$0xff]
    %v941 = vld [vmem:[#allocation4 + $0x1a50] sm:$0xff]
    %v942 = vld [vmem:[#allocation4 + $0x1a58] sm:$0xff]
    %v943 = vld [vmem:[#allocation4 + $0x1a60] sm:$0xff]
    %v944 = vld [vmem:[#allocation4 + $0x1a68] sm:$0xff]
    %v945 = vld [vmem:[#allocation4 + $0x1a70] sm:$0xff]
    %v946 = vld [vmem:[#allocation4 + $0x1a78] sm:$0xff]
    %v947 = vld [vmem:[#allocation4 + $0x1a80] sm:$0xff]
    %v948 = vld [vmem:[#allocation4 + $0x1a88] sm:$0xff]
    %v949 = vld [vmem:[#allocation4 + $0x1a90] sm:$0xff]
    %v950 = vld [vmem:[#allocation4 + $0x1a98] sm:$0xff]
    %v951 = vld [vmem:[#allocation4 + $0x1aa0] sm:$0xff]
    %v952 = vld [vmem:[#allocation4 + $0x1aa8] sm:$0xff]
    %v953 = vld [vmem:[#allocation4 + $0x1ab0] sm:$0xff]
    %v954 = vld [vmem:[#allocation4 + $0x1ab8] sm:$0xff]
    %v955 = vld [vmem:[#allocation4 + $0x1ac0] sm:$0xff]
    %v956 = vld [vmem:[#allocation4 + $0x1ac8] sm:$0xff]
    %v957 = vld [vmem:[#allocation4 + $0x1ad0] sm:$0xff]
    %v958 = vld [vmem:[#allocation4 + $0x1ad8] sm:$0xff]
    %v959 = vld [vmem:[#allocation4 + $0x1ae0] sm:$0xff]
    %v960 = vld [vmem:[#allocation4 + $0x1ae8] sm:$0xff]
    %v961 = vld [vmem:[#allocation4 + $0x1af0] sm:$0xff]
    %v962 = vld [vmem:[#allocation4 + $0x1af8] sm:$0xff]
    %v963 = vld [vmem:[#allocation4 + $0x1b00] sm:$0xff]
    %v964 = vld [vmem:[#allocation4 + $0x1b08] sm:$0xff]
    %v965 = vld [vmem:[#allocation4 + $0x1b10] sm:$0xff]
    %v966 = vld [vmem:[#allocation4 + $0x1b18] sm:$0xff]
    %v967 = vld [vmem:[#allocation4 + $0x1b20] sm:$0xff]
    %v968 = vld [vmem:[#allocation4 + $0x1b28] sm:$0xff]
    %v969 = vld [vmem:[#allocation4 + $0x1b30] sm:$0xff]
    %v970 = vld [vmem:[#allocation4 + $0x1b38] sm:$0xff]
    %v971 = vld [vmem:[#allocation4 + $0x1b40] sm:$0xff]
    %v972 = vld [vmem:[#allocation4 + $0x1b48] sm:$0xff]
    %v973 = vld [vmem:[#allocation4 + $0x1b50] sm:$0xff]
    %v974 = vld [vmem:[#allocation4 + $0x1b58] sm:$0xff]
    %v975 = vld [vmem:[#allocation4 + $0x1b60] sm:$0xff]
    %v976 = vld [vmem:[#allocation4 + $0x1b68] sm:$0xff]
    %v977 = vld [vmem:[#allocation4 + $0x1b70] sm:$0xff]
    %v978 = vld [vmem:[#allocation4 + $0x1b78] sm:$0xff]
    %v979 = vld [vmem:[#allocation4 + $0x1b80] sm:$0xff]
    %v980 = vld [vmem:[#allocation4 + $0x1b88] sm:$0xff]
    %v981 = vld [vmem:[#allocation4 + $0x1b90] sm:$0xff]
    %v982 = vld [vmem:[#allocation4 + $0x1b98] sm:$0xff]
    %v983 = vld [vmem:[#allocation4 + $0x1ba0] sm:$0xff]
    %v984 = vld [vmem:[#allocation4 + $0x1ba8] sm:$0xff]
    %v985 = vld [vmem:[#allocation4 + $0x1bb0] sm:$0xff]
    %v986 = vld [vmem:[#allocation4 + $0x1bb8] sm:$0xff]
    %v987 = vld [vmem:[#allocation4 + $0x1bc0] sm:$0xff]
    %v988 = vld [vmem:[#allocation4 + $0x1bc8] sm:$0xff]
    %v989 = vld [vmem:[#allocation4 + $0x1bd0] sm:$0xff]
    %v990 = vld [vmem:[#allocation4 + $0x1bd8] sm:$0xff]
    %v991 = vld [vmem:[#allocation4 + $0x1be0] sm:$0xff]
    %v992 = vld [vmem:[#allocation4 + $0x1be8] sm:$0xff]
    %v993 = vld [vmem:[#allocation4 + $0x1bf0] sm:$0xff]
    %v994 = vld [vmem:[#allocation4 + $0x1bf8] sm:$0xff]
    %v995 = vld [vmem:[#allocation4 + $0x1c00] sm:$0xff]
    %v996 = vld [vmem:[#allocation4 + $0x1c08] sm:$0xff]
    %v997 = vld [vmem:[#allocation4 + $0x1c10] sm:$0xff]
    %v998 = vld [vmem:[#allocation4 + $0x1c18] sm:$0xff]
    %v999 = vld [vmem:[#allocation4 + $0x1c20] sm:$0xff]
    %v1000 = vld [vmem:[#allocation4 + $0x1c28] sm:$0xff]
    %v1001 = vld [vmem:[#allocation4 + $0x1c30] sm:$0xff]
    %v1002 = vld [vmem:[#allocation4 + $0x1c38] sm:$0xff]
    %v1003 = vld [vmem:[#allocation4 + $0x1c40] sm:$0xff]
    %v1004 = vld [vmem:[#allocation4 + $0x1c48] sm:$0xff]
    %v1005 = vld [vmem:[#allocation4 + $0x1c50] sm:$0xff]
    %v1006 = vld [vmem:[#allocation4 + $0x1c58] sm:$0xff]
    %v1007 = vld [vmem:[#allocation4 + $0x1c60] sm:$0xff]
    %v1008 = vld [vmem:[#allocation4 + $0x1c68] sm:$0xff]
    %v1009 = vld [vmem:[#allocation4 + $0x1c70] sm:$0xff]
    %v1010 = vld [vmem:[#allocation4 + $0x1c78] sm:$0xff]
    %v1011 = vld [vmem:[#allocation4 + $0x1c80] sm:$0xff]
    %v1012 = vld [vmem:[#allocation4 + $0x1c88] sm:$0xff]
    %v1013 = vld [vmem:[#allocation4 + $0x1c90] sm:$0xff]
    %v1014 = vld [vmem:[#allocation4 + $0x1c98] sm:$0xff]
    %v1015 = vld [vmem:[#allocation4 + $0x1ca0] sm:$0xff]
    %v1016 = vld [vmem:[#allocation4 + $0x1ca8] sm:$0xff]
    %v1017 = vld [vmem:[#allocation4 + $0x1cb0] sm:$0xff]
    %v1018 = vld [vmem:[#allocation4 + $0x1cb8] sm:$0xff]
    %v1019 = vld [vmem:[#allocation4 + $0x1cc0] sm:$0xff]
    %v1020 = vld [vmem:[#allocation4 + $0x1cc8] sm:$0xff]
    %v1021 = vld [vmem:[#allocation4 + $0x1cd0] sm:$0xff]
    %v1022 = vld [vmem:[#allocation4 + $0x1cd8] sm:$0xff]
    %v1023 = vld [vmem:[#allocation4 + $0x1ce0] sm:$0xff]
    %v1024 = vld [vmem:[#allocation4 + $0x1ce8] sm:$0xff]
    %v1025 = vld [vmem:[#allocation4 + $0x1cf0] sm:$0xff]
    %v1026 = vld [vmem:[#allocation4 + $0x1cf8] sm:$0xff]
    %v1027 = vld [vmem:[#allocation4 + $0x1d00] sm:$0xff]
    %v1028 = vld [vmem:[#allocation4 + $0x1d08] sm:$0xff]
    %v1029 = vld [vmem:[#allocation4 + $0x1d10] sm:$0xff]
    %v1030 = vld [vmem:[#allocation4 + $0x1d18] sm:$0xff]
    %v1031 = vld [vmem:[#allocation4 + $0x1d20] sm:$0xff]
    %v1032 = vld [vmem:[#allocation4 + $0x1d28] sm:$0xff]
    %v1033 = vld [vmem:[#allocation4 + $0x1d30] sm:$0xff]
    %v1034 = vld [vmem:[#allocation4 + $0x1d38] sm:$0xff]
    %v1035 = vld [vmem:[#allocation4 + $0x1d40] sm:$0xff]
    %v1036 = vld [vmem:[#allocation4 + $0x1d48] sm:$0xff]
    %v1037 = vld [vmem:[#allocation4 + $0x1d50] sm:$0xff]
    %v1038 = vld [vmem:[#allocation4 + $0x1d58] sm:$0xff]
    %v1039 = vld [vmem:[#allocation4 + $0x1d60] sm:$0xff]
    %v1040 = vld [vmem:[#allocation4 + $0x1d68] sm:$0xff]
    %v1041 = vld [vmem:[#allocation4 + $0x1d70] sm:$0xff]
    %v1042 = vld [vmem:[#allocation4 + $0x1d78] sm:$0xff]
    %v1043 = vld [vmem:[#allocation4 + $0x1d80] sm:$0xff]
    %v1044 = vld [vmem:[#allocation4 + $0x1d88] sm:$0xff]
    %v1045 = vld [vmem:[#allocation4 + $0x1d90] sm:$0xff]
    %v1046 = vld [vmem:[#allocation4 + $0x1d98] sm:$0xff]
    %v1047 = vld [vmem:[#allocation4 + $0x1da0] sm:$0xff]
    %v1048 = vld [vmem:[#allocation4 + $0x1da8] sm:$0xff]
    %v1049 = vld [vmem:[#allocation4 + $0x1db0] sm:$0xff]
    %v1050 = vld [vmem:[#allocation4 + $0x1db8] sm:$0xff]
    %v1051 = vld [vmem:[#allocation4 + $0x1dc0] sm:$0xff]
    %v1052 = vld [vmem:[#allocation4 + $0x1dc8] sm:$0xff]
    %v1053 = vld [vmem:[#allocation4 + $0x1dd0] sm:$0xff]
    %v1054 = vld [vmem:[#allocation4 + $0x1dd8] sm:$0xff]
    %v1055 = vld [vmem:[#allocation4 + $0x1de0] sm:$0xff]
    %v1056 = vld [vmem:[#allocation4 + $0x1de8] sm:$0xff]
    %v1057 = vld [vmem:[#allocation4 + $0x1df0] sm:$0xff]
    %v1058 = vld [vmem:[#allocation4 + $0x1df8] sm:$0xff]
    %v1059 = vld [vmem:[#allocation4 + $0x1e00] sm:$0xff]
    %v1060 = vld [vmem:[#allocation4 + $0x1e08] sm:$0xff]
    %v1061 = vld [vmem:[#allocation4 + $0x1e10] sm:$0xff]
    %v1062 = vld [vmem:[#allocation4 + $0x1e18] sm:$0xff]
    %v1063 = vld [vmem:[#allocation4 + $0x1e20] sm:$0xff]
    %v1064 = vld [vmem:[#allocation4 + $0x1e28] sm:$0xff]
    %v1065 = vld [vmem:[#allocation4 + $0x1e30] sm:$0xff]
    %v1066 = vld [vmem:[#allocation4 + $0x1e38] sm:$0xff]
    %v1067 = vld [vmem:[#allocation4 + $0x1e40] sm:$0xff]
    %v1068 = vld [vmem:[#allocation4 + $0x1e48] sm:$0xff]
    %v1069 = vld [vmem:[#allocation4 + $0x1e50] sm:$0xff]
    %v1070 = vld [vmem:[#allocation4 + $0x1e58] sm:$0xff]
    %v1071 = vld [vmem:[#allocation4 + $0x1e60] sm:$0xff]
    %v1072 = vld [vmem:[#allocation4 + $0x1e68] sm:$0xff]
    %v1073 = vld [vmem:[#allocation4 + $0x1e70] sm:$0xff]
    %v1074 = vld [vmem:[#allocation4 + $0x1e78] sm:$0xff]
    %v1075 = vld [vmem:[#allocation4 + $0x1e80] sm:$0xff]
    %v1076 = vld [vmem:[#allocation4 + $0x1e88] sm:$0xff]
    %v1077 = vld [vmem:[#allocation4 + $0x1e90] sm:$0xff]
    %v1078 = vld [vmem:[#allocation4 + $0x1e98] sm:$0xff]
    %v1079 = vld [vmem:[#allocation4 + $0x1ea0] sm:$0xff]
    %v1080 = vld [vmem:[#allocation4 + $0x1ea8] sm:$0xff]
    %v1081 = vld [vmem:[#allocation4 + $0x1eb0] sm:$0xff]
    %v1082 = vld [vmem:[#allocation4 + $0x1eb8] sm:$0xff]
    %v1083 = vld [vmem:[#allocation4 + $0x1ec0] sm:$0xff]
    %v1084 = vld [vmem:[#allocation4 + $0x1ec8] sm:$0xff]
    %v1085 = vld [vmem:[#allocation4 + $0x1ed0] sm:$0xff]
    %v1086 = vld [vmem:[#allocation4 + $0x1ed8] sm:$0xff]
    %v1087 = vld [vmem:[#allocation4 + $0x1ee0] sm:$0xff]
    %v1088 = vld [vmem:[#allocation4 + $0x1ee8] sm:$0xff]
    %v1089 = vld [vmem:[#allocation4 + $0x1ef0] sm:$0xff]
    %v1090 = vld [vmem:[#allocation4 + $0x1ef8] sm:$0xff]
    %v1091 = vld [vmem:[#allocation4 + $0x1f00] sm:$0xff]
    %v1092 = vld [vmem:[#allocation4 + $0x1f08] sm:$0xff]
    %v1093 = vld [vmem:[#allocation4 + $0x1f10] sm:$0xff]
    %v1094 = vld [vmem:[#allocation4 + $0x1f18] sm:$0xff]
    %v1095 = vld [vmem:[#allocation4 + $0x1f20] sm:$0xff]
    %v1096 = vld [vmem:[#allocation4 + $0x1f28] sm:$0xff]
    %v1097 = vld [vmem:[#allocation4 + $0x1f30] sm:$0xff]
    %v1098 = vld [vmem:[#allocation4 + $0x1f38] sm:$0xff]
    %v1099 = vld [vmem:[#allocation6] sm:$0xf]
    %v1101 = vlaneseq
    %v1102 = vshrl.u32 %v1101, 7
    %v1103 = vsub.s32 0, %v1102
    %v1104 = vrot.slane %v1099, %v1103
    %v1105 = vlaneseq
    %v1106 = vshrl.u32 %v1105, 7
    %v1107 = vsub.s32 1, %v1106
    %v1108 = vrot.slane %v1099, %v1107
    %v1109 = vlaneseq
    %v1110 = vshrl.u32 %v1109, 7
    %v1111 = vsub.s32 2, %v1110
    %v1112 = vrot.slane %v1099, %v1111
    %v1113 = vlaneseq
    %v1114 = vshrl.u32 %v1113, 7
    %v1115 = vsub.s32 3, %v1114
    %v1116 = vrot.slane %v1099, %v1115
    %vm1121 = vcmask 654336
    %v1123 = vsel %vm1121, %v98, 0
    %1125 = vmatprep.subr.mxu0 %v160
    %1126 = vmatpush1.msra.mxu0 %v159
    %1127 = vmatprep.subr.mxu0 %v156
    %1128 = vmatpush1.msra.mxu0 %v155
    %1129 = vmatprep.subr.mxu0 %v152
    %1130 = vmatpush1.msra.mxu0 %v151
    %1131 = vmatprep.subr.mxu0 %v148
    %1132 = vmatpush1.msra.mxu0 %v147
    %1133 = vmatprep.subr.mxu0 %v144
    %1134 = vmatpush1.msra.mxu0 %v143
    %1135 = vmatprep.subr.mxu0 %v140
    %1136 = vmatpush1.msra.mxu0 %v139
    %1137 = vmatprep.subr.mxu0 %v136
    %1138 = vmatpush1.msra.mxu0 %v135
    %1139 = vmatprep.subr.mxu0 %v132
    %1140 = vmatpush1.msra.mxu0 %v131
    %1141 = vmatprep.subr.mxu0 %v128
    %1142 = vmatpush1.msra.mxu0 %v127
    %1143 = vmatprep.subr.mxu0 %v124
    %1144 = vmatpush1.msra.mxu0 %v123
    %1145 = vmatprep.subr.mxu0 %v120
    %1146 = vmatpush1.msra.mxu0 %v119
    %1147 = vmatprep.subr.mxu0 %v116
    %1148 = vmatpush1.msra.mxu0 %v115
    %1149 = vmatprep.subr.mxu0 %v112
    %1150 = vmatpush1.msra.mxu0 %v111
    %1151 = vmatprep.subr.mxu0 %v108
    %1152 = vmatpush1.msra.mxu0 %v107
    %1153 = vmatprep.subr.mxu0 %v104
    %1154 = vmatpush1.msra.mxu0 %v103
    %1155 = vmatprep.subr.mxu0 %v100
    %1156 = vmatpush1.msra.mxu0 %v99
    %1157 = vmatprep.subr.mxu0 %v224
    %1158 = vmatpush2.msra.mxu0 %v223
    %1159 = vmatprep.subr.mxu0 %v220
    %1160 = vmatpush2.msra.mxu0 %v219
    %1161 = vmatprep.subr.mxu0 %v216
    %1162 = vmatpush2.msra.mxu0 %v215
    %1163 = vmatprep.subr.mxu0 %v212
    %1164 = vmatpush2.msra.mxu0 %v211
    %1165 = vmatprep.subr.mxu0 %v208
    %1166 = vmatpush2.msra.mxu0 %v207
    %1167 = vmatprep.subr.mxu0 %v204
    %1168 = vmatpush2.msra.mxu0 %v203
    %1169 = vmatprep.subr.mxu0 %v200
    %1170 = vmatpush2.msra.mxu0 %v199
    %1171 = vmatprep.subr.mxu0 %v196
    %1172 = vmatpush2.msra.mxu0 %v195
    %1173 = vmatprep.subr.mxu0 %v192
    %1174 = vmatpush2.msra.mxu0 %v191
    %1175 = vmatprep.subr.mxu0 %v188
    %1176 = vmatpush2.msra.mxu0 %v187
    %1177 = vmatprep.subr.mxu0 %v184
    %1178 = vmatpush2.msra.mxu0 %v183
    %1179 = vmatprep.subr.mxu0 %v180
    %1180 = vmatpush2.msra.mxu0 %v179
    %1181 = vmatprep.subr.mxu0 %v176
    %1182 = vmatpush2.msra.mxu0 %v175
    %1183 = vmatprep.subr.mxu0 %v172
    %1184 = vmatpush2.msra.mxu0 %v171
    %1185 = vmatprep.subr.mxu0 %v168
    %1186 = vmatpush2.msra.mxu0 %v167
    %1187 = vmatprep.subr.mxu0 %v164
    %1188 = vmatpush2.msra.mxu0 %v163
    %1189 = vmatprep.mubr.f32.mxu0 %v84
    %1190 = vmatmul.mubr.f32.gmra.mxu0 %v83
    %v1191 = vpop.f32.mrf.mxu0
    %v1192 = vadd.f32 %v1104, %v1191
    %v1193 = vpop.f32.mrf.mxu0
    %v1194 = vadd.f32 %v1108, %v1193
    %1195 = vdwg.mxu0
    %1196 = vmatprep.subr.mxu0 %v288
    %1197 = vmatpush1.msra.mxu0 %v287
    %1198 = vmatprep.subr.mxu0 %v284
    %1199 = vmatpush1.msra.mxu0 %v283
    %1200 = vmatprep.subr.mxu0 %v280
    %1201 = vmatpush1.msra.mxu0 %v279
    %1202 = vmatprep.subr.mxu0 %v276
    %1203 = vmatpush1.msra.mxu0 %v275
    %1204 = vmatprep.subr.mxu0 %v272
    %1205 = vmatpush1.msra.mxu0 %v271
    %1206 = vmatprep.subr.mxu0 %v268
    %1207 = vmatpush1.msra.mxu0 %v267
    %1208 = vmatprep.subr.mxu0 %v264
    %1209 = vmatpush1.msra.mxu0 %v263
    %1210 = vmatprep.subr.mxu0 %v260
    %1211 = vmatpush1.msra.mxu0 %v259
    %1212 = vmatprep.subr.mxu0 %v256
    %1213 = vmatpush1.msra.mxu0 %v255
    %1214 = vmatprep.subr.mxu0 %v252
    %1215 = vmatpush1.msra.mxu0 %v251
    %1216 = vmatprep.subr.mxu0 %v248
    %1217 = vmatpush1.msra.mxu0 %v247
    %1218 = vmatprep.subr.mxu0 %v244
    %1219 = vmatpush1.msra.mxu0 %v243
    %1220 = vmatprep.subr.mxu0 %v240
    %1221 = vmatpush1.msra.mxu0 %v239
    %1222 = vmatprep.subr.mxu0 %v236
    %1223 = vmatpush1.msra.mxu0 %v235
    %1224 = vmatprep.subr.mxu0 %v232
    %1225 = vmatpush1.msra.mxu0 %v231
    %1226 = vmatprep.subr.mxu0 %v228
    %1227 = vmatpush1.msra.mxu0 %v227
    %1228 = vmatprep.subr.mxu0 %v352
    %1229 = vmatpush2.msra.mxu0 %v351
    %1230 = vmatprep.subr.mxu0 %v348
    %1231 = vmatpush2.msra.mxu0 %v347
    %1232 = vmatprep.subr.mxu0 %v344
    %1233 = vmatpush2.msra.mxu0 %v343
    %1234 = vmatprep.subr.mxu0 %v340
    %1235 = vmatpush2.msra.mxu0 %v339
    %1236 = vmatprep.subr.mxu0 %v336
    %1237 = vmatpush2.msra.mxu0 %v335
    %1238 = vmatprep.subr.mxu0 %v332
    %1239 = vmatpush2.msra.mxu0 %v331
    %1240 = vmatprep.subr.mxu0 %v328
    %1241 = vmatpush2.msra.mxu0 %v327
    %1242 = vmatprep.subr.mxu0 %v324
    %1243 = vmatpush2.msra.mxu0 %v323
    %1244 = vmatprep.subr.mxu0 %v320
    %1245 = vmatpush2.msra.mxu0 %v319
    %1246 = vmatprep.subr.mxu0 %v316
    %1247 = vmatpush2.msra.mxu0 %v315
    %1248 = vmatprep.subr.mxu0 %v312
    %1249 = vmatpush2.msra.mxu0 %v311
    %1250 = vmatprep.subr.mxu0 %v308
    %1251 = vmatpush2.msra.mxu0 %v307
    %1252 = vmatprep.subr.mxu0 %v304
    %1253 = vmatpush2.msra.mxu0 %v303
    %1254 = vmatprep.subr.mxu0 %v300
    %1255 = vmatpush2.msra.mxu0 %v299
    %1256 = vmatprep.subr.mxu0 %v296
    %1257 = vmatpush2.msra.mxu0 %v295
    %1258 = vmatprep.subr.mxu0 %v292
    %1259 = vmatpush2.msra.mxu0 %v291
    %1260 = vmatprep.mubr.f32.mxu0 %v86
    %1261 = vmatmul.mubr.f32.gmra.mxu0 %v85
    %v1262 = vpop.f32.mrf.mxu0
    %v1263 = vadd.f32 %v1192, %v1262
    %v1264 = vpop.f32.mrf.mxu0
    %v1265 = vadd.f32 %v1194, %v1264
    %1266 = vdwg.mxu0
    %1267 = vmatprep.subr.mxu0 %v416
    %1268 = vmatpush1.msra.mxu0 %v415
    %1269 = vmatprep.subr.mxu0 %v412
    %1270 = vmatpush1.msra.mxu0 %v411
    %1271 = vmatprep.subr.mxu0 %v408
    %1272 = vmatpush1.msra.mxu0 %v407
    %1273 = vmatprep.subr.mxu0 %v404
    %1274 = vmatpush1.msra.mxu0 %v403
    %1275 = vmatprep.subr.mxu0 %v400
    %1276 = vmatpush1.msra.mxu0 %v399
    %1277 = vmatprep.subr.mxu0 %v396
    %1278 = vmatpush1.msra.mxu0 %v395
    %1279 = vmatprep.subr.mxu0 %v392
    %1280 = vmatpush1.msra.mxu0 %v391
    %1281 = vmatprep.subr.mxu0 %v388
    %1282 = vmatpush1.msra.mxu0 %v387
    %1283 = vmatprep.subr.mxu0 %v384
    %1284 = vmatpush1.msra.mxu0 %v383
    %1285 = vmatprep.subr.mxu0 %v380
    %1286 = vmatpush1.msra.mxu0 %v379
    %1287 = vmatprep.subr.mxu0 %v376
    %1288 = vmatpush1.msra.mxu0 %v375
    %1289 = vmatprep.subr.mxu0 %v372
    %1290 = vmatpush1.msra.mxu0 %v371
    %1291 = vmatprep.subr.mxu0 %v368
    %1292 = vmatpush1.msra.mxu0 %v367
    %1293 = vmatprep.subr.mxu0 %v364
    %1294 = vmatpush1.msra.mxu0 %v363
    %1295 = vmatprep.subr.mxu0 %v360
    %1296 = vmatpush1.msra.mxu0 %v359
    %1297 = vmatprep.subr.mxu0 %v356
    %1298 = vmatpush1.msra.mxu0 %v355
    %1299 = vmatprep.subr.mxu0 %v480
    %1300 = vmatpush2.msra.mxu0 %v479
    %1301 = vmatprep.subr.mxu0 %v476
    %1302 = vmatpush2.msra.mxu0 %v475
    %1303 = vmatprep.subr.mxu0 %v472
    %1304 = vmatpush2.msra.mxu0 %v471
    %1305 = vmatprep.subr.mxu0 %v468
    %1306 = vmatpush2.msra.mxu0 %v467
    %1307 = vmatprep.subr.mxu0 %v464
    %1308 = vmatpush2.msra.mxu0 %v463
    %1309 = vmatprep.subr.mxu0 %v460
    %1310 = vmatpush2.msra.mxu0 %v459
    %1311 = vmatprep.subr.mxu0 %v456
    %1312 = vmatpush2.msra.mxu0 %v455
    %1313 = vmatprep.subr.mxu0 %v452
    %1314 = vmatpush2.msra.mxu0 %v451
    %1315 = vmatprep.subr.mxu0 %v448
    %1316 = vmatpush2.msra.mxu0 %v447
    %1317 = vmatprep.subr.mxu0 %v444
    %1318 = vmatpush2.msra.mxu0 %v443
    %1319 = vmatprep.subr.mxu0 %v440
    %1320 = vmatpush2.msra.mxu0 %v439
    %1321 = vmatprep.subr.mxu0 %v436
    %1322 = vmatpush2.msra.mxu0 %v435
    %1323 = vmatprep.subr.mxu0 %v432
    %1324 = vmatpush2.msra.mxu0 %v431
    %1325 = vmatprep.subr.mxu0 %v428
    %1326 = vmatpush2.msra.mxu0 %v427
    %1327 = vmatprep.subr.mxu0 %v424
    %1328 = vmatpush2.msra.mxu0 %v423
    %1329 = vmatprep.subr.mxu0 %v420
    %1330 = vmatpush2.msra.mxu0 %v419
    %1331 = vmatprep.mubr.f32.mxu0 %v88
    %1332 = vmatmul.mubr.f32.gmra.mxu0 %v87
    %v1333 = vpop.f32.mrf.mxu0
    %v1334 = vadd.f32 %v1263, %v1333
    %v1335 = vpop.f32.mrf.mxu0
    %v1336 = vadd.f32 %v1265, %v1335
    %1337 = vdwg.mxu0
    %1338 = vmatprep.subr.mxu0 %v544
    %1339 = vmatpush1.msra.mxu0 %v543
    %1340 = vmatprep.subr.mxu0 %v540
    %1341 = vmatpush1.msra.mxu0 %v539
    %1342 = vmatprep.subr.mxu0 %v536
    %1343 = vmatpush1.msra.mxu0 %v535
    %1344 = vmatprep.subr.mxu0 %v532
    %1345 = vmatpush1.msra.mxu0 %v531
    %1346 = vmatprep.subr.mxu0 %v528
    %1347 = vmatpush1.msra.mxu0 %v527
    %1348 = vmatprep.subr.mxu0 %v524
    %1349 = vmatpush1.msra.mxu0 %v523
    %1350 = vmatprep.subr.mxu0 %v520
    %1351 = vmatpush1.msra.mxu0 %v519
    %1352 = vmatprep.subr.mxu0 %v516
    %1353 = vmatpush1.msra.mxu0 %v515
    %1354 = vmatprep.subr.mxu0 %v512
    %1355 = vmatpush1.msra.mxu0 %v511
    %1356 = vmatprep.subr.mxu0 %v508
    %1357 = vmatpush1.msra.mxu0 %v507
    %1358 = vmatprep.subr.mxu0 %v504
    %1359 = vmatpush1.msra.mxu0 %v503
    %1360 = vmatprep.subr.mxu0 %v500
    %1361 = vmatpush1.msra.mxu0 %v499
    %1362 = vmatprep.subr.mxu0 %v496
    %1363 = vmatpush1.msra.mxu0 %v495
    %1364 = vmatprep.subr.mxu0 %v492
    %1365 = vmatpush1.msra.mxu0 %v491
    %1366 = vmatprep.subr.mxu0 %v488
    %1367 = vmatpush1.msra.mxu0 %v487
    %1368 = vmatprep.subr.mxu0 %v484
    %1369 = vmatpush1.msra.mxu0 %v483
    %1370 = vmatprep.subr.mxu0 %v608
    %1371 = vmatpush2.msra.mxu0 %v607
    %1372 = vmatprep.subr.mxu0 %v604
    %1373 = vmatpush2.msra.mxu0 %v603
    %1374 = vmatprep.subr.mxu0 %v600
    %1375 = vmatpush2.msra.mxu0 %v599
    %1376 = vmatprep.subr.mxu0 %v596
    %1377 = vmatpush2.msra.mxu0 %v595
    %1378 = vmatprep.subr.mxu0 %v592
    %1379 = vmatpush2.msra.mxu0 %v591
    %1380 = vmatprep.subr.mxu0 %v588
    %1381 = vmatpush2.msra.mxu0 %v587
    %1382 = vmatprep.subr.mxu0 %v584
    %1383 = vmatpush2.msra.mxu0 %v583
    %1384 = vmatprep.subr.mxu0 %v580
    %1385 = vmatpush2.msra.mxu0 %v579
    %1386 = vmatprep.subr.mxu0 %v576
    %1387 = vmatpush2.msra.mxu0 %v575
    %1388 = vmatprep.subr.mxu0 %v572
    %1389 = vmatpush2.msra.mxu0 %v571
    %1390 = vmatprep.subr.mxu0 %v568
    %1391 = vmatpush2.msra.mxu0 %v567
    %1392 = vmatprep.subr.mxu0 %v564
    %1393 = vmatpush2.msra.mxu0 %v563
    %1394 = vmatprep.subr.mxu0 %v560
    %1395 = vmatpush2.msra.mxu0 %v559
    %1396 = vmatprep.subr.mxu0 %v556
    %1397 = vmatpush2.msra.mxu0 %v555
    %1398 = vmatprep.subr.mxu0 %v552
    %1399 = vmatpush2.msra.mxu0 %v551
    %1400 = vmatprep.subr.mxu0 %v548
    %1401 = vmatpush2.msra.mxu0 %v547
    %1402 = vmatprep.mubr.f32.mxu0 %v90
    %1403 = vmatmul.mubr.f32.gmra.mxu0 %v89
    %v1404 = vpop.f32.mrf.mxu0
    %v1405 = vadd.f32 %v1334, %v1404
    %v1406 = vpop.f32.mrf.mxu0
    %v1407 = vadd.f32 %v1336, %v1406
    %1408 = vdwg.mxu0
    %1409 = vmatprep.subr.mxu0 %v672
    %1410 = vmatpush1.msra.mxu0 %v671
    %1411 = vmatprep.subr.mxu0 %v668
    %1412 = vmatpush1.msra.mxu0 %v667
    %1413 = vmatprep.subr.mxu0 %v664
    %1414 = vmatpush1.msra.mxu0 %v663
    %1415 = vmatprep.subr.mxu0 %v660
    %1416 = vmatpush1.msra.mxu0 %v659
    %1417 = vmatprep.subr.mxu0 %v656
    %1418 = vmatpush1.msra.mxu0 %v655
    %1419 = vmatprep.subr.mxu0 %v652
    %1420 = vmatpush1.msra.mxu0 %v651
    %1421 = vmatprep.subr.mxu0 %v648
    %1422 = vmatpush1.msra.mxu0 %v647
    %1423 = vmatprep.subr.mxu0 %v644
    %1424 = vmatpush1.msra.mxu0 %v643
    %1425 = vmatprep.subr.mxu0 %v640
    %1426 = vmatpush1.msra.mxu0 %v639
    %1427 = vmatprep.subr.mxu0 %v636
    %1428 = vmatpush1.msra.mxu0 %v635
    %1429 = vmatprep.subr.mxu0 %v632
    %1430 = vmatpush1.msra.mxu0 %v631
    %1431 = vmatprep.subr.mxu0 %v628
    %1432 = vmatpush1.msra.mxu0 %v627
    %1433 = vmatprep.subr.mxu0 %v624
    %1434 = vmatpush1.msra.mxu0 %v623
    %1435 = vmatprep.subr.mxu0 %v620
    %1436 = vmatpush1.msra.mxu0 %v619
    %1437 = vmatprep.subr.mxu0 %v616
    %1438 = vmatpush1.msra.mxu0 %v615
    %1439 = vmatprep.subr.mxu0 %v612
    %1440 = vmatpush1.msra.mxu0 %v611
    %1441 = vmatprep.subr.mxu0 %v736
    %1442 = vmatpush2.msra.mxu0 %v735
    %1443 = vmatprep.subr.mxu0 %v732
    %1444 = vmatpush2.msra.mxu0 %v731
    %1445 = vmatprep.subr.mxu0 %v728
    %1446 = vmatpush2.msra.mxu0 %v727
    %1447 = vmatprep.subr.mxu0 %v724
    %1448 = vmatpush2.msra.mxu0 %v723
    %1449 = vmatprep.subr.mxu0 %v720
    %1450 = vmatpush2.msra.mxu0 %v719
    %1451 = vmatprep.subr.mxu0 %v716
    %1452 = vmatpush2.msra.mxu0 %v715
    %1453 = vmatprep.subr.mxu0 %v712
    %1454 = vmatpush2.msra.mxu0 %v711
    %1455 = vmatprep.subr.mxu0 %v708
    %1456 = vmatpush2.msra.mxu0 %v707
    %1457 = vmatprep.subr.mxu0 %v704
    %1458 = vmatpush2.msra.mxu0 %v703
    %1459 = vmatprep.subr.mxu0 %v700
    %1460 = vmatpush2.msra.mxu0 %v699
    %1461 = vmatprep.subr.mxu0 %v696
    %1462 = vmatpush2.msra.mxu0 %v695
    %1463 = vmatprep.subr.mxu0 %v692
    %1464 = vmatpush2.msra.mxu0 %v691
    %1465 = vmatprep.subr.mxu0 %v688
    %1466 = vmatpush2.msra.mxu0 %v687
    %1467 = vmatprep.subr.mxu0 %v684
    %1468 = vmatpush2.msra.mxu0 %v683
    %1469 = vmatprep.subr.mxu0 %v680
    %1470 = vmatpush2.msra.mxu0 %v679
    %1471 = vmatprep.subr.mxu0 %v676
    %1472 = vmatpush2.msra.mxu0 %v675
    %1473 = vmatprep.mubr.f32.mxu0 %v92
    %1474 = vmatmul.mubr.f32.gmra.mxu0 %v91
    %v1475 = vpop.f32.mrf.mxu0
    %v1476 = vadd.f32 %v1405, %v1475
    %v1477 = vpop.f32.mrf.mxu0
    %v1478 = vadd.f32 %v1407, %v1477
    %1479 = vdwg.mxu0
    %1480 = vmatprep.subr.mxu0 %v800
    %1481 = vmatpush1.msra.mxu0 %v799
    %1482 = vmatprep.subr.mxu0 %v796
    %1483 = vmatpush1.msra.mxu0 %v795
    %1484 = vmatprep.subr.mxu0 %v792
    %1485 = vmatpush1.msra.mxu0 %v791
    %1486 = vmatprep.subr.mxu0 %v788
    %1487 = vmatpush1.msra.mxu0 %v787
    %1488 = vmatprep.subr.mxu0 %v784
    %1489 = vmatpush1.msra.mxu0 %v783
    %1490 = vmatprep.subr.mxu0 %v780
    %1491 = vmatpush1.msra.mxu0 %v779
    %1492 = vmatprep.subr.mxu0 %v776
    %1493 = vmatpush1.msra.mxu0 %v775
    %1494 = vmatprep.subr.mxu0 %v772
    %1495 = vmatpush1.msra.mxu0 %v771
    %1496 = vmatprep.subr.mxu0 %v768
    %1497 = vmatpush1.msra.mxu0 %v767
    %1498 = vmatprep.subr.mxu0 %v764
    %1499 = vmatpush1.msra.mxu0 %v763
    %1500 = vmatprep.subr.mxu0 %v760
    %1501 = vmatpush1.msra.mxu0 %v759
    %1502 = vmatprep.subr.mxu0 %v756
    %1503 = vmatpush1.msra.mxu0 %v755
    %1504 = vmatprep.subr.mxu0 %v752
    %1505 = vmatpush1.msra.mxu0 %v751
    %1506 = vmatprep.subr.mxu0 %v748
    %1507 = vmatpush1.msra.mxu0 %v747
    %1508 = vmatprep.subr.mxu0 %v744
    %1509 = vmatpush1.msra.mxu0 %v743
    %1510 = vmatprep.subr.mxu0 %v740
    %1511 = vmatpush1.msra.mxu0 %v739
    %1512 = vmatprep.subr.mxu0 %v864
    %1513 = vmatpush2.msra.mxu0 %v863
    %1514 = vmatprep.subr.mxu0 %v860
    %1515 = vmatpush2.msra.mxu0 %v859
    %1516 = vmatprep.subr.mxu0 %v856
    %1517 = vmatpush2.msra.mxu0 %v855
    %1518 = vmatprep.subr.mxu0 %v852
    %1519 = vmatpush2.msra.mxu0 %v851
    %1520 = vmatprep.subr.mxu0 %v848
    %1521 = vmatpush2.msra.mxu0 %v847
    %1522 = vmatprep.subr.mxu0 %v844
    %1523 = vmatpush2.msra.mxu0 %v843
    %1524 = vmatprep.subr.mxu0 %v840
    %1525 = vmatpush2.msra.mxu0 %v839
    %1526 = vmatprep.subr.mxu0 %v836
    %1527 = vmatpush2.msra.mxu0 %v835
    %1528 = vmatprep.subr.mxu0 %v832
    %1529 = vmatpush2.msra.mxu0 %v831
    %1530 = vmatprep.subr.mxu0 %v828
    %1531 = vmatpush2.msra.mxu0 %v827
    %1532 = vmatprep.subr.mxu0 %v824
    %1533 = vmatpush2.msra.mxu0 %v823
    %1534 = vmatprep.subr.mxu0 %v820
    %1535 = vmatpush2.msra.mxu0 %v819
    %1536 = vmatprep.subr.mxu0 %v816
    %1537 = vmatpush2.msra.mxu0 %v815
    %1538 = vmatprep.subr.mxu0 %v812
    %1539 = vmatpush2.msra.mxu0 %v811
    %1540 = vmatprep.subr.mxu0 %v808
    %1541 = vmatpush2.msra.mxu0 %v807
    %1542 = vmatprep.subr.mxu0 %v804
    %1543 = vmatpush2.msra.mxu0 %v803
    %1544 = vmatprep.mubr.f32.mxu0 %v94
    %1545 = vmatmul.mubr.f32.gmra.mxu0 %v93
    %v1546 = vpop.f32.mrf.mxu0
    %v1547 = vadd.f32 %v1476, %v1546
    %v1548 = vpop.f32.mrf.mxu0
    %v1549 = vadd.f32 %v1478, %v1548
    %1550 = vdwg.mxu0
    %1551 = vmatprep.subr.mxu0 %v928
    %1552 = vmatpush1.msra.mxu0 %v927
    %1553 = vmatprep.subr.mxu0 %v924
    %1554 = vmatpush1.msra.mxu0 %v923
    %1555 = vmatprep.subr.mxu0 %v920
    %1556 = vmatpush1.msra.mxu0 %v919
    %1557 = vmatprep.subr.mxu0 %v916
    %1558 = vmatpush1.msra.mxu0 %v915
    %1559 = vmatprep.subr.mxu0 %v912
    %1560 = vmatpush1.msra.mxu0 %v911
    %1561 = vmatprep.subr.mxu0 %v908
    %1562 = vmatpush1.msra.mxu0 %v907
    %1563 = vmatprep.subr.mxu0 %v904
    %1564 = vmatpush1.msra.mxu0 %v903
    %1565 = vmatprep.subr.mxu0 %v900
    %1566 = vmatpush1.msra.mxu0 %v899
    %1567 = vmatprep.subr.mxu0 %v896
    %1568 = vmatpush1.msra.mxu0 %v895
    %1569 = vmatprep.subr.mxu0 %v892
    %1570 = vmatpush1.msra.mxu0 %v891
    %1571 = vmatprep.subr.mxu0 %v888
    %1572 = vmatpush1.msra.mxu0 %v887
    %1573 = vmatprep.subr.mxu0 %v884
    %1574 = vmatpush1.msra.mxu0 %v883
    %1575 = vmatprep.subr.mxu0 %v880
    %1576 = vmatpush1.msra.mxu0 %v879
    %1577 = vmatprep.subr.mxu0 %v876
    %1578 = vmatpush1.msra.mxu0 %v875
    %1579 = vmatprep.subr.mxu0 %v872
    %1580 = vmatpush1.msra.mxu0 %v871
    %1581 = vmatprep.subr.mxu0 %v868
    %1582 = vmatpush1.msra.mxu0 %v867
    %1583 = vmatprep.subr.mxu0 %v992
    %1584 = vmatpush2.msra.mxu0 %v991
    %1585 = vmatprep.subr.mxu0 %v988
    %1586 = vmatpush2.msra.mxu0 %v987
    %1587 = vmatprep.subr.mxu0 %v984
    %1588 = vmatpush2.msra.mxu0 %v983
    %1589 = vmatprep.subr.mxu0 %v980
    %1590 = vmatpush2.msra.mxu0 %v979
    %1591 = vmatprep.subr.mxu0 %v976
    %1592 = vmatpush2.msra.mxu0 %v975
    %1593 = vmatprep.subr.mxu0 %v972
    %1594 = vmatpush2.msra.mxu0 %v971
    %1595 = vmatprep.subr.mxu0 %v968
    %1596 = vmatpush2.msra.mxu0 %v967
    %1597 = vmatprep.subr.mxu0 %v964
    %1598 = vmatpush2.msra.mxu0 %v963
    %1599 = vmatprep.subr.mxu0 %v960
    %1600 = vmatpush2.msra.mxu0 %v959
    %1601 = vmatprep.subr.mxu0 %v956
    %1602 = vmatpush2.msra.mxu0 %v955
    %1603 = vmatprep.subr.mxu0 %v952
    %1604 = vmatpush2.msra.mxu0 %v951
    %1605 = vmatprep.subr.mxu0 %v948
    %1606 = vmatpush2.msra.mxu0 %v947
    %1607 = vmatprep.subr.mxu0 %v944
    %1608 = vmatpush2.msra.mxu0 %v943
    %1609 = vmatprep.subr.mxu0 %v940
    %1610 = vmatpush2.msra.mxu0 %v939
    %1611 = vmatprep.subr.mxu0 %v936
    %1612 = vmatpush2.msra.mxu0 %v935
    %1613 = vmatprep.subr.mxu0 %v932
    %1614 = vmatpush2.msra.mxu0 %v931
    %1615 = vmatprep.mubr.f32.mxu0 %v96
    %1616 = vmatmul.mubr.f32.gmra.mxu0 %v95
    %v1617 = vpop.f32.mrf.mxu0
    %v1618 = vadd.f32 %v1547, %v1617
    %v1619 = vpop.f32.mrf.mxu0
    %v1620 = vadd.f32 %v1549, %v1619
    %1621 = vdwg.mxu0
    %1622 = vmatprep.subr.mxu0 %v1056
    %1623 = vmatpush1.msra.mxu0 %v1055
    %1624 = vmatprep.subr.mxu0 %v1052
    %1625 = vmatpush1.msra.mxu0 %v1051
    %1626 = vmatprep.subr.mxu0 %v1048
    %1627 = vmatpush1.msra.mxu0 %v1047
    %1628 = vmatprep.subr.mxu0 %v1044
    %1629 = vmatpush1.msra.mxu0 %v1043
    %1630 = vmatprep.subr.mxu0 %v1040
    %1631 = vmatpush1.msra.mxu0 %v1039
    %1632 = vmatprep.subr.mxu0 %v1036
    %1633 = vmatpush1.msra.mxu0 %v1035
    %1634 = vmatprep.subr.mxu0 %v1032
    %1635 = vmatpush1.msra.mxu0 %v1031
    %1636 = vmatprep.subr.mxu0 %v1028
    %1637 = vmatpush1.msra.mxu0 %v1027
    %1638 = vmatprep.subr.mxu0 %v1024
    %1639 = vmatpush1.msra.mxu0 %v1023
    %1640 = vmatprep.subr.mxu0 %v1020
    %1641 = vmatpush1.msra.mxu0 %v1019
    %1642 = vmatprep.subr.mxu0 %v1016
    %1643 = vmatpush1.msra.mxu0 %v1015
    %1644 = vmatprep.subr.mxu0 %v1012
    %1645 = vmatpush1.msra.mxu0 %v1011
    %1646 = vmatprep.subr.mxu0 %v1008
    %1647 = vmatpush1.msra.mxu0 %v1007
    %1648 = vmatprep.subr.mxu0 %v1004
    %1649 = vmatpush1.msra.mxu0 %v1003
    %1650 = vmatprep.subr.mxu0 %v1000
    %1651 = vmatpush1.msra.mxu0 %v999
    %1652 = vmatprep.subr.mxu0 %v996
    %1653 = vmatpush1.msra.mxu0 %v995
    %1654 = vmatprep.subr.mxu0 0.0
    %1655 = vmatpush2.msra.mxu0 0.0
    %1656 = vmatprep.subr.mxu0 0.0
    %1657 = vmatpush2.msra.mxu0 0.0
    %1658 = vmatprep.subr.mxu0 0.0
    %1659 = vmatpush2.msra.mxu0 0.0
    %1660 = vmatprep.subr.mxu0 0.0
    %1661 = vmatpush2.msra.mxu0 0.0
    %1662 = vmatprep.subr.mxu0 0.0
    %1663 = vmatpush2.msra.mxu0 0.0
    %1664 = vmatprep.subr.mxu0 0.0
    %1665 = vmatpush2.msra.mxu0 0.0
    %1666 = vmatprep.subr.mxu0 %v1096
    %1667 = vmatpush2.msra.mxu0 %v1095
    %1668 = vmatprep.subr.mxu0 %v1092
    %1669 = vmatpush2.msra.mxu0 %v1091
    %1670 = vmatprep.subr.mxu0 %v1088
    %1671 = vmatpush2.msra.mxu0 %v1087
    %1672 = vmatprep.subr.mxu0 %v1084
    %1673 = vmatpush2.msra.mxu0 %v1083
    %1674 = vmatprep.subr.mxu0 %v1080
    %1675 = vmatpush2.msra.mxu0 %v1079
    %1676 = vmatprep.subr.mxu0 %v1076
    %1677 = vmatpush2.msra.mxu0 %v1075
    %1678 = vmatprep.subr.mxu0 %v1072
    %1679 = vmatpush2.msra.mxu0 %v1071
    %1680 = vmatprep.subr.mxu0 %v1068
    %1681 = vmatpush2.msra.mxu0 %v1067
    %1682 = vmatprep.subr.mxu0 %v1064
    %1683 = vmatpush2.msra.mxu0 %v1063
    %1684 = vmatprep.subr.mxu0 %v1060
    %1685 = vmatpush2.msra.mxu0 %v1059
    %1686 = vmatprep.mubr.f32.mxu0 %v1123
    %1687 = vmatmul.mubr.f32.gmra.mxu0 %v97
    %v1688 = vpop.f32.mrf.mxu0
    %v1689 = vadd.f32 %v1618, %v1688
    %v1690 = vpop.f32.mrf.mxu0
    %v1691 = vadd.f32 %v1620, %v1690
    %1692 = vdwg.mxu0
    %1693 = vmatprep.subr.mxu0 %v162
    %1694 = vmatpush1.msra.mxu0 %v161
    %1695 = vmatprep.subr.mxu0 %v158
    %1696 = vmatpush1.msra.mxu0 %v157
    %1697 = vmatprep.subr.mxu0 %v154
    %1698 = vmatpush1.msra.mxu0 %v153
    %1699 = vmatprep.subr.mxu0 %v150
    %1700 = vmatpush1.msra.mxu0 %v149
    %1701 = vmatprep.subr.mxu0 %v146
    %1702 = vmatpush1.msra.mxu0 %v145
    %1703 = vmatprep.subr.mxu0 %v142
    %1704 = vmatpush1.msra.mxu0 %v141
    %1705 = vmatprep.subr.mxu0 %v138
    %1706 = vmatpush1.msra.mxu0 %v137
    %1707 = vmatprep.subr.mxu0 %v134
    %1708 = vmatpush1.msra.mxu0 %v133
    %1709 = vmatprep.subr.mxu0 %v130
    %1710 = vmatpush1.msra.mxu0 %v129
    %1711 = vmatprep.subr.mxu0 %v126
    %1712 = vmatpush1.msra.mxu0 %v125
    %1713 = vmatprep.subr.mxu0 %v122
    %1714 = vmatpush1.msra.mxu0 %v121
    %1715 = vmatprep.subr.mxu0 %v118
    %1716 = vmatpush1.msra.mxu0 %v117
    %1717 = vmatprep.subr.mxu0 %v114
    %1718 = vmatpush1.msra.mxu0 %v113
    %1719 = vmatprep.subr.mxu0 %v110
    %1720 = vmatpush1.msra.mxu0 %v109
    %1721 = vmatprep.subr.mxu0 %v106
    %1722 = vmatpush1.msra.mxu0 %v105
    %1723 = vmatprep.subr.mxu0 %v102
    %1724 = vmatpush1.msra.mxu0 %v101
    %1725 = vmatprep.subr.mxu0 %v226
    %1726 = vmatpush2.msra.mxu0 %v225
    %1727 = vmatprep.subr.mxu0 %v222
    %1728 = vmatpush2.msra.mxu0 %v221
    %1729 = vmatprep.subr.mxu0 %v218
    %1730 = vmatpush2.msra.mxu0 %v217
    %1731 = vmatprep.subr.mxu0 %v214
    %1732 = vmatpush2.msra.mxu0 %v213
    %1733 = vmatprep.subr.mxu0 %v210
    %1734 = vmatpush2.msra.mxu0 %v209
    %1735 = vmatprep.subr.mxu0 %v206
    %1736 = vmatpush2.msra.mxu0 %v205
    %1737 = vmatprep.subr.mxu0 %v202
    %1738 = vmatpush2.msra.mxu0 %v201
    %1739 = vmatprep.subr.mxu0 %v198
    %1740 = vmatpush2.msra.mxu0 %v197
    %1741 = vmatprep.subr.mxu0 %v194
    %1742 = vmatpush2.msra.mxu0 %v193
    %1743 = vmatprep.subr.mxu0 %v190
    %1744 = vmatpush2.msra.mxu0 %v189
    %1745 = vmatprep.subr.mxu0 %v186
    %1746 = vmatpush2.msra.mxu0 %v185
    %1747 = vmatprep.subr.mxu0 %v182
    %1748 = vmatpush2.msra.mxu0 %v181
    %1749 = vmatprep.subr.mxu0 %v178
    %1750 = vmatpush2.msra.mxu0 %v177
    %1751 = vmatprep.subr.mxu0 %v174
    %1752 = vmatpush2.msra.mxu0 %v173
    %1753 = vmatprep.subr.mxu0 %v170
    %1754 = vmatpush2.msra.mxu0 %v169
    %1755 = vmatprep.subr.mxu0 %v166
    %1756 = vmatpush2.msra.mxu0 %v165
    %1757 = vmatprep.mubr.f32.mxu0 %v84
    %1758 = vmatmul.mubr.f32.gmra.mxu0 %v83
    %v1759 = vpop.f32.mrf.mxu0
    %v1760 = vadd.f32 %v1112, %v1759
    %v1761 = vpop.f32.mrf.mxu0
    %v1762 = vadd.f32 %v1116, %v1761
    %1763 = vdwg.mxu0
    %1764 = vmatprep.subr.mxu0 %v290
    %1765 = vmatpush1.msra.mxu0 %v289
    %1766 = vmatprep.subr.mxu0 %v286
    %1767 = vmatpush1.msra.mxu0 %v285
    %1768 = vmatprep.subr.mxu0 %v282
    %1769 = vmatpush1.msra.mxu0 %v281
    %1770 = vmatprep.subr.mxu0 %v278
    %1771 = vmatpush1.msra.mxu0 %v277
    %1772 = vmatprep.subr.mxu0 %v274
    %1773 = vmatpush1.msra.mxu0 %v273
    %1774 = vmatprep.subr.mxu0 %v270
    %1775 = vmatpush1.msra.mxu0 %v269
    %1776 = vmatprep.subr.mxu0 %v266
    %1777 = vmatpush1.msra.mxu0 %v265
    %1778 = vmatprep.subr.mxu0 %v262
    %1779 = vmatpush1.msra.mxu0 %v261
    %1780 = vmatprep.subr.mxu0 %v258
    %1781 = vmatpush1.msra.mxu0 %v257
    %1782 = vmatprep.subr.mxu0 %v254
    %1783 = vmatpush1.msra.mxu0 %v253
    %1784 = vmatprep.subr.mxu0 %v250
    %1785 = vmatpush1.msra.mxu0 %v249
    %1786 = vmatprep.subr.mxu0 %v246
    %1787 = vmatpush1.msra.mxu0 %v245
    %1788 = vmatprep.subr.mxu0 %v242
    %1789 = vmatpush1.msra.mxu0 %v241
    %1790 = vmatprep.subr.mxu0 %v238
    %1791 = vmatpush1.msra.mxu0 %v237
    %1792 = vmatprep.subr.mxu0 %v234
    %1793 = vmatpush1.msra.mxu0 %v233
    %1794 = vmatprep.subr.mxu0 %v230
    %1795 = vmatpush1.msra.mxu0 %v229
    %1796 = vmatprep.subr.mxu0 %v354
    %1797 = vmatpush2.msra.mxu0 %v353
    %1798 = vmatprep.subr.mxu0 %v350
    %1799 = vmatpush2.msra.mxu0 %v349
    %1800 = vmatprep.subr.mxu0 %v346
    %1801 = vmatpush2.msra.mxu0 %v345
    %1802 = vmatprep.subr.mxu0 %v342
    %1803 = vmatpush2.msra.mxu0 %v341
    %1804 = vmatprep.subr.mxu0 %v338
    %1805 = vmatpush2.msra.mxu0 %v337
    %1806 = vmatprep.subr.mxu0 %v334
    %1807 = vmatpush2.msra.mxu0 %v333
    %1808 = vmatprep.subr.mxu0 %v330
    %1809 = vmatpush2.msra.mxu0 %v329
    %1810 = vmatprep.subr.mxu0 %v326
    %1811 = vmatpush2.msra.mxu0 %v325
    %1812 = vmatprep.subr.mxu0 %v322
    %1813 = vmatpush2.msra.mxu0 %v321
    %1814 = vmatprep.subr.mxu0 %v318
    %1815 = vmatpush2.msra.mxu0 %v317
    %1816 = vmatprep.subr.mxu0 %v314
    %1817 = vmatpush2.msra.mxu0 %v313
    %1818 = vmatprep.subr.mxu0 %v310
    %1819 = vmatpush2.msra.mxu0 %v309
    %1820 = vmatprep.subr.mxu0 %v306
    %1821 = vmatpush2.msra.mxu0 %v305
    %1822 = vmatprep.subr.mxu0 %v302
    %1823 = vmatpush2.msra.mxu0 %v301
    %1824 = vmatprep.subr.mxu0 %v298
    %1825 = vmatpush2.msra.mxu0 %v297
    %1826 = vmatprep.subr.mxu0 %v294
    %1827 = vmatpush2.msra.mxu0 %v293
    %1828 = vmatprep.mubr.f32.mxu0 %v86
    %1829 = vmatmul.mubr.f32.gmra.mxu0 %v85
    %v1830 = vpop.f32.mrf.mxu0
    %v1831 = vadd.f32 %v1760, %v1830
    %v1832 = vpop.f32.mrf.mxu0
    %v1833 = vadd.f32 %v1762, %v1832
    %1834 = vdwg.mxu0
    %1835 = vmatprep.subr.mxu0 %v418
    %1836 = vmatpush1.msra.mxu0 %v417
    %1837 = vmatprep.subr.mxu0 %v414
    %1838 = vmatpush1.msra.mxu0 %v413
    %1839 = vmatprep.subr.mxu0 %v410
    %1840 = vmatpush1.msra.mxu0 %v409
    %1841 = vmatprep.subr.mxu0 %v406
    %1842 = vmatpush1.msra.mxu0 %v405
    %1843 = vmatprep.subr.mxu0 %v402
    %1844 = vmatpush1.msra.mxu0 %v401
    %1845 = vmatprep.subr.mxu0 %v398
    %1846 = vmatpush1.msra.mxu0 %v397
    %1847 = vmatprep.subr.mxu0 %v394
    %1848 = vmatpush1.msra.mxu0 %v393
    %1849 = vmatprep.subr.mxu0 %v390
    %1850 = vmatpush1.msra.mxu0 %v389
    %1851 = vmatprep.subr.mxu0 %v386
    %1852 = vmatpush1.msra.mxu0 %v385
    %1853 = vmatprep.subr.mxu0 %v382
    %1854 = vmatpush1.msra.mxu0 %v381
    %1855 = vmatprep.subr.mxu0 %v378
    %1856 = vmatpush1.msra.mxu0 %v377
    %1857 = vmatprep.subr.mxu0 %v374
    %1858 = vmatpush1.msra.mxu0 %v373
    %1859 = vmatprep.subr.mxu0 %v370
    %1860 = vmatpush1.msra.mxu0 %v369
    %1861 = vmatprep.subr.mxu0 %v366
    %1862 = vmatpush1.msra.mxu0 %v365
    %1863 = vmatprep.subr.mxu0 %v362
    %1864 = vmatpush1.msra.mxu0 %v361
    %1865 = vmatprep.subr.mxu0 %v358
    %1866 = vmatpush1.msra.mxu0 %v357
    %1867 = vmatprep.subr.mxu0 %v482
    %1868 = vmatpush2.msra.mxu0 %v481
    %1869 = vmatprep.subr.mxu0 %v478
    %1870 = vmatpush2.msra.mxu0 %v477
    %1871 = vmatprep.subr.mxu0 %v474
    %1872 = vmatpush2.msra.mxu0 %v473
    %1873 = vmatprep.subr.mxu0 %v470
    %1874 = vmatpush2.msra.mxu0 %v469
    %1875 = vmatprep.subr.mxu0 %v466
    %1876 = vmatpush2.msra.mxu0 %v465
    %1877 = vmatprep.subr.mxu0 %v462
    %1878 = vmatpush2.msra.mxu0 %v461
    %1879 = vmatprep.subr.mxu0 %v458
    %1880 = vmatpush2.msra.mxu0 %v457
    %1881 = vmatprep.subr.mxu0 %v454
    %1882 = vmatpush2.msra.mxu0 %v453
    %1883 = vmatprep.subr.mxu0 %v450
    %1884 = vmatpush2.msra.mxu0 %v449
    %1885 = vmatprep.subr.mxu0 %v446
    %1886 = vmatpush2.msra.mxu0 %v445
    %1887 = vmatprep.subr.mxu0 %v442
    %1888 = vmatpush2.msra.mxu0 %v441
    %1889 = vmatprep.subr.mxu0 %v438
    %1890 = vmatpush2.msra.mxu0 %v437
    %1891 = vmatprep.subr.mxu0 %v434
    %1892 = vmatpush2.msra.mxu0 %v433
    %1893 = vmatprep.subr.mxu0 %v430
    %1894 = vmatpush2.msra.mxu0 %v429
    %1895 = vmatprep.subr.mxu0 %v426
    %1896 = vmatpush2.msra.mxu0 %v425
    %1897 = vmatprep.subr.mxu0 %v422
    %1898 = vmatpush2.msra.mxu0 %v421
    %1899 = vmatprep.mubr.f32.mxu0 %v88
    %1900 = vmatmul.mubr.f32.gmra.mxu0 %v87
    %v1901 = vpop.f32.mrf.mxu0
    %v1902 = vadd.f32 %v1831, %v1901
    %v1903 = vpop.f32.mrf.mxu0
    %v1904 = vadd.f32 %v1833, %v1903
    %1905 = vdwg.mxu0
    %1906 = vmatprep.subr.mxu0 %v546
    %1907 = vmatpush1.msra.mxu0 %v545
    %1908 = vmatprep.subr.mxu0 %v542
    %1909 = vmatpush1.msra.mxu0 %v541
    %1910 = vmatprep.subr.mxu0 %v538
    %1911 = vmatpush1.msra.mxu0 %v537
    %1912 = vmatprep.subr.mxu0 %v534
    %1913 = vmatpush1.msra.mxu0 %v533
    %1914 = vmatprep.subr.mxu0 %v530
    %1915 = vmatpush1.msra.mxu0 %v529
    %1916 = vmatprep.subr.mxu0 %v526
    %1917 = vmatpush1.msra.mxu0 %v525
    %1918 = vmatprep.subr.mxu0 %v522
    %1919 = vmatpush1.msra.mxu0 %v521
    %1920 = vmatprep.subr.mxu0 %v518
    %1921 = vmatpush1.msra.mxu0 %v517
    %1922 = vmatprep.subr.mxu0 %v514
    %1923 = vmatpush1.msra.mxu0 %v513
    %1924 = vmatprep.subr.mxu0 %v510
    %1925 = vmatpush1.msra.mxu0 %v509
    %1926 = vmatprep.subr.mxu0 %v506
    %1927 = vmatpush1.msra.mxu0 %v505
    %1928 = vmatprep.subr.mxu0 %v502
    %1929 = vmatpush1.msra.mxu0 %v501
    %1930 = vmatprep.subr.mxu0 %v498
    %1931 = vmatpush1.msra.mxu0 %v497
    %1932 = vmatprep.subr.mxu0 %v494
    %1933 = vmatpush1.msra.mxu0 %v493
    %1934 = vmatprep.subr.mxu0 %v490
    %1935 = vmatpush1.msra.mxu0 %v489
    %1936 = vmatprep.subr.mxu0 %v486
    %1937 = vmatpush1.msra.mxu0 %v485
    %1938 = vmatprep.subr.mxu0 %v610
    %1939 = vmatpush2.msra.mxu0 %v609
    %1940 = vmatprep.subr.mxu0 %v606
    %1941 = vmatpush2.msra.mxu0 %v605
    %1942 = vmatprep.subr.mxu0 %v602
    %1943 = vmatpush2.msra.mxu0 %v601
    %1944 = vmatprep.subr.mxu0 %v598
    %1945 = vmatpush2.msra.mxu0 %v597
    %1946 = vmatprep.subr.mxu0 %v594
    %1947 = vmatpush2.msra.mxu0 %v593
    %1948 = vmatprep.subr.mxu0 %v590
    %1949 = vmatpush2.msra.mxu0 %v589
    %1950 = vmatprep.subr.mxu0 %v586
    %1951 = vmatpush2.msra.mxu0 %v585
    %1952 = vmatprep.subr.mxu0 %v582
    %1953 = vmatpush2.msra.mxu0 %v581
    %1954 = vmatprep.subr.mxu0 %v578
    %1955 = vmatpush2.msra.mxu0 %v577
    %1956 = vmatprep.subr.mxu0 %v574
    %1957 = vmatpush2.msra.mxu0 %v573
    %1958 = vmatprep.subr.mxu0 %v570
    %1959 = vmatpush2.msra.mxu0 %v569
    %1960 = vmatprep.subr.mxu0 %v566
    %1961 = vmatpush2.msra.mxu0 %v565
    %1962 = vmatprep.subr.mxu0 %v562
    %1963 = vmatpush2.msra.mxu0 %v561
    %1964 = vmatprep.subr.mxu0 %v558
    %1965 = vmatpush2.msra.mxu0 %v557
    %1966 = vmatprep.subr.mxu0 %v554
    %1967 = vmatpush2.msra.mxu0 %v553
    %1968 = vmatprep.subr.mxu0 %v550
    %1969 = vmatpush2.msra.mxu0 %v549
    %1970 = vmatprep.mubr.f32.mxu0 %v90
    %1971 = vmatmul.mubr.f32.gmra.mxu0 %v89
    %v1972 = vpop.f32.mrf.mxu0
    %v1973 = vadd.f32 %v1902, %v1972
    %v1974 = vpop.f32.mrf.mxu0
    %v1975 = vadd.f32 %v1904, %v1974
    %1976 = vdwg.mxu0
    %1977 = vmatprep.subr.mxu0 %v674
    %1978 = vmatpush1.msra.mxu0 %v673
    %1979 = vmatprep.subr.mxu0 %v670
    %1980 = vmatpush1.msra.mxu0 %v669
    %1981 = vmatprep.subr.mxu0 %v666
    %1982 = vmatpush1.msra.mxu0 %v665
    %1983 = vmatprep.subr.mxu0 %v662
    %1984 = vmatpush1.msra.mxu0 %v661
    %1985 = vmatprep.subr.mxu0 %v658
    %1986 = vmatpush1.msra.mxu0 %v657
    %1987 = vmatprep.subr.mxu0 %v654
    %1988 = vmatpush1.msra.mxu0 %v653
    %1989 = vmatprep.subr.mxu0 %v650
    %1990 = vmatpush1.msra.mxu0 %v649
    %1991 = vmatprep.subr.mxu0 %v646
    %1992 = vmatpush1.msra.mxu0 %v645
    %1993 = vmatprep.subr.mxu0 %v642
    %1994 = vmatpush1.msra.mxu0 %v641
    %1995 = vmatprep.subr.mxu0 %v638
    %1996 = vmatpush1.msra.mxu0 %v637
    %1997 = vmatprep.subr.mxu0 %v634
    %1998 = vmatpush1.msra.mxu0 %v633
    %1999 = vmatprep.subr.mxu0 %v630
    %2000 = vmatpush1.msra.mxu0 %v629
    %2001 = vmatprep.subr.mxu0 %v626
    %2002 = vmatpush1.msra.mxu0 %v625
    %2003 = vmatprep.subr.mxu0 %v622
    %2004 = vmatpush1.msra.mxu0 %v621
    %2005 = vmatprep.subr.mxu0 %v618
    %2006 = vmatpush1.msra.mxu0 %v617
    %2007 = vmatprep.subr.mxu0 %v614
    %2008 = vmatpush1.msra.mxu0 %v613
    %2009 = vmatprep.subr.mxu0 %v738
    %2010 = vmatpush2.msra.mxu0 %v737
    %2011 = vmatprep.subr.mxu0 %v734
    %2012 = vmatpush2.msra.mxu0 %v733
    %2013 = vmatprep.subr.mxu0 %v730
    %2014 = vmatpush2.msra.mxu0 %v729
    %2015 = vmatprep.subr.mxu0 %v726
    %2016 = vmatpush2.msra.mxu0 %v725
    %2017 = vmatprep.subr.mxu0 %v722
    %2018 = vmatpush2.msra.mxu0 %v721
    %2019 = vmatprep.subr.mxu0 %v718
    %2020 = vmatpush2.msra.mxu0 %v717
    %2021 = vmatprep.subr.mxu0 %v714
    %2022 = vmatpush2.msra.mxu0 %v713
    %2023 = vmatprep.subr.mxu0 %v710
    %2024 = vmatpush2.msra.mxu0 %v709
    %2025 = vmatprep.subr.mxu0 %v706
    %2026 = vmatpush2.msra.mxu0 %v705
    %2027 = vmatprep.subr.mxu0 %v702
    %2028 = vmatpush2.msra.mxu0 %v701
    %2029 = vmatprep.subr.mxu0 %v698
    %2030 = vmatpush2.msra.mxu0 %v697
    %2031 = vmatprep.subr.mxu0 %v694
    %2032 = vmatpush2.msra.mxu0 %v693
    %2033 = vmatprep.subr.mxu0 %v690
    %2034 = vmatpush2.msra.mxu0 %v689
    %2035 = vmatprep.subr.mxu0 %v686
    %2036 = vmatpush2.msra.mxu0 %v685
    %2037 = vmatprep.subr.mxu0 %v682
    %2038 = vmatpush2.msra.mxu0 %v681
    %2039 = vmatprep.subr.mxu0 %v678
    %2040 = vmatpush2.msra.mxu0 %v677
    %2041 = vmatprep.mubr.f32.mxu0 %v92
    %2042 = vmatmul.mubr.f32.gmra.mxu0 %v91
    %v2043 = vpop.f32.mrf.mxu0
    %v2044 = vadd.f32 %v1973, %v2043
    %v2045 = vpop.f32.mrf.mxu0
    %v2046 = vadd.f32 %v1975, %v2045
    %2047 = vdwg.mxu0
    %2048 = vmatprep.subr.mxu0 %v802
    %2049 = vmatpush1.msra.mxu0 %v801
    %2050 = vmatprep.subr.mxu0 %v798
    %2051 = vmatpush1.msra.mxu0 %v797
    %2052 = vmatprep.subr.mxu0 %v794
    %2053 = vmatpush1.msra.mxu0 %v793
    %2054 = vmatprep.subr.mxu0 %v790
    %2055 = vmatpush1.msra.mxu0 %v789
    %2056 = vmatprep.subr.mxu0 %v786
    %2057 = vmatpush1.msra.mxu0 %v785
    %2058 = vmatprep.subr.mxu0 %v782
    %2059 = vmatpush1.msra.mxu0 %v781
    %2060 = vmatprep.subr.mxu0 %v778
    %2061 = vmatpush1.msra.mxu0 %v777
    %2062 = vmatprep.subr.mxu0 %v774
    %2063 = vmatpush1.msra.mxu0 %v773
    %2064 = vmatprep.subr.mxu0 %v770
    %2065 = vmatpush1.msra.mxu0 %v769
    %2066 = vmatprep.subr.mxu0 %v766
    %2067 = vmatpush1.msra.mxu0 %v765
    %2068 = vmatprep.subr.mxu0 %v762
    %2069 = vmatpush1.msra.mxu0 %v761
    %2070 = vmatprep.subr.mxu0 %v758
    %2071 = vmatpush1.msra.mxu0 %v757
    %2072 = vmatprep.subr.mxu0 %v754
    %2073 = vmatpush1.msra.mxu0 %v753
    %2074 = vmatprep.subr.mxu0 %v750
    %2075 = vmatpush1.msra.mxu0 %v749
    %2076 = vmatprep.subr.mxu0 %v746
    %2077 = vmatpush1.msra.mxu0 %v745
    %2078 = vmatprep.subr.mxu0 %v742
    %2079 = vmatpush1.msra.mxu0 %v741
    %2080 = vmatprep.subr.mxu0 %v866
    %2081 = vmatpush2.msra.mxu0 %v865
    %2082 = vmatprep.subr.mxu0 %v862
    %2083 = vmatpush2.msra.mxu0 %v861
    %2084 = vmatprep.subr.mxu0 %v858
    %2085 = vmatpush2.msra.mxu0 %v857
    %2086 = vmatprep.subr.mxu0 %v854
    %2087 = vmatpush2.msra.mxu0 %v853
    %2088 = vmatprep.subr.mxu0 %v850
    %2089 = vmatpush2.msra.mxu0 %v849
    %2090 = vmatprep.subr.mxu0 %v846
    %2091 = vmatpush2.msra.mxu0 %v845
    %2092 = vmatprep.subr.mxu0 %v842
    %2093 = vmatpush2.msra.mxu0 %v841
    %2094 = vmatprep.subr.mxu0 %v838
    %2095 = vmatpush2.msra.mxu0 %v837
    %2096 = vmatprep.subr.mxu0 %v834
    %2097 = vmatpush2.msra.mxu0 %v833
    %2098 = vmatprep.subr.mxu0 %v830
    %2099 = vmatpush2.msra.mxu0 %v829
    %2100 = vmatprep.subr.mxu0 %v826
    %2101 = vmatpush2.msra.mxu0 %v825
    %2102 = vmatprep.subr.mxu0 %v822
    %2103 = vmatpush2.msra.mxu0 %v821
    %2104 = vmatprep.subr.mxu0 %v818
    %2105 = vmatpush2.msra.mxu0 %v817
    %2106 = vmatprep.subr.mxu0 %v814
    %2107 = vmatpush2.msra.mxu0 %v813
    %2108 = vmatprep.subr.mxu0 %v810
    %2109 = vmatpush2.msra.mxu0 %v809
    %2110 = vmatprep.subr.mxu0 %v806
    %2111 = vmatpush2.msra.mxu0 %v805
    %2112 = vmatprep.mubr.f32.mxu0 %v94
    %2113 = vmatmul.mubr.f32.gmra.mxu0 %v93
    %v2114 = vpop.f32.mrf.mxu0
    %v2115 = vadd.f32 %v2044, %v2114
    %v2116 = vpop.f32.mrf.mxu0
    %v2117 = vadd.f32 %v2046, %v2116
    %2118 = vdwg.mxu0
    %2119 = vmatprep.subr.mxu0 %v930
    %2120 = vmatpush1.msra.mxu0 %v929
    %2121 = vmatprep.subr.mxu0 %v926
    %2122 = vmatpush1.msra.mxu0 %v925
    %2123 = vmatprep.subr.mxu0 %v922
    %2124 = vmatpush1.msra.mxu0 %v921
    %2125 = vmatprep.subr.mxu0 %v918
    %2126 = vmatpush1.msra.mxu0 %v917
    %2127 = vmatprep.subr.mxu0 %v914
    %2128 = vmatpush1.msra.mxu0 %v913
    %2129 = vmatprep.subr.mxu0 %v910
    %2130 = vmatpush1.msra.mxu0 %v909
    %2131 = vmatprep.subr.mxu0 %v906
    %2132 = vmatpush1.msra.mxu0 %v905
    %2133 = vmatprep.subr.mxu0 %v902
    %2134 = vmatpush1.msra.mxu0 %v901
    %2135 = vmatprep.subr.mxu0 %v898
    %2136 = vmatpush1.msra.mxu0 %v897
    %2137 = vmatprep.subr.mxu0 %v894
    %2138 = vmatpush1.msra.mxu0 %v893
    %2139 = vmatprep.subr.mxu0 %v890
    %2140 = vmatpush1.msra.mxu0 %v889
    %2141 = vmatprep.subr.mxu0 %v886
    %2142 = vmatpush1.msra.mxu0 %v885
    %2143 = vmatprep.subr.mxu0 %v882
    %2144 = vmatpush1.msra.mxu0 %v881
    %2145 = vmatprep.subr.mxu0 %v878
    %2146 = vmatpush1.msra.mxu0 %v877
    %2147 = vmatprep.subr.mxu0 %v874
    %2148 = vmatpush1.msra.mxu0 %v873
    %2149 = vmatprep.subr.mxu0 %v870
    %2150 = vmatpush1.msra.mxu0 %v869
    %2151 = vmatprep.subr.mxu0 %v994
    %2152 = vmatpush2.msra.mxu0 %v993
    %2153 = vmatprep.subr.mxu0 %v990
    %2154 = vmatpush2.msra.mxu0 %v989
    %2155 = vmatprep.subr.mxu0 %v986
    %2156 = vmatpush2.msra.mxu0 %v985
    %2157 = vmatprep.subr.mxu0 %v982
    %2158 = vmatpush2.msra.mxu0 %v981
    %2159 = vmatprep.subr.mxu0 %v978
    %2160 = vmatpush2.msra.mxu0 %v977
    %2161 = vmatprep.subr.mxu0 %v974
    %2162 = vmatpush2.msra.mxu0 %v973
    %2163 = vmatprep.subr.mxu0 %v970
    %2164 = vmatpush2.msra.mxu0 %v969
    %2165 = vmatprep.subr.mxu0 %v966
    %2166 = vmatpush2.msra.mxu0 %v965
    %2167 = vmatprep.subr.mxu0 %v962
    %2168 = vmatpush2.msra.mxu0 %v961
    %2169 = vmatprep.subr.mxu0 %v958
    %2170 = vmatpush2.msra.mxu0 %v957
    %2171 = vmatprep.subr.mxu0 %v954
    %2172 = vmatpush2.msra.mxu0 %v953
    %2173 = vmatprep.subr.mxu0 %v950
    %2174 = vmatpush2.msra.mxu0 %v949
    %2175 = vmatprep.subr.mxu0 %v946
    %2176 = vmatpush2.msra.mxu0 %v945
    %2177 = vmatprep.subr.mxu0 %v942
    %2178 = vmatpush2.msra.mxu0 %v941
    %2179 = vmatprep.subr.mxu0 %v938
    %2180 = vmatpush2.msra.mxu0 %v937
    %2181 = vmatprep.subr.mxu0 %v934
    %2182 = vmatpush2.msra.mxu0 %v933
    %2183 = vmatprep.mubr.f32.mxu0 %v96
    %2184 = vmatmul.mubr.f32.gmra.mxu0 %v95
    %v2185 = vpop.f32.mrf.mxu0
    %v2186 = vadd.f32 %v2115, %v2185
    %v2187 = vpop.f32.mrf.mxu0
    %v2188 = vadd.f32 %v2117, %v2187
    %2189 = vdwg.mxu0
    %2190 = vmatprep.subr.mxu0 %v1058
    %2191 = vmatpush1.msra.mxu0 %v1057
    %2192 = vmatprep.subr.mxu0 %v1054
    %2193 = vmatpush1.msra.mxu0 %v1053
    %2194 = vmatprep.subr.mxu0 %v1050
    %2195 = vmatpush1.msra.mxu0 %v1049
    %2196 = vmatprep.subr.mxu0 %v1046
    %2197 = vmatpush1.msra.mxu0 %v1045
    %2198 = vmatprep.subr.mxu0 %v1042
    %2199 = vmatpush1.msra.mxu0 %v1041
    %2200 = vmatprep.subr.mxu0 %v1038
    %2201 = vmatpush1.msra.mxu0 %v1037
    %2202 = vmatprep.subr.mxu0 %v1034
    %2203 = vmatpush1.msra.mxu0 %v1033
    %2204 = vmatprep.subr.mxu0 %v1030
    %2205 = vmatpush1.msra.mxu0 %v1029
    %2206 = vmatprep.subr.mxu0 %v1026
    %2207 = vmatpush1.msra.mxu0 %v1025
    %2208 = vmatprep.subr.mxu0 %v1022
    %2209 = vmatpush1.msra.mxu0 %v1021
    %2210 = vmatprep.subr.mxu0 %v1018
    %2211 = vmatpush1.msra.mxu0 %v1017
    %2212 = vmatprep.subr.mxu0 %v1014
    %2213 = vmatpush1.msra.mxu0 %v1013
    %2214 = vmatprep.subr.mxu0 %v1010
    %2215 = vmatpush1.msra.mxu0 %v1009
    %2216 = vmatprep.subr.mxu0 %v1006
    %2217 = vmatpush1.msra.mxu0 %v1005
    %2218 = vmatprep.subr.mxu0 %v1002
    %2219 = vmatpush1.msra.mxu0 %v1001
    %2220 = vmatprep.subr.mxu0 %v998
    %2221 = vmatpush1.msra.mxu0 %v997
    %2222 = vmatprep.subr.mxu0 0.0
    %2223 = vmatpush2.msra.mxu0 0.0
    %2224 = vmatprep.subr.mxu0 0.0
    %2225 = vmatpush2.msra.mxu0 0.0
    %2226 = vmatprep.subr.mxu0 0.0
    %2227 = vmatpush2.msra.mxu0 0.0
    %2228 = vmatprep.subr.mxu0 0.0
    %2229 = vmatpush2.msra.mxu0 0.0
    %2230 = vmatprep.subr.mxu0 0.0
    %2231 = vmatpush2.msra.mxu0 0.0
    %2232 = vmatprep.subr.mxu0 0.0
    %2233 = vmatpush2.msra.mxu0 0.0
    %2234 = vmatprep.subr.mxu0 %v1098
    %2235 = vmatpush2.msra.mxu0 %v1097
    %2236 = vmatprep.subr.mxu0 %v1094
    %2237 = vmatpush2.msra.mxu0 %v1093
    %2238 = vmatprep.subr.mxu0 %v1090
    %2239 = vmatpush2.msra.mxu0 %v1089
    %2240 = vmatprep.subr.mxu0 %v1086
    %2241 = vmatpush2.msra.mxu0 %v1085
    %2242 = vmatprep.subr.mxu0 %v1082
    %2243 = vmatpush2.msra.mxu0 %v1081
    %2244 = vmatprep.subr.mxu0 %v1078
    %2245 = vmatpush2.msra.mxu0 %v1077
    %2246 = vmatprep.subr.mxu0 %v1074
    %2247 = vmatpush2.msra.mxu0 %v1073
    %2248 = vmatprep.subr.mxu0 %v1070
    %2249 = vmatpush2.msra.mxu0 %v1069
    %2250 = vmatprep.subr.mxu0 %v1066
    %2251 = vmatpush2.msra.mxu0 %v1065
    %2252 = vmatprep.subr.mxu0 %v1062
    %2253 = vmatpush2.msra.mxu0 %v1061
    %2254 = vmatprep.mubr.f32.mxu0 %v1123
    %2255 = vmatmul.mubr.f32.gmra.mxu0 %v97
    %v2256 = vpop.f32.mrf.mxu0
    %v2257 = vadd.f32 %v2186, %v2256
    %v2258 = vpop.f32.mrf.mxu0
    %v2259 = vadd.f32 %v2188, %v2258
    %2260 = vdwg.mxu0
    %v2261 = vmax.f32 %v1689, 0.0
    %v2262 = vmax.f32 %v1691, 0.0
    %v2263 = vmax.f32 %v2257, 0.0
    %v2264 = vmax.f32 %v2259, 0.0
    %v2265 = vld [vmem:[%s3] sm:$0xff]
    %v2266 = vld [vmem:[%s3 + $0x8] sm:$0xff]
    %v2267 = vld [vmem:[%s3 + $0x10] sm:$0xff]
    %v2268 = vld [vmem:[%s3 + $0x18] sm:$0xff]
    %v2269 = vld [vmem:[%s3 + $0x20] sm:$0xff]
    %v2270 = vld [vmem:[%s3 + $0x28] sm:$0xff]
    %v2271 = vld [vmem:[%s3 + $0x30] sm:$0xff]
    %v2272 = vld [vmem:[%s3 + $0x38] sm:$0xff]
    %v2273 = vld [vmem:[%s3 + $0x40] sm:$0xff]
    %v2274 = vld [vmem:[%s3 + $0x48] sm:$0xff]
    %v2275 = vld [vmem:[%s3 + $0x50] sm:$0xff]
    %v2276 = vld [vmem:[%s3 + $0x58] sm:$0xff]
    %v2277 = vld [vmem:[%s3 + $0x60] sm:$0xff]
    %v2278 = vld [vmem:[%s3 + $0x68] sm:$0xff]
    %v2279 = vld [vmem:[%s3 + $0x70] sm:$0xff]
    %v2280 = vld [vmem:[%s3 + $0x78] sm:$0xff]
    %v2281 = vld [vmem:[%s3 + $0x80] sm:$0xff]
    %v2282 = vld [vmem:[%s3 + $0x88] sm:$0xff]
    %v2283 = vld [vmem:[%s3 + $0x90] sm:$0xff]
    %v2284 = vld [vmem:[%s3 + $0x98] sm:$0xff]
    %v2285 = vld [vmem:[%s3 + $0xa0] sm:$0xff]
    %v2286 = vld [vmem:[%s3 + $0xa8] sm:$0xff]
    %v2287 = vld [vmem:[%s3 + $0xb0] sm:$0xff]
    %v2288 = vld [vmem:[%s3 + $0xb8] sm:$0xff]
    %v2289 = vld [vmem:[%s3 + $0xc0] sm:$0xff]
    %v2290 = vld [vmem:[%s3 + $0xc8] sm:$0xff]
    %v2291 = vld [vmem:[%s3 + $0xd0] sm:$0xff]
    %v2292 = vld [vmem:[%s3 + $0xd8] sm:$0xff]
    %v2293 = vld [vmem:[%s3 + $0xe0] sm:$0xff]
    %v2294 = vld [vmem:[%s3 + $0xe8] sm:$0xff]
    %v2295 = vld [vmem:[%s3 + $0xf0] sm:$0xff]
    %v2296 = vld [vmem:[%s3 + $0xf8] sm:$0xff]
    %v2297 = vld [vmem:[%s3 + $0x100] sm:$0xff]
    %v2298 = vld [vmem:[%s3 + $0x108] sm:$0xff]
    %v2299 = vld [vmem:[%s3 + $0x110] sm:$0xff]
    %v2300 = vld [vmem:[%s3 + $0x118] sm:$0xff]
    %v2301 = vld [vmem:[%s3 + $0x120] sm:$0xff]
    %v2302 = vld [vmem:[%s3 + $0x128] sm:$0xff]
    %v2303 = vld [vmem:[%s3 + $0x130] sm:$0xff]
    %v2304 = vld [vmem:[%s3 + $0x138] sm:$0xff]
    %v2305 = vld [vmem:[%s3 + $0x140] sm:$0xff]
    %v2306 = vld [vmem:[%s3 + $0x148] sm:$0xff]
    %v2307 = vld [vmem:[%s3 + $0x150] sm:$0xff]
    %v2308 = vld [vmem:[%s3 + $0x158] sm:$0xff]
    %v2309 = vld [vmem:[%s3 + $0x160] sm:$0xff]
    %v2310 = vld [vmem:[%s3 + $0x168] sm:$0xff]
    %v2311 = vld [vmem:[%s3 + $0x170] sm:$0xff]
    %v2312 = vld [vmem:[%s3 + $0x178] sm:$0xff]
    %v2313 = vld [vmem:[%s3 + $0x180] sm:$0xff]
    %v2314 = vld [vmem:[%s3 + $0x188] sm:$0xff]
    %v2315 = vld [vmem:[%s3 + $0x190] sm:$0xff]
    %v2316 = vld [vmem:[%s3 + $0x198] sm:$0xff]
    %v2317 = vld [vmem:[%s3 + $0x1a0] sm:$0xff]
    %v2318 = vld [vmem:[%s3 + $0x1a8] sm:$0xff]
    %v2319 = vld [vmem:[%s3 + $0x1b0] sm:$0xff]
    %v2320 = vld [vmem:[%s3 + $0x1b8] sm:$0xff]
    %v2321 = vld [vmem:[%s3 + $0x1c0] sm:$0xff]
    %v2322 = vld [vmem:[%s3 + $0x1c8] sm:$0xff]
    %v2323 = vld [vmem:[%s3 + $0x1d0] sm:$0xff]
    %v2324 = vld [vmem:[%s3 + $0x1d8] sm:$0xff]
    %v2325 = vld [vmem:[%s3 + $0x1e0] sm:$0xff]
    %v2326 = vld [vmem:[%s3 + $0x1e8] sm:$0xff]
    %v2327 = vld [vmem:[%s3 + $0x1f0] sm:$0xff]
    %v2328 = vld [vmem:[%s3 + $0x1f8] sm:$0xff]
    %v2329 = vld [vmem:[#allocation7] sm:$0x1]
    %v2331 = vlaneseq
    %v2332 = vshrl.u32 %v2331, 7
    %v2333 = vsub.s32 0, %v2332
    %v2334 = vrot.slane %v2329, %v2333
    %2336 = vmatprep.subr.mxu0 0.0
    %2337 = vmatpush1.msra.mxu0 %v2280
    %2338 = vmatprep.subr.mxu0 0.0
    %2339 = vmatpush1.msra.mxu0 %v2279
    %2340 = vmatprep.subr.mxu0 0.0
    %2341 = vmatpush1.msra.mxu0 %v2278
    %2342 = vmatprep.subr.mxu0 0.0
    %2343 = vmatpush1.msra.mxu0 %v2277
    %2344 = vmatprep.subr.mxu0 0.0
    %2345 = vmatpush1.msra.mxu0 %v2276
    %2346 = vmatprep.subr.mxu0 0.0
    %2347 = vmatpush1.msra.mxu0 %v2275
    %2348 = vmatprep.subr.mxu0 0.0
    %2349 = vmatpush1.msra.mxu0 %v2274
    %2350 = vmatprep.subr.mxu0 0.0
    %2351 = vmatpush1.msra.mxu0 %v2273
    %2352 = vmatprep.subr.mxu0 0.0
    %2353 = vmatpush1.msra.mxu0 %v2272
    %2354 = vmatprep.subr.mxu0 0.0
    %2355 = vmatpush1.msra.mxu0 %v2271
    %2356 = vmatprep.subr.mxu0 0.0
    %2357 = vmatpush1.msra.mxu0 %v2270
    %2358 = vmatprep.subr.mxu0 0.0
    %2359 = vmatpush1.msra.mxu0 %v2269
    %2360 = vmatprep.subr.mxu0 0.0
    %2361 = vmatpush1.msra.mxu0 %v2268
    %2362 = vmatprep.subr.mxu0 0.0
    %2363 = vmatpush1.msra.mxu0 %v2267
    %2364 = vmatprep.subr.mxu0 0.0
    %2365 = vmatpush1.msra.mxu0 %v2266
    %2366 = vmatprep.subr.mxu0 0.0
    %2367 = vmatpush1.msra.mxu0 %v2265
    %2368 = vmatprep.subr.mxu0 0.0
    %2369 = vmatpush2.msra.mxu0 %v2296
    %2370 = vmatprep.subr.mxu0 0.0
    %2371 = vmatpush2.msra.mxu0 %v2295
    %2372 = vmatprep.subr.mxu0 0.0
    %2373 = vmatpush2.msra.mxu0 %v2294
    %2374 = vmatprep.subr.mxu0 0.0
    %2375 = vmatpush2.msra.mxu0 %v2293
    %2376 = vmatprep.subr.mxu0 0.0
    %2377 = vmatpush2.msra.mxu0 %v2292
    %2378 = vmatprep.subr.mxu0 0.0
    %2379 = vmatpush2.msra.mxu0 %v2291
    %2380 = vmatprep.subr.mxu0 0.0
    %2381 = vmatpush2.msra.mxu0 %v2290
    %2382 = vmatprep.subr.mxu0 0.0
    %2383 = vmatpush2.msra.mxu0 %v2289
    %2384 = vmatprep.subr.mxu0 0.0
    %2385 = vmatpush2.msra.mxu0 %v2288
    %2386 = vmatprep.subr.mxu0 0.0
    %2387 = vmatpush2.msra.mxu0 %v2287
    %2388 = vmatprep.subr.mxu0 0.0
    %2389 = vmatpush2.msra.mxu0 %v2286
    %2390 = vmatprep.subr.mxu0 0.0
    %2391 = vmatpush2.msra.mxu0 %v2285
    %2392 = vmatprep.subr.mxu0 0.0
    %2393 = vmatpush2.msra.mxu0 %v2284
    %2394 = vmatprep.subr.mxu0 0.0
    %2395 = vmatpush2.msra.mxu0 %v2283
    %2396 = vmatprep.subr.mxu0 0.0
    %2397 = vmatpush2.msra.mxu0 %v2282
    %2398 = vmatprep.subr.mxu0 0.0
    %2399 = vmatpush2.msra.mxu0 %v2281
    %2400 = vmatprep.mubr.f32.mxu0 %v2262
    %2401 = vmatmul.mubr.f32.gmra.mxu0 %v2261
    %v2402 = vpop.f32.mrf.mxu0
    %v2403 = vadd.f32 %v2334, %v2402
    %v2404 = vpop.f32.mrf.mxu0
    %2405 = vdwg.mxu0
    %2406 = vmatprep.subr.mxu0 0.0
    %2407 = vmatpush1.msra.mxu0 %v2312
    %2408 = vmatprep.subr.mxu0 0.0
    %2409 = vmatpush1.msra.mxu0 %v2311
    %2410 = vmatprep.subr.mxu0 0.0
    %2411 = vmatpush1.msra.mxu0 %v2310
    %2412 = vmatprep.subr.mxu0 0.0
    %2413 = vmatpush1.msra.mxu0 %v2309
    %2414 = vmatprep.subr.mxu0 0.0
    %2415 = vmatpush1.msra.mxu0 %v2308
    %2416 = vmatprep.subr.mxu0 0.0
    %2417 = vmatpush1.msra.mxu0 %v2307
    %2418 = vmatprep.subr.mxu0 0.0
    %2419 = vmatpush1.msra.mxu0 %v2306
    %2420 = vmatprep.subr.mxu0 0.0
    %2421 = vmatpush1.msra.mxu0 %v2305
    %2422 = vmatprep.subr.mxu0 0.0
    %2423 = vmatpush1.msra.mxu0 %v2304
    %2424 = vmatprep.subr.mxu0 0.0
    %2425 = vmatpush1.msra.mxu0 %v2303
    %2426 = vmatprep.subr.mxu0 0.0
    %2427 = vmatpush1.msra.mxu0 %v2302
    %2428 = vmatprep.subr.mxu0 0.0
    %2429 = vmatpush1.msra.mxu0 %v2301
    %2430 = vmatprep.subr.mxu0 0.0
    %2431 = vmatpush1.msra.mxu0 %v2300
    %2432 = vmatprep.subr.mxu0 0.0
    %2433 = vmatpush1.msra.mxu0 %v2299
    %2434 = vmatprep.subr.mxu0 0.0
    %2435 = vmatpush1.msra.mxu0 %v2298
    %2436 = vmatprep.subr.mxu0 0.0
    %2437 = vmatpush1.msra.mxu0 %v2297
    %2438 = vmatprep.subr.mxu0 0.0
    %2439 = vmatpush2.msra.mxu0 %v2328
    %2440 = vmatprep.subr.mxu0 0.0
    %2441 = vmatpush2.msra.mxu0 %v2327
    %2442 = vmatprep.subr.mxu0 0.0
    %2443 = vmatpush2.msra.mxu0 %v2326
    %2444 = vmatprep.subr.mxu0 0.0
    %2445 = vmatpush2.msra.mxu0 %v2325
    %2446 = vmatprep.subr.mxu0 0.0
    %2447 = vmatpush2.msra.mxu0 %v2324
    %2448 = vmatprep.subr.mxu0 0.0
    %2449 = vmatpush2.msra.mxu0 %v2323
    %2450 = vmatprep.subr.mxu0 0.0
    %2451 = vmatpush2.msra.mxu0 %v2322
    %2452 = vmatprep.subr.mxu0 0.0
    %2453 = vmatpush2.msra.mxu0 %v2321
    %2454 = vmatprep.subr.mxu0 0.0
    %2455 = vmatpush2.msra.mxu0 %v2320
    %2456 = vmatprep.subr.mxu0 0.0
    %2457 = vmatpush2.msra.mxu0 %v2319
    %2458 = vmatprep.subr.mxu0 0.0
    %2459 = vmatpush2.msra.mxu0 %v2318
    %2460 = vmatprep.subr.mxu0 0.0
    %2461 = vmatpush2.msra.mxu0 %v2317
    %2462 = vmatprep.subr.mxu0 0.0
    %2463 = vmatpush2.msra.mxu0 %v2316
    %2464 = vmatprep.subr.mxu0 0.0
    %2465 = vmatpush2.msra.mxu0 %v2315
    %2466 = vmatprep.subr.mxu0 0.0
    %2467 = vmatpush2.msra.mxu0 %v2314
    %2468 = vmatprep.subr.mxu0 0.0
    %2469 = vmatpush2.msra.mxu0 %v2313
    %2470 = vmatprep.mubr.f32.mxu0 %v2264
    %2471 = vmatmul.mubr.f32.gmra.mxu0 %v2263
    %v2472 = vpop.f32.mrf.mxu0
    %v2473 = vadd.f32 %v2403, %v2472
    %v2474 = vpop.f32.mrf.mxu0
    %2475 = vdwg.mxu0
    %vm2476 = vcmask 23552
    %v2477 = vsel %vm2476, %v2473, -inf
    %2478 = vmax.xlane.f32.xlu0 %v2477
    %v2479 = vpop.xlane.xlu0 %2478
    %v2480 = vsub.f32 %v2473, %v2479
    %v2481 = vmul.f32 %v2480, 1.442695
    %v2482 = vpow.pop %v2481
    %v2483 = vsel %vm2476, %v2482, 0.0
    %2484 = vadd.xlane.f32.xlu0 %v2483
    %v2485 = vpop.xlane.xlu0 %2484
    %v2486 = vrcp.pop %v2485
    %v2487 = vmul.f32 1.0, %v2486
    %v2488 = vmul.f32 %v2482, %v2487
    %v2489 = vld [vmem:[#allocation9] sm:$0x1]
    %v2491 = vlaneseq
    %v2492 = vshrl.u32 %v2491, 7
    %v2493 = vsub.s32 0, %v2492
    %v2494 = vrot.slane %v2489, %v2493
    %v2496 = vmul.f32 %v2488, %v2494
    %v2497 = vsel %vm2476, %v2496, 0.0
    %2498 = vadd.xlane.f32.xlu0 %v2497
    %v2499 = vpop.xlane.xlu0 %2498
    %v2500 = vadd.f32 %v2499, %v2473
    %v2501 = vlaneseq
    %v2502 = vand.u32 %v2501, 127
    %vm2503 = vcmp.eq.s32.totalorder %v2502, 0
    %2505 = vset.pattern.permute.xlu0 0
    %2506 = vperm.xlu0 %2505, %v2488
    %v2507 = vpop.permute.xlu0 %2506
    %v2509 = vsel %vm2503, %v2507, 0.0
    %vm2510 = vcmp.eq.s32.totalorder %v2502, 1
    %2511 = vset.pattern.permute.xlu0 1
    %2512 = vperm.xlu0 %2511, %v2488
    %v2513 = vpop.permute.xlu0 %2512
    %v2515 = vsel %vm2510, %v2513, 0.0
    %v2516 = vadd.f32 %v2509, %v2515
    %vm2517 = vcmp.eq.s32.totalorder %v2502, 2
    %2518 = vset.pattern.permute.xlu0 2
    %2519 = vperm.xlu0 %2518, %v2488
    %v2520 = vpop.permute.xlu0 %2519
    %v2522 = vsel %vm2517, %v2520, 0.0
    %v2523 = vadd.f32 %v2516, %v2522
    %vm2524 = vcmp.eq.s32.totalorder %v2502, 3
    %2526 = vset.pattern.permute.xlu0 3
    %2527 = vperm.xlu0 %2526, %v2500
    %v2528 = vpop.permute.xlu0 %2527
    %v2530 = vsel %vm2524, %v2528, 0.0
    %v2531 = vadd.f32 %v2523, %v2530
    %2532 = vst [vmem:[%s6] sm:$0xff] %v2531
    // Predicated region
    $region46: #{head_forward.1} parent=1 // pred_check
      _
    $region47: #{head_forward.1} parent=1 // pred_check_branch
      %2534 = sbr.rel (0) target = $region49
    $region48: #{head_forward.1} parent=1 // pred_region
      _
    $region49: #{head_forward.1} parent=1 // pred_fallthru
      _
    // Predicated region
    $region50: #{head_forward.1} parent=1 // pred_check
      _
    $region51: #{head_forward.1} parent=1 // pred_check_branch
      %2536 = sbr.rel (0) target = $region53
    $region52: #{head_forward.1} parent=1 // pred_region
      _
    $region53: #{head_forward.1} parent=1 // pred_fallthru
      _
    %2537 = vsyncpa [#allocation3], 1
    %2538 = vsyncpa [#allocation5], 1
    %2539 = vsyncpa [#allocation8], 1

</llo_original>
